<compile_context>
chip_gen: v5e
topology: v5e:2x2
jax: 0.10.0
libtpu: 0.0.40
codegen_flags: <defaults>
</compile_context>

<pallas_src>
import functools

import jax
import jax.numpy as jnp
from jax.experimental import pallas as pl
from jax.experimental.pallas import tpu as pltpu

latent_dim = 20
hidden_dim = 200
output_dim = 784  # e.g. flattened 28x28 MNIST reconstruction

LANE = 128
SUBLANE = 8
MAX_TILE_B = 1024


def _round_up(x, m):
    return (x + m - 1) // m * m


def _choose_tile_b(B):
    """Large batch tiles amortize the ~0.35us per-grid-step overhead, but we
    target >= 2 grid steps so the "parallel" batch axis keeps both v7x
    TensorCores busy.  Multiples of 8 keep sublane-aligned blocks."""
    if B <= SUBLANE:
        return SUBLANE
    half = _round_up(-(-B // 2), SUBLANE)  # ceil(B/2) rounded up to 8
    return int(min(MAX_TILE_B, half))


def decoder_kernel(z_ref, w1_ref, b1_ref, w2_ref, b2_ref, out_ref):
    # linear1: (TB, L) @ (L, Hp) -- bf16 operands, f32 accumulation on the MXU.
    h = jnp.dot(z_ref[...], w1_ref[...], preferred_element_type=jnp.float32)
    h = jnp.maximum(h + b1_ref[...], 0.0)  # bias + ReLU in f32 (VPU)
    # linear2: (TB, Hp) @ (Hp, O) -- bf16 operands, f32 accumulation.
    logits = jnp.dot(h.astype(jnp.bfloat16), w2_ref[...],
                     preferred_element_type=jnp.float32)
    out_ref[...] = jax.nn.sigmoid(logits + b2_ref[...]).astype(out_ref.dtype)


def prepare_params(w1, b1, w2, b2):
    """One-time parameter prep (hoisted out of the forward hot path):
    cast weights to bf16 and zero-pad the hidden dim 200 -> 256 so the second
    matmul's contraction dim is a clean multiple of 128.  Padding is zeros so
    results are exact.  The output dim (784) is deliberately left unpadded."""
    L, H = w1.shape
    H2, O = w2.shape
    assert H2 == H
    Hp = _round_up(H, LANE)
    w1_p = jnp.pad(w1.astype(jnp.bfloat16), ((0, 0), (0, Hp - H)))
    b1_p = jnp.pad(jnp.reshape(b1, (1, H)).astype(jnp.float32),
                   ((0, 0), (0, Hp - H)))
    w2_p = jnp.pad(w2.astype(jnp.bfloat16), ((0, Hp - H), (0, 0)))
    b2_p = jnp.reshape(b2, (1, O)).astype(jnp.float32)
    return w1_p, b1_p, w2_p, b2_p


@functools.partial(jax.jit, static_argnames=("out_dtype",))
def decoder_forward(z, w1_p, b1_p, w2_p, b2_p, *, out_dtype=jnp.float32):
    """z: (B, latent) float; (w1_p, b1_p, w2_p, b2_p) from prepare_params().
    Returns (B, output_dim) in out_dtype (default float32, matching torch)."""
    B, L = z.shape
    Lw, Hp = w1_p.shape
    Hw, O = w2_p.shape
    assert Lw == L and Hw == Hp

    tile_b = _choose_tile_b(B)
    grid = (pl.cdiv(B, tile_b),)  # no batch padding; edge block is masked

    # z rows are only 20 wide: feed them as bf16 (halves read + VMEM tile).
    z_bf = z.astype(jnp.bfloat16)

    vmem = pltpu.MemorySpace.VMEM
    return pl.pallas_call(
        decoder_kernel,
        out_shape=jax.ShapeDtypeStruct((B, O), out_dtype),
        grid=grid,
        in_specs=[
            # z tiles stream over the batch grid (double-buffered by Pallas).
            pl.BlockSpec((tile_b, L), lambda i: (i, 0), memory_space=vmem),
            # Weights/biases: constant index_map -> DMA'd once, VMEM-resident
            # across all grid steps.  (pl.Buffered(1) would drop the redundant
            # second pipeline buffer (~0.5 MB); skipped since total residency
            # is far below every generation's VMEM limit.)
            pl.BlockSpec((L, Hp), lambda i: (0, 0), memory_space=vmem),
            pl.BlockSpec((1, Hp), lambda i: (0, 0), memory_space=vmem),
            pl.BlockSpec((Hp, O), lambda i: (0, 0), memory_space=vmem),
            pl.BlockSpec((1, O), lambda i: (0, 0), memory_space=vmem),
        ],
        # Unpadded output: last block dim == full array dim (784); partial edge
        # batch block writes are masked, so no post-kernel slice is needed.
        out_specs=pl.BlockSpec((tile_b, O), lambda i: (i, 0), memory_space=vmem),
        compiler_params=pltpu.CompilerParams(
            # Batch tiles are independent -> shard across the 2 TCs on v7x.
            dimension_semantics=("parallel",),
        ),
    )(z_bf, w1_p, b1_p, w2_p, b2_p)


def init_params(key):
    # Deterministic synthetic init mimicking nn.Linear's U(-1/sqrt(fan_in), .).
    k1, k2, k3, k4 = jax.random.split(key, 4)
    bound1 = 1.0 / jnp.sqrt(latent_dim)
    bound2 = 1.0 / jnp.sqrt(hidden_dim)
    # Weights stored as (in_features, out_features) (transpose of torch layout).
    w1 = jax.random.uniform(k1, (latent_dim, hidden_dim), jnp.float32,
                            -bound1, bound1)
    b1 = jax.random.uniform(k2, (1, hidden_dim), jnp.float32, -bound1, bound1)
    w2 = jax.random.uniform(k3, (hidden_dim, output_dim), jnp.float32,
                            -bound2, bound2)
    b2 = jax.random.uniform(k4, (1, output_dim), jnp.float32, -bound2, bound2)
    return w1, b1, w2, b2


def _reference_bf16(z, w1, b1, w2, b2):
    """Reference with the same compute dtypes as the kernel."""
    h = jnp.dot(z.astype(jnp.bfloat16), w1.astype(jnp.bfloat16),
                preferred_element_type=jnp.float32) + b1
    h = jnp.maximum(h, 0.0)
    return jax.nn.sigmoid(
        jnp.dot(h.astype(jnp.bfloat16), w2.astype(jnp.bfloat16),
                preferred_element_type=jnp.float32) + b2)


if __name__ == "__main__":
    key = jax.random.PRNGKey(0)
    pkey, zkey1, zkey2 = jax.random.split(key, 3)
    w1, b1, w2, b2 = init_params(pkey)
    params = prepare_params(w1, b1, w2, b2)  # pad/cast once, not per call

    # batch=384 -> tile_b=192, two "parallel" grid steps, zero batch padding.
    batch = 384
    z = jax.random.normal(zkey1, (batch, latent_dim), jnp.float32)
    x_hat = jax.block_until_ready(decoder_forward(z, *params))
    assert x_hat.shape == (batch, output_dim)
    assert x_hat.dtype == jnp.float32

    # Reference 1: same compute dtypes as the kernel (bf16 operands, f32 accum).
    x_ref = _reference_bf16(z, w1, b1, w2, b2)
    assert jnp.allclose(x_hat, x_ref, atol=1e-4, rtol=1e-4), \
        "mismatch vs bf16 reference"

    # Reference 2: full-f32 module semantics (loose bound for bf16 rounding).
    h_f = jnp.maximum(z @ w1 + b1, 0.0)
    x_f = jax.nn.sigmoid(h_f @ w2 + b2)
    assert jnp.max(jnp.abs(x_hat - x_f)) < 2e-2, "mismatch vs f32 reference"

    # Odd batch exercises the masked partial edge block (no padding anywhere).
    batch2 = 37
    z2 = jax.random.normal(zkey2, (batch2, latent_dim), jnp.float32)
    x_hat2 = jax.block_until_ready(decoder_forward(z2, *params))
    assert x_hat2.shape == (batch2, output_dim)
    x_ref2 = _reference_bf16(z2, w1, b1, w2, b2)
    assert jnp.allclose(x_hat2, x_ref2, atol=1e-4, rtol=1e-4), \
        "edge-block mismatch"

    print("KERNEL_OK")
</pallas_src>

<mosaic_0001>
module attributes {stable_mosaic.version = 11 : i64} {
  func.func @decoder_kernel(%arg0: i32, %arg1: memref<192x20xbf16, #tpu.memory_space<vmem>>, %arg2: memref<20x256xbf16, #tpu.memory_space<vmem>>, %arg3: memref<1x256xf32, #tpu.memory_space<vmem>>, %arg4: memref<256x784xbf16, #tpu.memory_space<vmem>>, %arg5: memref<1x784xf32, #tpu.memory_space<vmem>>, %arg6: memref<192x784xf32, #tpu.memory_space<vmem>>) attributes {dimension_semantics = [#tpu.dimension_semantics<parallel>], iteration_bounds = array<i64: 2>, scalar_prefetch = 0 : i64, scratch_operands = 0 : i64, tpu.core_type = #tpu.core_type<tc>, window_params = [{transform_indices = @transform_0, window_bounds = array<i64: 192, 20>}, {pipeline_mode = #tpu.pipeline_mode<synchronous>, transform_indices = @transform_1, window_bounds = array<i64: 20, 256>}, {pipeline_mode = #tpu.pipeline_mode<synchronous>, transform_indices = @transform_2, window_bounds = array<i64: 1, 256>}, {pipeline_mode = #tpu.pipeline_mode<synchronous>, transform_indices = @transform_3, window_bounds = array<i64: 256, 784>}, {pipeline_mode = #tpu.pipeline_mode<synchronous>, transform_indices = @transform_4, window_bounds = array<i64: 1, 784>}, {transform_indices = @transform_5, window_bounds = array<i64: 192, 784>}]} {
    %c0 = arith.constant 0 : index
    %c0_0 = arith.constant 0 : index
    %0 = vector.load %arg1[%c0, %c0_0] : memref<192x20xbf16, #tpu.memory_space<vmem>>, vector<192x20xbf16>
    %c0_1 = arith.constant 0 : index
    %c0_2 = arith.constant 0 : index
    %1 = vector.load %arg2[%c0_1, %c0_2] : memref<20x256xbf16, #tpu.memory_space<vmem>>, vector<20x256xbf16>
    %cst = arith.constant dense<0.000000e+00> : vector<192x256xf32>
    %2 = tpu.matmul %0, %1, %cst {dimension_numbers = #tpu.dot_dimension_numbers<[1], [0], [0], [1], [0, 0, 1, 1], [], []>} : vector<192x20xbf16>, vector<20x256xbf16>, vector<192x256xf32> -> vector<192x256xf32>
    %c0_3 = arith.constant 0 : index
    %c0_4 = arith.constant 0 : index
    %3 = vector.load %arg3[%c0_3, %c0_4] : memref<1x256xf32, #tpu.memory_space<vmem>>, vector<1x256xf32>
    %4 = vector.broadcast %3 : vector<1x256xf32> to vector<192x256xf32>
    %5 = arith.addf %2, %4 : vector<192x256xf32>
    %cst_5 = arith.constant 0.000000e+00 : f32
    %6 = vector.broadcast %cst_5 : f32 to vector<192x256xf32>
    %7 = arith.maximumf %5, %6 : vector<192x256xf32>
    %8 = arith.truncf %7 : vector<192x256xf32> to vector<192x256xbf16>
    %c0_6 = arith.constant 0 : index
    %c0_7 = arith.constant 0 : index
    %9 = vector.load %arg4[%c0_6, %c0_7] : memref<256x784xbf16, #tpu.memory_space<vmem>>, vector<256x784xbf16>
    %cst_8 = arith.constant dense<0.000000e+00> : vector<192x784xf32>
    %10 = tpu.matmul %8, %9, %cst_8 {dimension_numbers = #tpu.dot_dimension_numbers<[1], [0], [0], [1], [0, 0, 1, 1], [], []>} : vector<192x256xbf16>, vector<256x784xbf16>, vector<192x784xf32> -> vector<192x784xf32>
    %c0_9 = arith.constant 0 : index
    %c0_10 = arith.constant 0 : index
    %11 = vector.load %arg5[%c0_9, %c0_10] : memref<1x784xf32, #tpu.memory_space<vmem>>, vector<1x784xf32>
    %12 = vector.broadcast %11 : vector<1x784xf32> to vector<192x784xf32>
    %13 = arith.addf %10, %12 : vector<192x784xf32>
    %14 = arith.negf %13 : vector<192x784xf32>
    %15 = math.exp %14 : vector<192x784xf32>
    %cst_11 = arith.constant 1.000000e+00 : f32
    %16 = vector.broadcast %cst_11 : f32 to vector<192x784xf32>
    %17 = arith.addf %16, %15 : vector<192x784xf32>
    %18 = arith.divf %16, %17 : vector<192x784xf32>
    %c0_12 = arith.constant 0 : index
    %c0_13 = arith.constant 0 : index
    %19 = vector.load %arg6[%c0_12, %c0_13] : memref<192x784xf32, #tpu.memory_space<vmem>>, vector<192x784xf32>
    tpu.vector_store %arg6[%c0_12, %c0_13], %18 {strides = array<i32>} : memref<192x784xf32, #tpu.memory_space<vmem>>, vector<192x784xf32>,
    return
  }
  func.func @transform_0(%arg0: i32) -> (i32, i32) {
    %c0_i32 = arith.constant 0 : i32
    %c0_i32_0 = arith.constant 0 : i32
    return %arg0, %c0_i32 : i32, i32
  }
  func.func @transform_1(%arg0: i32) -> (i32, i32) {
    %c0_i32 = arith.constant 0 : i32
    %c0_i32_0 = arith.constant 0 : i32
    %c0_i32_1 = arith.constant 0 : i32
    return %c0_i32, %c0_i32_0 : i32, i32
  }
  func.func @transform_2(%arg0: i32) -> (i32, i32) {
    %c0_i32 = arith.constant 0 : i32
    %c0_i32_0 = arith.constant 0 : i32
    %c0_i32_1 = arith.constant 0 : i32
    return %c0_i32, %c0_i32_0 : i32, i32
  }
  func.func @transform_3(%arg0: i32) -> (i32, i32) {
    %c0_i32 = arith.constant 0 : i32
    %c0_i32_0 = arith.constant 0 : i32
    %c0_i32_1 = arith.constant 0 : i32
    return %c0_i32, %c0_i32_0 : i32, i32
  }
  func.func @transform_4(%arg0: i32) -> (i32, i32) {
    %c0_i32 = arith.constant 0 : i32
    %c0_i32_0 = arith.constant 0 : i32
    %c0_i32_1 = arith.constant 0 : i32
    return %c0_i32, %c0_i32_0 : i32, i32
  }
  func.func @transform_5(%arg0: i32) -> (i32, i32) {
    %c0_i32 = arith.constant 0 : i32
    %c0_i32_0 = arith.constant 0 : i32
    return %arg0, %c0_i32 : i32, i32
  }
}

</mosaic_0001>

<llo_original>
// kernel: decoder_forward.1
$region0: #{decoder_forward.1}
  #allocation0 [shape = 'u32[]', space=smem, size = 0x4, offset = 0x4, fixed_abs, tag = 'smem constant byte address 0x4 - core index']
  #allocation1 [shape = 'u32[72,128]{1,0:T(1,128)}', space=vmem, size = 0x9000, scoped, tag = 'internal scratch']
  %s0 = inlined_call_operand.vmem [shape: bf16[384,20], index: 0, kind: input, shape index: {}]
  %s1 = inlined_call_operand.hbm [shape: bf16[20,256], index: 1, kind: input, shape index: {}]
  %s2 = inlined_call_operand.hbm [shape: f32[1,256], index: 2, kind: input, shape index: {}]
  %s3 = inlined_call_operand.vmem [shape: bf16[256,784], index: 3, kind: input, shape index: {}]
  %s4 = inlined_call_operand.hbm [shape: f32[1,784], index: 4, kind: input, shape index: {}]
  %s5 = inlined_call_operand.vmem [shape: f32[384,784], index: 5, kind: output, shape index: {}]
  %s6 = sld [smem:[#allocation0]]
  $region65: #{decoder_forward.1} parent=0
    _
  %s8 = ssub.s32 1, %s6
  %s9 = scalar_select 0, %s8, %s6
  $region1: #{decoder_forward.1} parent=0
    #allocation2 [shape = 'u8[12288]{0}', space=vmem, size = 0x3000, scoped, tag = 'input window, operand 1, single buffered']
    #allocation3 [shape = 's32[2]{0}', space=sflag, size = 0x8, scoped, tag = 'scoped memory for decoder_forward.1']
    #allocation4 [shape = 'u8[1024]{0}', space=vmem, size = 0x400, scoped, tag = 'input window, operand 2, single buffered']
    #allocation5 [shape = 's32[1]{0}', space=sflag, size = 0x4, scoped, tag = 'scoped memory for decoder_forward.1']
    #allocation6 [shape = 'u8[3584]{0}', space=vmem, size = 0x1000, scoped, tag = 'input window, operand 4, single buffered']
    %10 = vsyncpa [#allocation3], 0
    %11 = vsyncpa [#allocation5], 0
    loop: start=0, step=1, limit=4
    $region2: #{decoder_forward.1} parent=1 // loop_pre_header
      _
    $region3: #{decoder_forward.1} parent=1 // loop_header
      %s13 = sphi 0, %s17
      %p14 = scmp.ge.s32.totalorder %s13, 4
      %s23 = sphi 0, %s25
      %s26 = sphi 0, %s23
      %s27 = sphi 0, %s26
      %s43 = sphi 0, %s27
      %s47 = sphi 0, %s47
      %s49 = sphi 0, %s47
      %s50 = sphi 0, %s49
      %s64 = sphi 0, %s50
      %s68 = sphi 0, %s68
      %s70 = sphi 0, %s68
      %s71 = sphi 0, %s70
      %s85 = sphi 0, %s71
      %s89 = sphi 0, %s89
      %s91 = sphi 0, %s89
      %s92 = sphi 0, %s91
      %s106 = sphi 0, %s92
      %s110 = sphi 0, %s110
      %s112 = sphi 0, %s110
      %s113 = sphi 0, %s112
      %s127 = sphi 0, %s113
      %s133 = sphi 0, %s135
      %s136 = sphi 0, %s133
      %s137 = sphi 0, %s136
      %s153 = sphi 0, %s137
    $region4: #{decoder_forward.1} parent=1 // loop_header_branch
      %16 = sbr.rel (%p14) target = $region8
    $region5: #{decoder_forward.1} parent=1 // loop_body
      %s18 = ssub.s32 %s13, 1
      %s19 = ssub.s32 %s13, 2
      %s20 = sadd.s32 %s13, 1
      %s21 = ssub.s32 %s13, %s20
      %p22 = scmp.eq.s32.totalorder %s21, 0
      %s24 = sadd.s32 %s23, 1
      %s25 = scalar_select %p22, %s23, %s24
      %p28 = pneg %p22
      %p29 = scmp.eq.s32.totalorder %s13, 1
      %p30 = por %p28, %p29
      %p31 = scmp.ne.s32.totalorder %s23, %s26
      %p32 = scmp.eq.s32.totalorder %s13, 0
      %p33 = por %p31, %p32
      %p34 = scmp.ne.s32.totalorder %s23, %s26
      %p35 = scmp.eq.s32.totalorder %s18, 1
      %p36 = por %p34, %p35
      %p37 = scmp.ne.s32.totalorder %s26, %s27
      %p38 = scmp.eq.s32.totalorder %s18, 0
      %p39 = por %p37, %p38
      %p40 = scmp.ne.s32.totalorder %s26, %s27
      %p41 = scmp.eq.s32.totalorder %s19, 1
      %p42 = por %p40, %p41
      %p44 = scmp.ne.s32.totalorder %s27, %s43
      %p45 = scmp.eq.s32.totalorder %s19, 0
      %p46 = por %p44, %p45
      %s48 = sadd.s32 %s47, 1
      %p51 = scmp.eq.s32.totalorder %s13, 1
      %p52 = scmp.ne.s32.totalorder %s47, %s49
      %p53 = scmp.eq.s32.totalorder %s13, 0
      %p54 = por %p52, %p53
      %p55 = scmp.ne.s32.totalorder %s47, %s49
      %p56 = scmp.eq.s32.totalorder %s18, 1
      %p57 = por %p55, %p56
      %p58 = scmp.ne.s32.totalorder %s49, %s50
      %p59 = scmp.eq.s32.totalorder %s18, 0
      %p60 = por %p58, %p59
      %p61 = scmp.ne.s32.totalorder %s49, %s50
      %p62 = scmp.eq.s32.totalorder %s19, 1
      %p63 = por %p61, %p62
      %p65 = scmp.ne.s32.totalorder %s50, %s64
      %p66 = scmp.eq.s32.totalorder %s19, 0
      %p67 = por %p65, %p66
      %s69 = sadd.s32 %s68, 1
      %p72 = scmp.eq.s32.totalorder %s13, 1
      %p73 = scmp.ne.s32.totalorder %s68, %s70
      %p74 = scmp.eq.s32.totalorder %s13, 0
      %p75 = por %p73, %p74
      %p76 = scmp.ne.s32.totalorder %s68, %s70
      %p77 = scmp.eq.s32.totalorder %s18, 1
      %p78 = por %p76, %p77
      %p79 = scmp.ne.s32.totalorder %s70, %s71
      %p80 = scmp.eq.s32.totalorder %s18, 0
      %p81 = por %p79, %p80
      %p82 = scmp.ne.s32.totalorder %s70, %s71
      %p83 = scmp.eq.s32.totalorder %s19, 1
      %p84 = por %p82, %p83
      %p86 = scmp.ne.s32.totalorder %s71, %s85
      %p87 = scmp.eq.s32.totalorder %s19, 0
      %p88 = por %p86, %p87
      %s90 = sadd.s32 %s89, 1
      %p93 = scmp.eq.s32.totalorder %s13, 1
      %p94 = scmp.ne.s32.totalorder %s89, %s91
      %p95 = scmp.eq.s32.totalorder %s13, 0
      %p96 = por %p94, %p95
      %p97 = scmp.ne.s32.totalorder %s89, %s91
      %p98 = scmp.eq.s32.totalorder %s18, 1
      %p99 = por %p97, %p98
      %p100 = scmp.ne.s32.totalorder %s91, %s92
      %p101 = scmp.eq.s32.totalorder %s18, 0
      %p102 = por %p100, %p101
      %p103 = scmp.ne.s32.totalorder %s91, %s92
      %p104 = scmp.eq.s32.totalorder %s19, 1
      %p105 = por %p103, %p104
      %p107 = scmp.ne.s32.totalorder %s92, %s106
      %p108 = scmp.eq.s32.totalorder %s19, 0
      %p109 = por %p107, %p108
      %s111 = sadd.s32 %s110, 1
      %p114 = scmp.eq.s32.totalorder %s13, 1
      %p115 = scmp.ne.s32.totalorder %s110, %s112
      %p116 = scmp.eq.s32.totalorder %s13, 0
      %p117 = por %p115, %p116
      %p118 = scmp.ne.s32.totalorder %s110, %s112
      %p119 = scmp.eq.s32.totalorder %s18, 1
      %p120 = por %p118, %p119
      %p121 = scmp.ne.s32.totalorder %s112, %s113
      %p122 = scmp.eq.s32.totalorder %s18, 0
      %p123 = por %p121, %p122
      %p124 = scmp.ne.s32.totalorder %s112, %s113
      %p125 = scmp.eq.s32.totalorder %s19, 1
      %p126 = por %p124, %p125
      %p128 = scmp.ne.s32.totalorder %s113, %s127
      %p129 = scmp.eq.s32.totalorder %s19, 0
      %p130 = por %p128, %p129
      %s131 = ssub.s32 %s13, %s20
      %p132 = scmp.eq.s32.totalorder %s131, 0
      %s134 = sadd.s32 %s133, 1
      %s135 = scalar_select %p132, %s133, %s134
      %p138 = pneg %p132
      %p139 = scmp.eq.s32.totalorder %s13, 1
      %p140 = por %p138, %p139
      %p141 = scmp.ne.s32.totalorder %s133, %s136
      %p142 = scmp.eq.s32.totalorder %s13, 0
      %p143 = por %p141, %p142
      %p144 = scmp.ne.s32.totalorder %s133, %s136
      %p145 = scmp.eq.s32.totalorder %s18, 1
      %p146 = por %p144, %p145
      %p147 = scmp.ne.s32.totalorder %s136, %s137
      %p148 = scmp.eq.s32.totalorder %s18, 0
      %p149 = por %p147, %p148
      %p150 = scmp.ne.s32.totalorder %s136, %s137
      %p151 = scmp.eq.s32.totalorder %s19, 1
      %p152 = por %p150, %p151
      %p154 = scmp.ne.s32.totalorder %s137, %s153
      %p155 = scmp.eq.s32.totalorder %s19, 0
      %p156 = por %p154, %p155
      %p157 = scmp.le.s32.totalorder 1, %s13
      %p158 = scmp.lt.s32.totalorder %s13, 3
      %p159 = pnand %p157, %p158
      %p160 = pneg %p159
      // Predicated region
      $region9: #{decoder_forward.1} parent=5 // pred_check
        _
      $region10: #{decoder_forward.1} parent=5 // pred_check_branch
        %162 = sbr.rel (%p159) target = $region12
      $region11: #{decoder_forward.1} parent=5 // pred_region
        %s163 = ssub.s32 %s13, 1
        // Predicated region
        $region13: #{decoder_forward.1} parent=11 // pred_check
          %p164 = pneg %p60
        $region14: #{decoder_forward.1} parent=11 // pred_check_branch
          %166 = sbr.rel (%p164) target = $region16
        $region15: #{decoder_forward.1} parent=11 // pred_region
          %168 = vsyncadd [#allocation3], 0
          %s169 = sshll.u32 %s1, 4
          %s170 = int_to_ptr.hbm [resolvable:$true] %s169
          %s171 = sshll.u32 [#allocation2], 4
          %s172 = int_to_ptr.vmem [resolvable:$true] %s171
          %177 = dma.hbm_to_vmem [thread:$0]  %s170, 384, %s172, [#allocation3], 128, 128, 8
        $region16: #{decoder_forward.1} parent=11 // pred_fallthru
          _
        // Predicated region
        $region17: #{decoder_forward.1} parent=11 // pred_check
          %p178 = pneg %p81
        $region18: #{decoder_forward.1} parent=11 // pred_check_branch
          %180 = sbr.rel (%p178) target = $region20
        $region19: #{decoder_forward.1} parent=11 // pred_region
          %182 = vsyncadd [#allocation5], 0
          %s184 = sshll.u32 %s2, 4
          %s185 = int_to_ptr.hbm [resolvable:$true] %s184
          %s186 = sshll.u32 [#allocation4], 4
          %s187 = int_to_ptr.vmem [resolvable:$true] %s186
          %189 = dma.hbm_to_vmem [thread:$0]  %s185, 32, %s187, [#allocation5]
        $region20: #{decoder_forward.1} parent=11 // pred_fallthru
          _
        // Predicated region
        $region21: #{decoder_forward.1} parent=11 // pred_check
          %p190 = pneg %p102
        $region22: #{decoder_forward.1} parent=11 // pred_check_branch
          %192 = sbr.rel (%p190) target = $region24
        $region23: #{decoder_forward.1} parent=11 // pred_region
          _
        $region24: #{decoder_forward.1} parent=11 // pred_fallthru
          _
        // Predicated region
        $region25: #{decoder_forward.1} parent=11 // pred_check
          %p193 = pneg %p123
        $region26: #{decoder_forward.1} parent=11 // pred_check_branch
          %195 = sbr.rel (%p193) target = $region28
        $region27: #{decoder_forward.1} parent=11 // pred_region
          %197 = vsyncadd [#allocation5], 0
          %s199 = sshll.u32 %s4, 4
          %s200 = int_to_ptr.hbm [resolvable:$true] %s199
          %s201 = sshll.u32 [#allocation6], 4
          %s202 = int_to_ptr.vmem [resolvable:$true] %s201
          %204 = dma.hbm_to_vmem [thread:$0]  %s200, 112, %s202, [#allocation5]
        $region28: #{decoder_forward.1} parent=11 // pred_fallthru
          _
      $region12: #{decoder_forward.1} parent=5 // pred_fallthru
        _
      %p205 = scmp.lt.s32.totalorder %s13, 2
      // Predicated region
      $region29: #{decoder_forward.1} parent=5 // pred_check
        %p206 = pneg %p205
      $region30: #{decoder_forward.1} parent=5 // pred_check_branch
        %208 = sbr.rel (%p206) target = $region32
      $region31: #{decoder_forward.1} parent=5 // pred_region
        // Predicated region
        $region33: #{decoder_forward.1} parent=31 // pred_check
          %p209 = pneg %p33
        $region34: #{decoder_forward.1} parent=31 // pred_check_branch
          %211 = sbr.rel (%p209) target = $region36
        $region35: #{decoder_forward.1} parent=31 // pred_region
          %s212 = smul.u32 24, %s13
          %p213 = scmp.lt.s32.totalorder %s212, 47
          %s214 = scalar_select %p213, %s212, 47
          %s215 = smul.addr %s214, 4
          %s216 = scalar_lea.vmem %s0, %s215
          %s217 = smul.u32 24, %s13
        $region36: #{decoder_forward.1} parent=31 // pred_fallthru
          _
      $region32: #{decoder_forward.1} parent=5 // pred_fallthru
        _
      %p218 = scmp.le.s32.totalorder 1, %s13
      %p219 = scmp.lt.s32.totalorder %s13, 3
      %p220 = pnand %p218, %p219
      %p221 = pneg %p220
      // Predicated region
      $region37: #{decoder_forward.1} parent=5 // pred_check
        _
      $region38: #{decoder_forward.1} parent=5 // pred_check_branch
        %223 = sbr.rel (%p220) target = $region40
      $region39: #{decoder_forward.1} parent=5 // pred_region
        %s224 = ssub.s32 %s13, 1
        // Predicated region
        $region41: #{decoder_forward.1} parent=39 // pred_check
          %p225 = pneg %p60
        $region42: #{decoder_forward.1} parent=39 // pred_check_branch
          %227 = sbr.rel (%p225) target = $region44
        $region43: #{decoder_forward.1} parent=39 // pred_region
          %229 = dma.done [#allocation3], 384
        $region44: #{decoder_forward.1} parent=39 // pred_fallthru
          _
        // Predicated region
        $region45: #{decoder_forward.1} parent=39 // pred_check
          %p230 = pneg %p81
        $region46: #{decoder_forward.1} parent=39 // pred_check_branch
          %232 = sbr.rel (%p230) target = $region48
        $region47: #{decoder_forward.1} parent=39 // pred_region
          %234 = dma.done [#allocation5], 32
        $region48: #{decoder_forward.1} parent=39 // pred_fallthru
          _
        // Predicated region
        $region49: #{decoder_forward.1} parent=39 // pred_check
          %p235 = pneg %p123
        $region50: #{decoder_forward.1} parent=39 // pred_check_branch
          %237 = sbr.rel (%p235) target = $region52
        $region51: #{decoder_forward.1} parent=39 // pred_region
          %239 = dma.done [#allocation5], 112
        $region52: #{decoder_forward.1} parent=39 // pred_fallthru
          _
        %s240 = smul.u32 24, %s18
        %p241 = scmp.lt.s32.totalorder %s240, 47
        %s242 = scalar_select %p241, %s240, 47
        %s243 = smul.addr %s242, 4
        %s244 = scalar_lea.vmem %s0, %s243
        %p245 = pneg %p39
        %p246 = pneg %p36
        %p247 = pneg %p60
        %p248 = pneg %p57
        %p249 = pneg %p81
        %p250 = pneg %p78
        %p251 = pneg %p102
        %p252 = pneg %p99
        %p253 = pneg %p123
        %p254 = pneg %p120
        %p255 = pneg %p149
        %p256 = pneg %p146
        %s257 = smul.u32 24, %s18
        %p258 = scmp.lt.s32.totalorder %s257, 47
        %s259 = scalar_select %p258, %s257, 47
        %s260 = smul.addr %s259, 7
        %s261 = smul.addr %s260, 8
        %s262 = scalar_lea.vmem %s5, %s261
        %s263 = smul.u32 24, %s18
        %p264 = scmp.lt.s32.totalorder %s263, 47
        %s265 = scalar_select %p264, %s263, 47
        %s266 = smul.addr %s265, 4
        %s267 = scalar_lea.vmem %s0, %s266
        %s268 = smul.u32 24, %s18
        %s269 = smul.u32 24, %s18
        %p270 = scmp.lt.s32.totalorder %s269, 47
        %s271 = scalar_select %p270, %s269, 47
        %s272 = smul.addr %s271, 7
        %s273 = smul.addr %s272, 8
        %s274 = scalar_lea.vmem %s5, %s273
        %s275 = smul.u32 24, %s18
        %v277 = vld [vmem:[%s267] sm:$0xf]
        %v278 = vld [vmem:[%s267 + $0x4] sm:$0xf]
        %v279 = vld [vmem:[%s267 + $0x8] sm:$0xf]
        %v280 = vld [vmem:[%s267 + $0xc] sm:$0xf]
        %v281 = vld [vmem:[%s267 + $0x10] sm:$0xf]
        %v282 = vld [vmem:[%s267 + $0x14] sm:$0xf]
        %v283 = vld [vmem:[%s267 + $0x18] sm:$0xf]
        %v284 = vld [vmem:[%s267 + $0x1c] sm:$0xf]
        %v285 = vld [vmem:[%s267 + $0x20] sm:$0xf]
        %v286 = vld [vmem:[%s267 + $0x24] sm:$0xf]
        %v287 = vld [vmem:[%s267 + $0x28] sm:$0xf]
        %v288 = vld [vmem:[%s267 + $0x2c] sm:$0xf]
        %v289 = vld [vmem:[%s267 + $0x30] sm:$0xf]
        %v290 = vld [vmem:[%s267 + $0x34] sm:$0xf]
        %v291 = vld [vmem:[%s267 + $0x38] sm:$0xf]
        %v292 = vld [vmem:[%s267 + $0x3c] sm:$0xf]
        %v293 = vld [vmem:[%s267 + $0x40] sm:$0xf]
        %v294 = vld [vmem:[%s267 + $0x44] sm:$0xf]
        %v295 = vld [vmem:[%s267 + $0x48] sm:$0xf]
        %v296 = vld [vmem:[%s267 + $0x4c] sm:$0xf]
        %v297 = vld [vmem:[%s267 + $0x50] sm:$0xf]
        %v298 = vld [vmem:[%s267 + $0x54] sm:$0xf]
        %v299 = vld [vmem:[%s267 + $0x58] sm:$0xf]
        %v300 = vld [vmem:[%s267 + $0x5c] sm:$0xf]
        %v301 = vld [vmem:[#allocation2] sm:$0xff]
        %v302 = vld [vmem:[#allocation2 + $0x8] sm:$0xff]
        %v303 = vld [vmem:[#allocation2 + $0x10] sm:$0x33]
        %v304 = vld [vmem:[#allocation4] sm:$0x3]
        %v306 = vperm.slane %v304, 0
        %v307 = vperm.slane %v304, 1
        %v334 = vunpack.c.l.b16 %v277
        %v335 = vunpack.c.l.b16 %v278
        %v336 = vunpack.c.l.b16 %v279
        %v337 = vunpack.c.l.b16 %v280
        %v338 = vunpack.c.l.b16 %v281
        %v339 = vunpack.c.l.b16 %v282
        %v340 = vunpack.c.l.b16 %v283
        %v341 = vunpack.c.l.b16 %v284
        %v342 = vunpack.c.l.b16 %v285
        %v343 = vunpack.c.l.b16 %v286
        %v344 = vunpack.c.l.b16 %v287
        %v345 = vunpack.c.l.b16 %v288
        %v346 = vunpack.c.l.b16 %v289
        %v347 = vunpack.c.l.b16 %v290
        %v348 = vunpack.c.l.b16 %v291
        %v349 = vunpack.c.l.b16 %v292
        %v350 = vunpack.c.l.b16 %v293
        %v351 = vunpack.c.l.b16 %v294
        %v352 = vunpack.c.l.b16 %v295
        %v353 = vunpack.c.l.b16 %v296
        %v354 = vunpack.c.l.b16 %v297
        %v355 = vunpack.c.l.b16 %v298
        %v356 = vunpack.c.l.b16 %v299
        %v357 = vunpack.c.l.b16 %v300
        %v358 = vpack.c.b16 %v335, %v334
        %v359 = vpack.c.b16 %v337, %v336
        %v360 = vpack.c.b16 %v339, %v338
        %v361 = vpack.c.b16 %v341, %v340
        %v362 = vpack.c.b16 %v343, %v342
        %v363 = vpack.c.b16 %v345, %v344
        %v364 = vpack.c.b16 %v347, %v346
        %v365 = vpack.c.b16 %v349, %v348
        %v366 = vpack.c.b16 %v351, %v350
        %v367 = vpack.c.b16 %v353, %v352
        %v368 = vpack.c.b16 %v355, %v354
        %v369 = vpack.c.b16 %v357, %v356
        %v373 = vunpack.c.l.b16 %v301
        %v374 = vunpack.c.h.b16 %v301
        %v375 = vunpack.c.l.b16 %v302
        %v376 = vunpack.c.h.b16 %v302
        %v377 = vunpack.c.l.b16 %v303
        %v378 = vunpack.c.h.b16 %v303
        %v379 = vpack.c.b16 %v375, %v373
        %v380 = vpack.c.b16 %v376, %v374
        %v381 = vpack.c.b16 %v377, %v377
        %v382 = vpack.c.b16 %v378, %v378
        %vm385 = vcmask 162816
        %v387 = vsel %vm385, %v358, 0
        %v390 = vsel %vm385, %v359, 0
        %v393 = vsel %vm385, %v360, 0
        %v396 = vsel %vm385, %v361, 0
        %v399 = vsel %vm385, %v362, 0
        %v402 = vsel %vm385, %v363, 0
        %v405 = vsel %vm385, %v364, 0
        %v408 = vsel %vm385, %v365, 0
        %v411 = vsel %vm385, %v366, 0
        %v414 = vsel %vm385, %v367, 0
        %v417 = vsel %vm385, %v368, 0
        %v420 = vsel %vm385, %v369, 0
        %vm422 = vcmask 1041408
        %v424 = vsel %vm422, %v381, 0
        %v427 = vsel %vm422, %v382, 0
        %429 = vmatpush.bf16.msra.mxu0 0
        %430 = vmatpush.bf16.msra.mxu0 0
        %431 = vmatpush.bf16.msra.mxu0 0
        %432 = vmatpush.bf16.msra.mxu0 0
        %433 = vmatpush.bf16.msra.mxu0 0
        %434 = vmatpush.bf16.msra.mxu0 0
        %435 = vmatpush.bf16.msra.mxu0 %v424
        %436 = vmatpush.bf16.msra.mxu0 %v379
        %437 = vmatmul.bf16.gmra.mxu0 %v387
        %v438 = vpop.f32.mrf.mxu0
        %v439 = vadd.f32 %v306, %v438
        %v440 = vpop.f32.mrf.mxu0
        %v441 = vadd.f32 %v306, %v440
        %442 = vmatmul.bf16.gmra.mxu0 %v390
        %v443 = vpop.f32.mrf.mxu0
        %v444 = vadd.f32 %v306, %v443
        %v445 = vpop.f32.mrf.mxu0
        %v446 = vadd.f32 %v306, %v445
        %447 = vmatmul.bf16.gmra.mxu0 %v393
        %v448 = vpop.f32.mrf.mxu0
        %v449 = vadd.f32 %v306, %v448
        %v450 = vpop.f32.mrf.mxu0
        %v451 = vadd.f32 %v306, %v450
        %452 = vmatmul.bf16.gmra.mxu0 %v396
        %v453 = vpop.f32.mrf.mxu0
        %v454 = vadd.f32 %v306, %v453
        %v455 = vpop.f32.mrf.mxu0
        %v456 = vadd.f32 %v306, %v455
        %457 = vmatmul.bf16.gmra.mxu0 %v399
        %v458 = vpop.f32.mrf.mxu0
        %v459 = vadd.f32 %v306, %v458
        %v460 = vpop.f32.mrf.mxu0
        %v461 = vadd.f32 %v306, %v460
        %462 = vmatmul.bf16.gmra.mxu0 %v402
        %v463 = vpop.f32.mrf.mxu0
        %v464 = vadd.f32 %v306, %v463
        %v465 = vpop.f32.mrf.mxu0
        %v466 = vadd.f32 %v306, %v465
        %467 = vmatmul.bf16.gmra.mxu0 %v405
        %v468 = vpop.f32.mrf.mxu0
        %v469 = vadd.f32 %v306, %v468
        %v470 = vpop.f32.mrf.mxu0
        %v471 = vadd.f32 %v306, %v470
        %472 = vmatmul.bf16.gmra.mxu0 %v408
        %v473 = vpop.f32.mrf.mxu0
        %v474 = vadd.f32 %v306, %v473
        %v475 = vpop.f32.mrf.mxu0
        %v476 = vadd.f32 %v306, %v475
        %477 = vmatmul.bf16.gmra.mxu0 %v411
        %v478 = vpop.f32.mrf.mxu0
        %v479 = vadd.f32 %v306, %v478
        %v480 = vpop.f32.mrf.mxu0
        %v481 = vadd.f32 %v306, %v480
        %482 = vmatmul.bf16.gmra.mxu0 %v414
        %v483 = vpop.f32.mrf.mxu0
        %v484 = vadd.f32 %v306, %v483
        %v485 = vpop.f32.mrf.mxu0
        %v486 = vadd.f32 %v306, %v485
        %487 = vmatmul.bf16.gmra.mxu0 %v417
        %v488 = vpop.f32.mrf.mxu0
        %v489 = vadd.f32 %v306, %v488
        %v490 = vpop.f32.mrf.mxu0
        %v491 = vadd.f32 %v306, %v490
        %492 = vmatmul.bf16.gmra.mxu0 %v420
        %v493 = vpop.f32.mrf.mxu0
        %v494 = vadd.f32 %v306, %v493
        %v495 = vpop.f32.mrf.mxu0
        %v496 = vadd.f32 %v306, %v495
        %497 = vdwg.mxu0
        %498 = vmatpush.bf16.msra.mxu0 0
        %499 = vmatpush.bf16.msra.mxu0 0
        %500 = vmatpush.bf16.msra.mxu0 0
        %501 = vmatpush.bf16.msra.mxu0 0
        %502 = vmatpush.bf16.msra.mxu0 0
        %503 = vmatpush.bf16.msra.mxu0 0
        %504 = vmatpush.bf16.msra.mxu0 %v427
        %505 = vmatpush.bf16.msra.mxu0 %v380
        %506 = vmatmul.bf16.gmra.mxu0 %v387
        %v507 = vpop.f32.mrf.mxu0
        %v508 = vadd.f32 %v307, %v507
        %v509 = vpop.f32.mrf.mxu0
        %v510 = vadd.f32 %v307, %v509
        %511 = vmatmul.bf16.gmra.mxu0 %v390
        %v512 = vpop.f32.mrf.mxu0
        %v513 = vadd.f32 %v307, %v512
        %v514 = vpop.f32.mrf.mxu0
        %v515 = vadd.f32 %v307, %v514
        %516 = vmatmul.bf16.gmra.mxu0 %v393
        %v517 = vpop.f32.mrf.mxu0
        %v518 = vadd.f32 %v307, %v517
        %v519 = vpop.f32.mrf.mxu0
        %v520 = vadd.f32 %v307, %v519
        %521 = vmatmul.bf16.gmra.mxu0 %v396
        %v522 = vpop.f32.mrf.mxu0
        %v523 = vadd.f32 %v307, %v522
        %v524 = vpop.f32.mrf.mxu0
        %v525 = vadd.f32 %v307, %v524
        %526 = vmatmul.bf16.gmra.mxu0 %v399
        %v527 = vpop.f32.mrf.mxu0
        %v528 = vadd.f32 %v307, %v527
        %v529 = vpop.f32.mrf.mxu0
        %v530 = vadd.f32 %v307, %v529
        %531 = vmatmul.bf16.gmra.mxu0 %v402
        %v532 = vpop.f32.mrf.mxu0
        %v533 = vadd.f32 %v307, %v532
        %v534 = vpop.f32.mrf.mxu0
        %v535 = vadd.f32 %v307, %v534
        %536 = vmatmul.bf16.gmra.mxu0 %v405
        %v537 = vpop.f32.mrf.mxu0
        %v538 = vadd.f32 %v307, %v537
        %v539 = vpop.f32.mrf.mxu0
        %v540 = vadd.f32 %v307, %v539
        %541 = vmatmul.bf16.gmra.mxu0 %v408
        %v542 = vpop.f32.mrf.mxu0
        %v543 = vadd.f32 %v307, %v542
        %v544 = vpop.f32.mrf.mxu0
        %v545 = vadd.f32 %v307, %v544
        %546 = vmatmul.bf16.gmra.mxu0 %v411
        %v547 = vpop.f32.mrf.mxu0
        %v548 = vadd.f32 %v307, %v547
        %v549 = vpop.f32.mrf.mxu0
        %v550 = vadd.f32 %v307, %v549
        %551 = vmatmul.bf16.gmra.mxu0 %v414
        %v552 = vpop.f32.mrf.mxu0
        %v553 = vadd.f32 %v307, %v552
        %v554 = vpop.f32.mrf.mxu0
        %v555 = vadd.f32 %v307, %v554
        %556 = vmatmul.bf16.gmra.mxu0 %v417
        %v557 = vpop.f32.mrf.mxu0
        %v558 = vadd.f32 %v307, %v557
        %v559 = vpop.f32.mrf.mxu0
        %v560 = vadd.f32 %v307, %v559
        %561 = vmatmul.bf16.gmra.mxu0 %v420
        %v562 = vpop.f32.mrf.mxu0
        %v563 = vadd.f32 %v307, %v562
        %v564 = vpop.f32.mrf.mxu0
        %v565 = vadd.f32 %v307, %v564
        %566 = vdwg.mxu0
        %v567 = vmax.f32 %v439, 0.0
        %v568 = vmax.f32 %v508, 0.0
        %v569 = vmax.f32 %v441, 0.0
        %v570 = vmax.f32 %v510, 0.0
        %v571 = vmax.f32 %v444, 0.0
        %v572 = vmax.f32 %v513, 0.0
        %v573 = vmax.f32 %v446, 0.0
        %v574 = vmax.f32 %v515, 0.0
        %v575 = vmax.f32 %v449, 0.0
        %v576 = vmax.f32 %v518, 0.0
        %v577 = vmax.f32 %v451, 0.0
        %v578 = vmax.f32 %v520, 0.0
        %v579 = vmax.f32 %v454, 0.0
        %v580 = vmax.f32 %v523, 0.0
        %v581 = vmax.f32 %v456, 0.0
        %v582 = vmax.f32 %v525, 0.0
        %v583 = vmax.f32 %v459, 0.0
        %v584 = vmax.f32 %v528, 0.0
        %v585 = vmax.f32 %v461, 0.0
        %v586 = vmax.f32 %v530, 0.0
        %v587 = vmax.f32 %v464, 0.0
        %v588 = vmax.f32 %v533, 0.0
        %v589 = vmax.f32 %v466, 0.0
        %v590 = vmax.f32 %v535, 0.0
        %v591 = vmax.f32 %v469, 0.0
        %v592 = vmax.f32 %v538, 0.0
        %v593 = vmax.f32 %v471, 0.0
        %v594 = vmax.f32 %v540, 0.0
        %v595 = vmax.f32 %v474, 0.0
        %v596 = vmax.f32 %v543, 0.0
        %v597 = vmax.f32 %v476, 0.0
        %v598 = vmax.f32 %v545, 0.0
        %v599 = vmax.f32 %v479, 0.0
        %v600 = vmax.f32 %v548, 0.0
        %v601 = vmax.f32 %v481, 0.0
        %v602 = vmax.f32 %v550, 0.0
        %v603 = vmax.f32 %v484, 0.0
        %v604 = vmax.f32 %v553, 0.0
        %v605 = vmax.f32 %v486, 0.0
        %v606 = vmax.f32 %v555, 0.0
        %v607 = vmax.f32 %v489, 0.0
        %v608 = vmax.f32 %v558, 0.0
        %v609 = vmax.f32 %v491, 0.0
        %v610 = vmax.f32 %v560, 0.0
        %v611 = vmax.f32 %v494, 0.0
        %v612 = vmax.f32 %v563, 0.0
        %v613 = vmax.f32 %v496, 0.0
        %v614 = vmax.f32 %v565, 0.0
        %v615 = vpack.c.bf16 %v569, %v567
        %v616 = vpack.c.bf16 %v570, %v568
        %v617 = vpack.c.bf16 %v573, %v571
        %v618 = vpack.c.bf16 %v574, %v572
        %v619 = vpack.c.bf16 %v577, %v575
        %v620 = vpack.c.bf16 %v578, %v576
        %v621 = vpack.c.bf16 %v581, %v579
        %v622 = vpack.c.bf16 %v582, %v580
        %v623 = vpack.c.bf16 %v585, %v583
        %v624 = vpack.c.bf16 %v586, %v584
        %v625 = vpack.c.bf16 %v589, %v587
        %v626 = vpack.c.bf16 %v590, %v588
        %v627 = vpack.c.bf16 %v593, %v591
        %v628 = vpack.c.bf16 %v594, %v592
        %v629 = vpack.c.bf16 %v597, %v595
        %v630 = vpack.c.bf16 %v598, %v596
        %v631 = vpack.c.bf16 %v601, %v599
        %v632 = vpack.c.bf16 %v602, %v600
        %v633 = vpack.c.bf16 %v605, %v603
        %v634 = vpack.c.bf16 %v606, %v604
        %v635 = vpack.c.bf16 %v609, %v607
        %v636 = vpack.c.bf16 %v610, %v608
        %v637 = vpack.c.bf16 %v613, %v611
        %v638 = vpack.c.bf16 %v614, %v612
        %v639 = vld [vmem:[%s3] sm:$0xff]
        %v640 = vld [vmem:[%s3 + $0x8] sm:$0xff]
        %v641 = vld [vmem:[%s3 + $0x10] sm:$0xff]
        %v642 = vld [vmem:[%s3 + $0x18] sm:$0xf]
        %v643 = vld [vmem:[%s3 + $0x1c] sm:$0xff]
        %v644 = vld [vmem:[%s3 + $0x24] sm:$0xff]
        %v645 = vld [vmem:[%s3 + $0x2c] sm:$0xff]
        %v646 = vld [vmem:[%s3 + $0x34] sm:$0xf]
        %v647 = vld [vmem:[%s3 + $0x38] sm:$0xff]
        %v648 = vld [vmem:[%s3 + $0x40] sm:$0xff]
        %v649 = vld [vmem:[%s3 + $0x48] sm:$0xff]
        %v650 = vld [vmem:[%s3 + $0x50] sm:$0xf]
        %v651 = vld [vmem:[%s3 + $0x54] sm:$0xff]
        %v652 = vld [vmem:[%s3 + $0x5c] sm:$0xff]
        %v653 = vld [vmem:[%s3 + $0x64] sm:$0xff]
        %v654 = vld [vmem:[%s3 + $0x6c] sm:$0xf]
        %v655 = vld [vmem:[%s3 + $0x70] sm:$0xff]
        %v656 = vld [vmem:[%s3 + $0x78] sm:$0xff]
        %v657 = vld [vmem:[%s3 + $0x80] sm:$0xff]
        %v658 = vld [vmem:[%s3 + $0x88] sm:$0xf]
        %v659 = vld [vmem:[%s3 + $0x8c] sm:$0xff]
        %v660 = vld [vmem:[%s3 + $0x94] sm:$0xff]
        %v661 = vld [vmem:[%s3 + $0x9c] sm:$0xff]
        %v662 = vld [vmem:[%s3 + $0xa4] sm:$0xf]
        %v663 = vld [vmem:[%s3 + $0xa8] sm:$0xff]
        %v664 = vld [vmem:[%s3 + $0xb0] sm:$0xff]
        %v665 = vld [vmem:[%s3 + $0xb8] sm:$0xff]
        %v666 = vld [vmem:[%s3 + $0xc0] sm:$0xf]
        %v667 = vld [vmem:[%s3 + $0xc4] sm:$0xff]
        %v668 = vld [vmem:[%s3 + $0xcc] sm:$0xff]
        %v669 = vld [vmem:[%s3 + $0xd4] sm:$0xff]
        %v670 = vld [vmem:[%s3 + $0xdc] sm:$0xf]
        %v671 = vld [vmem:[%s3 + $0xe0] sm:$0xff]
        %v672 = vld [vmem:[%s3 + $0xe8] sm:$0xff]
        %v673 = vld [vmem:[%s3 + $0xf0] sm:$0xff]
        %v674 = vld [vmem:[%s3 + $0xf8] sm:$0xf]
        %v675 = vld [vmem:[%s3 + $0xfc] sm:$0xff]
        %v676 = vld [vmem:[%s3 + $0x104] sm:$0xff]
        %v677 = vld [vmem:[%s3 + $0x10c] sm:$0xff]
        %v678 = vld [vmem:[%s3 + $0x114] sm:$0xf]
        %v679 = vld [vmem:[%s3 + $0x118] sm:$0xff]
        %v680 = vld [vmem:[%s3 + $0x120] sm:$0xff]
        %v681 = vld [vmem:[%s3 + $0x128] sm:$0xff]
        %v682 = vld [vmem:[%s3 + $0x130] sm:$0xf]
        %v683 = vld [vmem:[%s3 + $0x134] sm:$0xff]
        %v684 = vld [vmem:[%s3 + $0x13c] sm:$0xff]
        %v685 = vld [vmem:[%s3 + $0x144] sm:$0xff]
        %v686 = vld [vmem:[%s3 + $0x14c] sm:$0xf]
        %v687 = vld [vmem:[%s3 + $0x150] sm:$0xff]
        %v688 = vld [vmem:[%s3 + $0x158] sm:$0xff]
        %v689 = vld [vmem:[%s3 + $0x160] sm:$0xff]
        %v690 = vld [vmem:[%s3 + $0x168] sm:$0xf]
        %v691 = vld [vmem:[%s3 + $0x16c] sm:$0xff]
        %v692 = vld [vmem:[%s3 + $0x174] sm:$0xff]
        %v693 = vld [vmem:[%s3 + $0x17c] sm:$0xff]
        %v694 = vld [vmem:[%s3 + $0x184] sm:$0xf]
        %v695 = vld [vmem:[%s3 + $0x188] sm:$0xff]
        %v696 = vld [vmem:[%s3 + $0x190] sm:$0xff]
        %v697 = vld [vmem:[%s3 + $0x198] sm:$0xff]
        %v698 = vld [vmem:[%s3 + $0x1a0] sm:$0xf]
        %v699 = vld [vmem:[%s3 + $0x1a4] sm:$0xff]
        %v700 = vld [vmem:[%s3 + $0x1ac] sm:$0xff]
        %v701 = vld [vmem:[%s3 + $0x1b4] sm:$0xff]
        %v702 = vld [vmem:[%s3 + $0x1bc] sm:$0xf]
        %v703 = vld [vmem:[%s3 + $0x1c0] sm:$0xff]
        %v704 = vld [vmem:[%s3 + $0x1c8] sm:$0xff]
        %v705 = vld [vmem:[%s3 + $0x1d0] sm:$0xff]
        %v706 = vld [vmem:[%s3 + $0x1d8] sm:$0xf]
        %v707 = vld [vmem:[%s3 + $0x1dc] sm:$0xff]
        %v708 = vld [vmem:[%s3 + $0x1e4] sm:$0xff]
        %v709 = vld [vmem:[%s3 + $0x1ec] sm:$0xff]
        %v710 = vld [vmem:[%s3 + $0x1f4] sm:$0xf]
        %v711 = vld [vmem:[%s3 + $0x1f8] sm:$0xff]
        %v712 = vld [vmem:[%s3 + $0x200] sm:$0xff]
        %v713 = vld [vmem:[%s3 + $0x208] sm:$0xff]
        %v714 = vld [vmem:[%s3 + $0x210] sm:$0xf]
        %v715 = vld [vmem:[%s3 + $0x214] sm:$0xff]
        %v716 = vld [vmem:[%s3 + $0x21c] sm:$0xff]
        %v717 = vld [vmem:[%s3 + $0x224] sm:$0xff]
        %v718 = vld [vmem:[%s3 + $0x22c] sm:$0xf]
        %v719 = vld [vmem:[%s3 + $0x230] sm:$0xff]
        %v720 = vld [vmem:[%s3 + $0x238] sm:$0xff]
        %v721 = vld [vmem:[%s3 + $0x240] sm:$0xff]
        %v722 = vld [vmem:[%s3 + $0x248] sm:$0xf]
        %v723 = vld [vmem:[%s3 + $0x24c] sm:$0xff]
        %v724 = vld [vmem:[%s3 + $0x254] sm:$0xff]
        %v725 = vld [vmem:[%s3 + $0x25c] sm:$0xff]
        %v726 = vld [vmem:[%s3 + $0x264] sm:$0xf]
        %v727 = vld [vmem:[%s3 + $0x268] sm:$0xff]
        %v728 = vld [vmem:[%s3 + $0x270] sm:$0xff]
        %v729 = vld [vmem:[%s3 + $0x278] sm:$0xff]
        %v730 = vld [vmem:[%s3 + $0x280] sm:$0xf]
        %v731 = vld [vmem:[%s3 + $0x284] sm:$0xff]
        %v732 = vld [vmem:[%s3 + $0x28c] sm:$0xff]
        %v733 = vld [vmem:[%s3 + $0x294] sm:$0xff]
        %v734 = vld [vmem:[%s3 + $0x29c] sm:$0xf]
        %v735 = vld [vmem:[%s3 + $0x2a0] sm:$0xff]
        %v736 = vld [vmem:[%s3 + $0x2a8] sm:$0xff]
        %v737 = vld [vmem:[%s3 + $0x2b0] sm:$0xff]
        %v738 = vld [vmem:[%s3 + $0x2b8] sm:$0xf]
        %v739 = vld [vmem:[%s3 + $0x2bc] sm:$0xff]
        %v740 = vld [vmem:[%s3 + $0x2c4] sm:$0xff]
        %v741 = vld [vmem:[%s3 + $0x2cc] sm:$0xff]
        %v742 = vld [vmem:[%s3 + $0x2d4] sm:$0xf]
        %v743 = vld [vmem:[%s3 + $0x2d8] sm:$0xff]
        %v744 = vld [vmem:[%s3 + $0x2e0] sm:$0xff]
        %v745 = vld [vmem:[%s3 + $0x2e8] sm:$0xff]
        %v746 = vld [vmem:[%s3 + $0x2f0] sm:$0xf]
        %v747 = vld [vmem:[%s3 + $0x2f4] sm:$0xff]
        %v748 = vld [vmem:[%s3 + $0x2fc] sm:$0xff]
        %v749 = vld [vmem:[%s3 + $0x304] sm:$0xff]
        %v750 = vld [vmem:[%s3 + $0x30c] sm:$0xf]
        %v751 = vld [vmem:[%s3 + $0x310] sm:$0xff]
        %v752 = vld [vmem:[%s3 + $0x318] sm:$0xff]
        %v753 = vld [vmem:[%s3 + $0x320] sm:$0xff]
        %v754 = vld [vmem:[%s3 + $0x328] sm:$0xf]
        %v755 = vld [vmem:[%s3 + $0x32c] sm:$0xff]
        %v756 = vld [vmem:[%s3 + $0x334] sm:$0xff]
        %v757 = vld [vmem:[%s3 + $0x33c] sm:$0xff]
        %v758 = vld [vmem:[%s3 + $0x344] sm:$0xf]
        %v759 = vld [vmem:[%s3 + $0x348] sm:$0xff]
        %v760 = vld [vmem:[%s3 + $0x350] sm:$0xff]
        %v761 = vld [vmem:[%s3 + $0x358] sm:$0xff]
        %v762 = vld [vmem:[%s3 + $0x360] sm:$0xf]
        %v763 = vld [vmem:[%s3 + $0x364] sm:$0xff]
        %v764 = vld [vmem:[%s3 + $0x36c] sm:$0xff]
        %v765 = vld [vmem:[%s3 + $0x374] sm:$0xff]
        %v766 = vld [vmem:[%s3 + $0x37c] sm:$0xf]
        %v767 = vld [vmem:[#allocation6] sm:$0x7f]
        %v769 = vperm.slane %v767, 0
        %v770 = vperm.slane %v767, 1
        %v771 = vperm.slane %v767, 2
        %v772 = vperm.slane %v767, 3
        %v773 = vperm.slane %v767, 4
        %v774 = vperm.slane %v767, 5
        %v775 = vperm.slane %v767, 6
        %v911 = vunpack.c.l.b16 %v639
        %v912 = vunpack.c.h.b16 %v639
        %v913 = vunpack.c.l.b16 %v640
        %v914 = vunpack.c.h.b16 %v640
        %v915 = vunpack.c.l.b16 %v641
        %v916 = vunpack.c.h.b16 %v641
        %v917 = vunpack.c.l.b16 %v642
        %v918 = vunpack.c.l.b16 %v643
        %v919 = vunpack.c.h.b16 %v643
        %v920 = vunpack.c.l.b16 %v644
        %v921 = vunpack.c.h.b16 %v644
        %v922 = vunpack.c.l.b16 %v645
        %v923 = vunpack.c.h.b16 %v645
        %v924 = vunpack.c.l.b16 %v646
        %v925 = vunpack.c.l.b16 %v647
        %v926 = vunpack.c.h.b16 %v647
        %v927 = vunpack.c.l.b16 %v648
        %v928 = vunpack.c.h.b16 %v648
        %v929 = vunpack.c.l.b16 %v649
        %v930 = vunpack.c.h.b16 %v649
        %v931 = vunpack.c.l.b16 %v650
        %v932 = vunpack.c.l.b16 %v651
        %v933 = vunpack.c.h.b16 %v651
        %v934 = vunpack.c.l.b16 %v652
        %v935 = vunpack.c.h.b16 %v652
        %v936 = vunpack.c.l.b16 %v653
        %v937 = vunpack.c.h.b16 %v653
        %v938 = vunpack.c.l.b16 %v654
        %v939 = vunpack.c.l.b16 %v655
        %v940 = vunpack.c.h.b16 %v655
        %v941 = vunpack.c.l.b16 %v656
        %v942 = vunpack.c.h.b16 %v656
        %v943 = vunpack.c.l.b16 %v657
        %v944 = vunpack.c.h.b16 %v657
        %v945 = vunpack.c.l.b16 %v658
        %v946 = vunpack.c.l.b16 %v659
        %v947 = vunpack.c.h.b16 %v659
        %v948 = vunpack.c.l.b16 %v660
        %v949 = vunpack.c.h.b16 %v660
        %v950 = vunpack.c.l.b16 %v661
        %v951 = vunpack.c.h.b16 %v661
        %v952 = vunpack.c.l.b16 %v662
        %v953 = vunpack.c.l.b16 %v663
        %v954 = vunpack.c.h.b16 %v663
        %v955 = vunpack.c.l.b16 %v664
        %v956 = vunpack.c.h.b16 %v664
        %v957 = vunpack.c.l.b16 %v665
        %v958 = vunpack.c.h.b16 %v665
        %v959 = vunpack.c.l.b16 %v666
        %v960 = vunpack.c.l.b16 %v667
        %v961 = vunpack.c.h.b16 %v667
        %v962 = vunpack.c.l.b16 %v668
        %v963 = vunpack.c.h.b16 %v668
        %v964 = vunpack.c.l.b16 %v669
        %v965 = vunpack.c.h.b16 %v669
        %v966 = vunpack.c.l.b16 %v670
        %v967 = vunpack.c.l.b16 %v671
        %v968 = vunpack.c.h.b16 %v671
        %v969 = vunpack.c.l.b16 %v672
        %v970 = vunpack.c.h.b16 %v672
        %v971 = vunpack.c.l.b16 %v673
        %v972 = vunpack.c.h.b16 %v673
        %v973 = vunpack.c.l.b16 %v674
        %v974 = vunpack.c.l.b16 %v675
        %v975 = vunpack.c.h.b16 %v675
        %v976 = vunpack.c.l.b16 %v676
        %v977 = vunpack.c.h.b16 %v676
        %v978 = vunpack.c.l.b16 %v677
        %v979 = vunpack.c.h.b16 %v677
        %v980 = vunpack.c.l.b16 %v678
        %v981 = vunpack.c.l.b16 %v679
        %v982 = vunpack.c.h.b16 %v679
        %v983 = vunpack.c.l.b16 %v680
        %v984 = vunpack.c.h.b16 %v680
        %v985 = vunpack.c.l.b16 %v681
        %v986 = vunpack.c.h.b16 %v681
        %v987 = vunpack.c.l.b16 %v682
        %v988 = vunpack.c.l.b16 %v683
        %v989 = vunpack.c.h.b16 %v683
        %v990 = vunpack.c.l.b16 %v684
        %v991 = vunpack.c.h.b16 %v684
        %v992 = vunpack.c.l.b16 %v685
        %v993 = vunpack.c.h.b16 %v685
        %v994 = vunpack.c.l.b16 %v686
        %v995 = vunpack.c.l.b16 %v687
        %v996 = vunpack.c.h.b16 %v687
        %v997 = vunpack.c.l.b16 %v688
        %v998 = vunpack.c.h.b16 %v688
        %v999 = vunpack.c.l.b16 %v689
        %v1000 = vunpack.c.h.b16 %v689
        %v1001 = vunpack.c.l.b16 %v690
        %v1002 = vunpack.c.l.b16 %v691
        %v1003 = vunpack.c.h.b16 %v691
        %v1004 = vunpack.c.l.b16 %v692
        %v1005 = vunpack.c.h.b16 %v692
        %v1006 = vunpack.c.l.b16 %v693
        %v1007 = vunpack.c.h.b16 %v693
        %v1008 = vunpack.c.l.b16 %v694
        %v1009 = vunpack.c.l.b16 %v695
        %v1010 = vunpack.c.h.b16 %v695
        %v1011 = vunpack.c.l.b16 %v696
        %v1012 = vunpack.c.h.b16 %v696
        %v1013 = vunpack.c.l.b16 %v697
        %v1014 = vunpack.c.h.b16 %v697
        %v1015 = vunpack.c.l.b16 %v698
        %v1016 = vunpack.c.l.b16 %v699
        %v1017 = vunpack.c.h.b16 %v699
        %v1018 = vunpack.c.l.b16 %v700
        %v1019 = vunpack.c.h.b16 %v700
        %v1020 = vunpack.c.l.b16 %v701
        %v1021 = vunpack.c.h.b16 %v701
        %v1022 = vunpack.c.l.b16 %v702
        %v1023 = vunpack.c.l.b16 %v703
        %v1024 = vunpack.c.h.b16 %v703
        %v1025 = vunpack.c.l.b16 %v704
        %v1026 = vunpack.c.h.b16 %v704
        %v1027 = vunpack.c.l.b16 %v705
        %v1028 = vunpack.c.h.b16 %v705
        %v1029 = vunpack.c.l.b16 %v706
        %v1030 = vunpack.c.l.b16 %v707
        %v1031 = vunpack.c.h.b16 %v707
        %v1032 = vunpack.c.l.b16 %v708
        %v1033 = vunpack.c.h.b16 %v708
        %v1034 = vunpack.c.l.b16 %v709
        %v1035 = vunpack.c.h.b16 %v709
        %v1036 = vunpack.c.l.b16 %v710
        %v1037 = vunpack.c.l.b16 %v711
        %v1038 = vunpack.c.h.b16 %v711
        %v1039 = vunpack.c.l.b16 %v712
        %v1040 = vunpack.c.h.b16 %v712
        %v1041 = vunpack.c.l.b16 %v713
        %v1042 = vunpack.c.h.b16 %v713
        %v1043 = vunpack.c.l.b16 %v714
        %v1044 = vunpack.c.l.b16 %v715
        %v1045 = vunpack.c.h.b16 %v715
        %v1046 = vunpack.c.l.b16 %v716
        %v1047 = vunpack.c.h.b16 %v716
        %v1048 = vunpack.c.l.b16 %v717
        %v1049 = vunpack.c.h.b16 %v717
        %v1050 = vunpack.c.l.b16 %v718
        %v1051 = vunpack.c.l.b16 %v719
        %v1052 = vunpack.c.h.b16 %v719
        %v1053 = vunpack.c.l.b16 %v720
        %v1054 = vunpack.c.h.b16 %v720
        %v1055 = vunpack.c.l.b16 %v721
        %v1056 = vunpack.c.h.b16 %v721
        %v1057 = vunpack.c.l.b16 %v722
        %v1058 = vunpack.c.l.b16 %v723
        %v1059 = vunpack.c.h.b16 %v723
        %v1060 = vunpack.c.l.b16 %v724
        %v1061 = vunpack.c.h.b16 %v724
        %v1062 = vunpack.c.l.b16 %v725
        %v1063 = vunpack.c.h.b16 %v725
        %v1064 = vunpack.c.l.b16 %v726
        %v1065 = vunpack.c.l.b16 %v727
        %v1066 = vunpack.c.h.b16 %v727
        %v1067 = vunpack.c.l.b16 %v728
        %v1068 = vunpack.c.h.b16 %v728
        %v1069 = vunpack.c.l.b16 %v729
        %v1070 = vunpack.c.h.b16 %v729
        %v1071 = vunpack.c.l.b16 %v730
        %v1072 = vunpack.c.l.b16 %v731
        %v1073 = vunpack.c.h.b16 %v731
        %v1074 = vunpack.c.l.b16 %v732
        %v1075 = vunpack.c.h.b16 %v732
        %v1076 = vunpack.c.l.b16 %v733
        %v1077 = vunpack.c.h.b16 %v733
        %v1078 = vunpack.c.l.b16 %v734
        %v1079 = vunpack.c.l.b16 %v735
        %v1080 = vunpack.c.h.b16 %v735
        %v1081 = vunpack.c.l.b16 %v736
        %v1082 = vunpack.c.h.b16 %v736
        %v1083 = vunpack.c.l.b16 %v737
        %v1084 = vunpack.c.h.b16 %v737
        %v1085 = vunpack.c.l.b16 %v738
        %v1086 = vunpack.c.l.b16 %v739
        %v1087 = vunpack.c.h.b16 %v739
        %v1088 = vunpack.c.l.b16 %v740
        %v1089 = vunpack.c.h.b16 %v740
        %v1090 = vunpack.c.l.b16 %v741
        %v1091 = vunpack.c.h.b16 %v741
        %v1092 = vunpack.c.l.b16 %v742
        %v1093 = vunpack.c.l.b16 %v743
        %v1094 = vunpack.c.h.b16 %v743
        %v1095 = vunpack.c.l.b16 %v744
        %v1096 = vunpack.c.h.b16 %v744
        %v1097 = vunpack.c.l.b16 %v745
        %v1098 = vunpack.c.h.b16 %v745
        %v1099 = vunpack.c.l.b16 %v746
        %v1100 = vunpack.c.l.b16 %v747
        %v1101 = vunpack.c.h.b16 %v747
        %v1102 = vunpack.c.l.b16 %v748
        %v1103 = vunpack.c.h.b16 %v748
        %v1104 = vunpack.c.l.b16 %v749
        %v1105 = vunpack.c.h.b16 %v749
        %v1106 = vunpack.c.l.b16 %v750
        %v1107 = vunpack.c.l.b16 %v751
        %v1108 = vunpack.c.h.b16 %v751
        %v1109 = vunpack.c.l.b16 %v752
        %v1110 = vunpack.c.h.b16 %v752
        %v1111 = vunpack.c.l.b16 %v753
        %v1112 = vunpack.c.h.b16 %v753
        %v1113 = vunpack.c.l.b16 %v754
        %v1114 = vunpack.c.l.b16 %v755
        %v1115 = vunpack.c.h.b16 %v755
        %v1116 = vunpack.c.l.b16 %v756
        %v1117 = vunpack.c.h.b16 %v756
        %v1118 = vunpack.c.l.b16 %v757
        %v1119 = vunpack.c.h.b16 %v757
        %v1120 = vunpack.c.l.b16 %v758
        %v1121 = vunpack.c.l.b16 %v759
        %v1122 = vunpack.c.h.b16 %v759
        %v1123 = vunpack.c.l.b16 %v760
        %v1124 = vunpack.c.h.b16 %v760
        %v1125 = vunpack.c.l.b16 %v761
        %v1126 = vunpack.c.h.b16 %v761
        %v1127 = vunpack.c.l.b16 %v762
        %v1128 = vunpack.c.l.b16 %v763
        %v1129 = vunpack.c.h.b16 %v763
        %v1130 = vunpack.c.l.b16 %v764
        %v1131 = vunpack.c.h.b16 %v764
        %v1132 = vunpack.c.l.b16 %v765
        %v1133 = vunpack.c.h.b16 %v765
        %v1134 = vunpack.c.l.b16 %v766
        %v1135 = vpack.c.b16 %v918, %v911
        %v1136 = vpack.c.b16 %v919, %v912
        %v1137 = vpack.c.b16 %v920, %v913
        %v1138 = vpack.c.b16 %v921, %v914
        %v1139 = vpack.c.b16 %v922, %v915
        %v1140 = vpack.c.b16 %v923, %v916
        %v1141 = vpack.c.b16 %v924, %v917
        %v1142 = vpack.c.b16 %v932, %v925
        %v1143 = vpack.c.b16 %v933, %v926
        %v1144 = vpack.c.b16 %v934, %v927
        %v1145 = vpack.c.b16 %v935, %v928
        %v1146 = vpack.c.b16 %v936, %v929
        %v1147 = vpack.c.b16 %v937, %v930
        %v1148 = vpack.c.b16 %v938, %v931
        %v1149 = vpack.c.b16 %v946, %v939
        %v1150 = vpack.c.b16 %v947, %v940
        %v1151 = vpack.c.b16 %v948, %v941
        %v1152 = vpack.c.b16 %v949, %v942
        %v1153 = vpack.c.b16 %v950, %v943
        %v1154 = vpack.c.b16 %v951, %v944
        %v1155 = vpack.c.b16 %v952, %v945
        %v1156 = vpack.c.b16 %v960, %v953
        %v1157 = vpack.c.b16 %v961, %v954
        %v1158 = vpack.c.b16 %v962, %v955
        %v1159 = vpack.c.b16 %v963, %v956
        %v1160 = vpack.c.b16 %v964, %v957
        %v1161 = vpack.c.b16 %v965, %v958
        %v1162 = vpack.c.b16 %v966, %v959
        %v1163 = vpack.c.b16 %v974, %v967
        %v1164 = vpack.c.b16 %v975, %v968
        %v1165 = vpack.c.b16 %v976, %v969
        %v1166 = vpack.c.b16 %v977, %v970
        %v1167 = vpack.c.b16 %v978, %v971
        %v1168 = vpack.c.b16 %v979, %v972
        %v1169 = vpack.c.b16 %v980, %v973
        %v1170 = vpack.c.b16 %v988, %v981
        %v1171 = vpack.c.b16 %v989, %v982
        %v1172 = vpack.c.b16 %v990, %v983
        %v1173 = vpack.c.b16 %v991, %v984
        %v1174 = vpack.c.b16 %v992, %v985
        %v1175 = vpack.c.b16 %v993, %v986
        %v1176 = vpack.c.b16 %v994, %v987
        %v1177 = vpack.c.b16 %v1002, %v995
        %v1178 = vpack.c.b16 %v1003, %v996
        %v1179 = vpack.c.b16 %v1004, %v997
        %v1180 = vpack.c.b16 %v1005, %v998
        %v1181 = vpack.c.b16 %v1006, %v999
        %v1182 = vpack.c.b16 %v1007, %v1000
        %v1183 = vpack.c.b16 %v1008, %v1001
        %v1184 = vpack.c.b16 %v1016, %v1009
        %v1185 = vpack.c.b16 %v1017, %v1010
        %v1186 = vpack.c.b16 %v1018, %v1011
        %v1187 = vpack.c.b16 %v1019, %v1012
        %v1188 = vpack.c.b16 %v1020, %v1013
        %v1189 = vpack.c.b16 %v1021, %v1014
        %v1190 = vpack.c.b16 %v1022, %v1015
        %v1191 = vpack.c.b16 %v1030, %v1023
        %v1192 = vpack.c.b16 %v1031, %v1024
        %v1193 = vpack.c.b16 %v1032, %v1025
        %v1194 = vpack.c.b16 %v1033, %v1026
        %v1195 = vpack.c.b16 %v1034, %v1027
        %v1196 = vpack.c.b16 %v1035, %v1028
        %v1197 = vpack.c.b16 %v1036, %v1029
        %v1198 = vpack.c.b16 %v1044, %v1037
        %v1199 = vpack.c.b16 %v1045, %v1038
        %v1200 = vpack.c.b16 %v1046, %v1039
        %v1201 = vpack.c.b16 %v1047, %v1040
        %v1202 = vpack.c.b16 %v1048, %v1041
        %v1203 = vpack.c.b16 %v1049, %v1042
        %v1204 = vpack.c.b16 %v1050, %v1043
        %v1205 = vpack.c.b16 %v1058, %v1051
        %v1206 = vpack.c.b16 %v1059, %v1052
        %v1207 = vpack.c.b16 %v1060, %v1053
        %v1208 = vpack.c.b16 %v1061, %v1054
        %v1209 = vpack.c.b16 %v1062, %v1055
        %v1210 = vpack.c.b16 %v1063, %v1056
        %v1211 = vpack.c.b16 %v1064, %v1057
        %v1212 = vpack.c.b16 %v1072, %v1065
        %v1213 = vpack.c.b16 %v1073, %v1066
        %v1214 = vpack.c.b16 %v1074, %v1067
        %v1215 = vpack.c.b16 %v1075, %v1068
        %v1216 = vpack.c.b16 %v1076, %v1069
        %v1217 = vpack.c.b16 %v1077, %v1070
        %v1218 = vpack.c.b16 %v1078, %v1071
        %v1219 = vpack.c.b16 %v1086, %v1079
        %v1220 = vpack.c.b16 %v1087, %v1080
        %v1221 = vpack.c.b16 %v1088, %v1081
        %v1222 = vpack.c.b16 %v1089, %v1082
        %v1223 = vpack.c.b16 %v1090, %v1083
        %v1224 = vpack.c.b16 %v1091, %v1084
        %v1225 = vpack.c.b16 %v1092, %v1085
        %v1226 = vpack.c.b16 %v1100, %v1093
        %v1227 = vpack.c.b16 %v1101, %v1094
        %v1228 = vpack.c.b16 %v1102, %v1095
        %v1229 = vpack.c.b16 %v1103, %v1096
        %v1230 = vpack.c.b16 %v1104, %v1097
        %v1231 = vpack.c.b16 %v1105, %v1098
        %v1232 = vpack.c.b16 %v1106, %v1099
        %v1233 = vpack.c.b16 %v1114, %v1107
        %v1234 = vpack.c.b16 %v1115, %v1108
        %v1235 = vpack.c.b16 %v1116, %v1109
        %v1236 = vpack.c.b16 %v1117, %v1110
        %v1237 = vpack.c.b16 %v1118, %v1111
        %v1238 = vpack.c.b16 %v1119, %v1112
        %v1239 = vpack.c.b16 %v1120, %v1113
        %v1240 = vpack.c.b16 %v1128, %v1121
        %v1241 = vpack.c.b16 %v1129, %v1122
        %v1242 = vpack.c.b16 %v1130, %v1123
        %v1243 = vpack.c.b16 %v1131, %v1124
        %v1244 = vpack.c.b16 %v1132, %v1125
        %v1245 = vpack.c.b16 %v1133, %v1126
        %v1246 = vpack.c.b16 %v1134, %v1127
        %1359 = vmatpush.bf16.msra.mxu0 %v1184
        %1360 = vmatpush.bf16.msra.mxu0 %v1177
        %1361 = vmatpush.bf16.msra.mxu0 %v1170
        %1362 = vmatpush.bf16.msra.mxu0 %v1163
        %1363 = vmatpush.bf16.msra.mxu0 %v1156
        %1364 = vmatpush.bf16.msra.mxu0 %v1149
        %1365 = vmatpush.bf16.msra.mxu0 %v1142
        %1366 = vmatpush.bf16.msra.mxu0 %v1135
        %1367 = vmatmul.bf16.gmra.mxu0 %v615
        %v1368 = vpop.f32.mrf.mxu0
        %v1369 = vadd.f32 %v769, %v1368
        %v1370 = vpop.f32.mrf.mxu0
        %v1371 = vadd.f32 %v769, %v1370
        %1372 = vmatmul.bf16.gmra.mxu0 %v617
        %v1373 = vpop.f32.mrf.mxu0
        %v1374 = vadd.f32 %v769, %v1373
        %v1375 = vpop.f32.mrf.mxu0
        %v1376 = vadd.f32 %v769, %v1375
        %1377 = vmatmul.bf16.gmra.mxu0 %v619
        %v1378 = vpop.f32.mrf.mxu0
        %v1379 = vadd.f32 %v769, %v1378
        %v1380 = vpop.f32.mrf.mxu0
        %v1381 = vadd.f32 %v769, %v1380
        %1382 = vmatmul.bf16.gmra.mxu0 %v621
        %v1383 = vpop.f32.mrf.mxu0
        %v1384 = vadd.f32 %v769, %v1383
        %v1385 = vpop.f32.mrf.mxu0
        %v1386 = vadd.f32 %v769, %v1385
        %1387 = vmatmul.bf16.gmra.mxu0 %v623
        %v1388 = vpop.f32.mrf.mxu0
        %v1389 = vadd.f32 %v769, %v1388
        %v1390 = vpop.f32.mrf.mxu0
        %v1391 = vadd.f32 %v769, %v1390
        %1392 = vmatmul.bf16.gmra.mxu0 %v625
        %v1393 = vpop.f32.mrf.mxu0
        %v1394 = vadd.f32 %v769, %v1393
        %v1395 = vpop.f32.mrf.mxu0
        %v1396 = vadd.f32 %v769, %v1395
        %1397 = vmatmul.bf16.gmra.mxu0 %v627
        %v1398 = vpop.f32.mrf.mxu0
        %v1399 = vadd.f32 %v769, %v1398
        %v1400 = vpop.f32.mrf.mxu0
        %v1401 = vadd.f32 %v769, %v1400
        %1402 = vmatmul.bf16.gmra.mxu0 %v629
        %v1403 = vpop.f32.mrf.mxu0
        %v1404 = vadd.f32 %v769, %v1403
        %v1405 = vpop.f32.mrf.mxu0
        %v1406 = vadd.f32 %v769, %v1405
        %1407 = vmatmul.bf16.gmra.mxu0 %v631
        %v1408 = vpop.f32.mrf.mxu0
        %v1409 = vadd.f32 %v769, %v1408
        %v1410 = vpop.f32.mrf.mxu0
        %v1411 = vadd.f32 %v769, %v1410
        %1412 = vmatmul.bf16.gmra.mxu0 %v633
        %v1413 = vpop.f32.mrf.mxu0
        %v1414 = vadd.f32 %v769, %v1413
        %v1415 = vpop.f32.mrf.mxu0
        %v1416 = vadd.f32 %v769, %v1415
        %1417 = vmatmul.bf16.gmra.mxu0 %v635
        %v1418 = vpop.f32.mrf.mxu0
        %v1419 = vadd.f32 %v769, %v1418
        %v1420 = vpop.f32.mrf.mxu0
        %v1421 = vadd.f32 %v769, %v1420
        %1422 = vmatmul.bf16.gmra.mxu0 %v637
        %v1423 = vpop.f32.mrf.mxu0
        %v1424 = vadd.f32 %v769, %v1423
        %v1425 = vpop.f32.mrf.mxu0
        %v1426 = vadd.f32 %v769, %v1425
        %1427 = vdwg.mxu0
        %1428 = vmatpush.bf16.msra.mxu0 %v1240
        %1429 = vmatpush.bf16.msra.mxu0 %v1233
        %1430 = vmatpush.bf16.msra.mxu0 %v1226
        %1431 = vmatpush.bf16.msra.mxu0 %v1219
        %1432 = vmatpush.bf16.msra.mxu0 %v1212
        %1433 = vmatpush.bf16.msra.mxu0 %v1205
        %1434 = vmatpush.bf16.msra.mxu0 %v1198
        %1435 = vmatpush.bf16.msra.mxu0 %v1191
        %1436 = vmatmul.bf16.gmra.mxu0 %v616
        %v1437 = vpop.f32.mrf.mxu0
        %v1438 = vadd.f32 %v1369, %v1437
        %v1439 = vpop.f32.mrf.mxu0
        %v1440 = vadd.f32 %v1371, %v1439
        %1441 = vmatmul.bf16.gmra.mxu0 %v618
        %v1442 = vpop.f32.mrf.mxu0
        %v1443 = vadd.f32 %v1374, %v1442
        %v1444 = vpop.f32.mrf.mxu0
        %v1445 = vadd.f32 %v1376, %v1444
        %1446 = vmatmul.bf16.gmra.mxu0 %v620
        %v1447 = vpop.f32.mrf.mxu0
        %v1448 = vadd.f32 %v1379, %v1447
        %v1449 = vpop.f32.mrf.mxu0
        %v1450 = vadd.f32 %v1381, %v1449
        %1451 = vmatmul.bf16.gmra.mxu0 %v622
        %v1452 = vpop.f32.mrf.mxu0
        %v1453 = vadd.f32 %v1384, %v1452
        %v1454 = vpop.f32.mrf.mxu0
        %v1455 = vadd.f32 %v1386, %v1454
        %1456 = vmatmul.bf16.gmra.mxu0 %v624
        %v1457 = vpop.f32.mrf.mxu0
        %v1458 = vadd.f32 %v1389, %v1457
        %v1459 = vpop.f32.mrf.mxu0
        %v1460 = vadd.f32 %v1391, %v1459
        %1461 = vmatmul.bf16.gmra.mxu0 %v626
        %v1462 = vpop.f32.mrf.mxu0
        %v1463 = vadd.f32 %v1394, %v1462
        %v1464 = vpop.f32.mrf.mxu0
        %v1465 = vadd.f32 %v1396, %v1464
        %1466 = vmatmul.bf16.gmra.mxu0 %v628
        %v1467 = vpop.f32.mrf.mxu0
        %v1468 = vadd.f32 %v1399, %v1467
        %v1469 = vpop.f32.mrf.mxu0
        %v1470 = vadd.f32 %v1401, %v1469
        %1471 = vmatmul.bf16.gmra.mxu0 %v630
        %v1472 = vpop.f32.mrf.mxu0
        %v1473 = vadd.f32 %v1404, %v1472
        %v1474 = vpop.f32.mrf.mxu0
        %v1475 = vadd.f32 %v1406, %v1474
        %1476 = vmatmul.bf16.gmra.mxu0 %v632
        %v1477 = vpop.f32.mrf.mxu0
        %v1478 = vadd.f32 %v1409, %v1477
        %v1479 = vpop.f32.mrf.mxu0
        %v1480 = vadd.f32 %v1411, %v1479
        %1481 = vmatmul.bf16.gmra.mxu0 %v634
        %v1482 = vpop.f32.mrf.mxu0
        %v1483 = vadd.f32 %v1414, %v1482
        %v1484 = vpop.f32.mrf.mxu0
        %v1485 = vadd.f32 %v1416, %v1484
        %1486 = vmatmul.bf16.gmra.mxu0 %v636
        %v1487 = vpop.f32.mrf.mxu0
        %v1488 = vadd.f32 %v1419, %v1487
        %v1489 = vpop.f32.mrf.mxu0
        %v1490 = vadd.f32 %v1421, %v1489
        %1491 = vmatmul.bf16.gmra.mxu0 %v638
        %v1492 = vpop.f32.mrf.mxu0
        %v1493 = vadd.f32 %v1424, %v1492
        %v1494 = vpop.f32.mrf.mxu0
        %v1495 = vadd.f32 %v1426, %v1494
        %1496 = vdwg.mxu0
        %1497 = vmatpush.bf16.msra.mxu0 %v1185
        %1498 = vmatpush.bf16.msra.mxu0 %v1178
        %1499 = vmatpush.bf16.msra.mxu0 %v1171
        %1500 = vmatpush.bf16.msra.mxu0 %v1164
        %1501 = vmatpush.bf16.msra.mxu0 %v1157
        %1502 = vmatpush.bf16.msra.mxu0 %v1150
        %1503 = vmatpush.bf16.msra.mxu0 %v1143
        %1504 = vmatpush.bf16.msra.mxu0 %v1136
        %1505 = vmatmul.bf16.gmra.mxu0 %v615
        %v1506 = vpop.f32.mrf.mxu0
        %v1507 = vadd.f32 %v770, %v1506
        %v1508 = vpop.f32.mrf.mxu0
        %v1509 = vadd.f32 %v770, %v1508
        %1510 = vmatmul.bf16.gmra.mxu0 %v617
        %v1511 = vpop.f32.mrf.mxu0
        %v1512 = vadd.f32 %v770, %v1511
        %v1513 = vpop.f32.mrf.mxu0
        %v1514 = vadd.f32 %v770, %v1513
        %1515 = vmatmul.bf16.gmra.mxu0 %v619
        %v1516 = vpop.f32.mrf.mxu0
        %v1517 = vadd.f32 %v770, %v1516
        %v1518 = vpop.f32.mrf.mxu0
        %v1519 = vadd.f32 %v770, %v1518
        %1520 = vmatmul.bf16.gmra.mxu0 %v621
        %v1521 = vpop.f32.mrf.mxu0
        %v1522 = vadd.f32 %v770, %v1521
        %v1523 = vpop.f32.mrf.mxu0
        %v1524 = vadd.f32 %v770, %v1523
        %1525 = vmatmul.bf16.gmra.mxu0 %v623
        %v1526 = vpop.f32.mrf.mxu0
        %v1527 = vadd.f32 %v770, %v1526
        %v1528 = vpop.f32.mrf.mxu0
        %v1529 = vadd.f32 %v770, %v1528
        %1530 = vmatmul.bf16.gmra.mxu0 %v625
        %v1531 = vpop.f32.mrf.mxu0
        %v1532 = vadd.f32 %v770, %v1531
        %v1533 = vpop.f32.mrf.mxu0
        %v1534 = vadd.f32 %v770, %v1533
        %1535 = vmatmul.bf16.gmra.mxu0 %v627
        %v1536 = vpop.f32.mrf.mxu0
        %v1537 = vadd.f32 %v770, %v1536
        %v1538 = vpop.f32.mrf.mxu0
        %v1539 = vadd.f32 %v770, %v1538
        %1540 = vmatmul.bf16.gmra.mxu0 %v629
        %v1541 = vpop.f32.mrf.mxu0
        %v1542 = vadd.f32 %v770, %v1541
        %v1543 = vpop.f32.mrf.mxu0
        %v1544 = vadd.f32 %v770, %v1543
        %1545 = vmatmul.bf16.gmra.mxu0 %v631
        %v1546 = vpop.f32.mrf.mxu0
        %v1547 = vadd.f32 %v770, %v1546
        %v1548 = vpop.f32.mrf.mxu0
        %v1549 = vadd.f32 %v770, %v1548
        %1550 = vmatmul.bf16.gmra.mxu0 %v633
        %v1551 = vpop.f32.mrf.mxu0
        %v1552 = vadd.f32 %v770, %v1551
        %v1553 = vpop.f32.mrf.mxu0
        %v1554 = vadd.f32 %v770, %v1553
        %1555 = vmatmul.bf16.gmra.mxu0 %v635
        %v1556 = vpop.f32.mrf.mxu0
        %v1557 = vadd.f32 %v770, %v1556
        %v1558 = vpop.f32.mrf.mxu0
        %v1559 = vadd.f32 %v770, %v1558
        %1560 = vmatmul.bf16.gmra.mxu0 %v637
        %v1561 = vpop.f32.mrf.mxu0
        %v1562 = vadd.f32 %v770, %v1561
        %v1563 = vpop.f32.mrf.mxu0
        %v1564 = vadd.f32 %v770, %v1563
        %1565 = vdwg.mxu0
        %1566 = vmatpush.bf16.msra.mxu0 %v1241
        %1567 = vmatpush.bf16.msra.mxu0 %v1234
        %1568 = vmatpush.bf16.msra.mxu0 %v1227
        %1569 = vmatpush.bf16.msra.mxu0 %v1220
        %1570 = vmatpush.bf16.msra.mxu0 %v1213
        %1571 = vmatpush.bf16.msra.mxu0 %v1206
        %1572 = vmatpush.bf16.msra.mxu0 %v1199
        %1573 = vmatpush.bf16.msra.mxu0 %v1192
        %1574 = vmatmul.bf16.gmra.mxu0 %v616
        %v1575 = vpop.f32.mrf.mxu0
        %v1576 = vadd.f32 %v1507, %v1575
        %v1577 = vpop.f32.mrf.mxu0
        %v1578 = vadd.f32 %v1509, %v1577
        %1579 = vmatmul.bf16.gmra.mxu0 %v618
        %v1580 = vpop.f32.mrf.mxu0
        %v1581 = vadd.f32 %v1512, %v1580
        %v1582 = vpop.f32.mrf.mxu0
        %v1583 = vadd.f32 %v1514, %v1582
        %1584 = vmatmul.bf16.gmra.mxu0 %v620
        %v1585 = vpop.f32.mrf.mxu0
        %v1586 = vadd.f32 %v1517, %v1585
        %v1587 = vpop.f32.mrf.mxu0
        %v1588 = vadd.f32 %v1519, %v1587
        %1589 = vmatmul.bf16.gmra.mxu0 %v622
        %v1590 = vpop.f32.mrf.mxu0
        %v1591 = vadd.f32 %v1522, %v1590
        %v1592 = vpop.f32.mrf.mxu0
        %v1593 = vadd.f32 %v1524, %v1592
        %1594 = vmatmul.bf16.gmra.mxu0 %v624
        %v1595 = vpop.f32.mrf.mxu0
        %v1596 = vadd.f32 %v1527, %v1595
        %v1597 = vpop.f32.mrf.mxu0
        %v1598 = vadd.f32 %v1529, %v1597
        %1599 = vmatmul.bf16.gmra.mxu0 %v626
        %v1600 = vpop.f32.mrf.mxu0
        %v1601 = vadd.f32 %v1532, %v1600
        %v1602 = vpop.f32.mrf.mxu0
        %v1603 = vadd.f32 %v1534, %v1602
        %1604 = vmatmul.bf16.gmra.mxu0 %v628
        %v1605 = vpop.f32.mrf.mxu0
        %v1606 = vadd.f32 %v1537, %v1605
        %v1607 = vpop.f32.mrf.mxu0
        %v1608 = vadd.f32 %v1539, %v1607
        %1609 = vmatmul.bf16.gmra.mxu0 %v630
        %v1610 = vpop.f32.mrf.mxu0
        %v1611 = vadd.f32 %v1542, %v1610
        %v1612 = vpop.f32.mrf.mxu0
        %v1613 = vadd.f32 %v1544, %v1612
        %1614 = vmatmul.bf16.gmra.mxu0 %v632
        %v1615 = vpop.f32.mrf.mxu0
        %v1616 = vadd.f32 %v1547, %v1615
        %v1617 = vpop.f32.mrf.mxu0
        %v1618 = vadd.f32 %v1549, %v1617
        %1619 = vmatmul.bf16.gmra.mxu0 %v634
        %v1620 = vpop.f32.mrf.mxu0
        %v1621 = vadd.f32 %v1552, %v1620
        %v1622 = vpop.f32.mrf.mxu0
        %v1623 = vadd.f32 %v1554, %v1622
        %1624 = vmatmul.bf16.gmra.mxu0 %v636
        %v1625 = vpop.f32.mrf.mxu0
        %v1626 = vadd.f32 %v1557, %v1625
        %v1627 = vpop.f32.mrf.mxu0
        %v1628 = vadd.f32 %v1559, %v1627
        %1629 = vmatmul.bf16.gmra.mxu0 %v638
        %v1630 = vpop.f32.mrf.mxu0
        %v1631 = vadd.f32 %v1562, %v1630
        %v1632 = vpop.f32.mrf.mxu0
        %v1633 = vadd.f32 %v1564, %v1632
        %1634 = vdwg.mxu0
        %1635 = vmatpush.bf16.msra.mxu0 %v1186
        %1636 = vmatpush.bf16.msra.mxu0 %v1179
        %1637 = vmatpush.bf16.msra.mxu0 %v1172
        %1638 = vmatpush.bf16.msra.mxu0 %v1165
        %1639 = vmatpush.bf16.msra.mxu0 %v1158
        %1640 = vmatpush.bf16.msra.mxu0 %v1151
        %1641 = vmatpush.bf16.msra.mxu0 %v1144
        %1642 = vmatpush.bf16.msra.mxu0 %v1137
        %1643 = vmatmul.bf16.gmra.mxu0 %v615
        %v1644 = vpop.f32.mrf.mxu0
        %v1645 = vadd.f32 %v771, %v1644
        %v1646 = vpop.f32.mrf.mxu0
        %v1647 = vadd.f32 %v771, %v1646
        %1648 = vmatmul.bf16.gmra.mxu0 %v617
        %v1649 = vpop.f32.mrf.mxu0
        %v1650 = vadd.f32 %v771, %v1649
        %v1651 = vpop.f32.mrf.mxu0
        %v1652 = vadd.f32 %v771, %v1651
        %1653 = vmatmul.bf16.gmra.mxu0 %v619
        %v1654 = vpop.f32.mrf.mxu0
        %v1655 = vadd.f32 %v771, %v1654
        %v1656 = vpop.f32.mrf.mxu0
        %v1657 = vadd.f32 %v771, %v1656
        %1658 = vmatmul.bf16.gmra.mxu0 %v621
        %v1659 = vpop.f32.mrf.mxu0
        %v1660 = vadd.f32 %v771, %v1659
        %v1661 = vpop.f32.mrf.mxu0
        %v1662 = vadd.f32 %v771, %v1661
        %1663 = vmatmul.bf16.gmra.mxu0 %v623
        %v1664 = vpop.f32.mrf.mxu0
        %v1665 = vadd.f32 %v771, %v1664
        %v1666 = vpop.f32.mrf.mxu0
        %v1667 = vadd.f32 %v771, %v1666
        %1668 = vmatmul.bf16.gmra.mxu0 %v625
        %v1669 = vpop.f32.mrf.mxu0
        %v1670 = vadd.f32 %v771, %v1669
        %v1671 = vpop.f32.mrf.mxu0
        %v1672 = vadd.f32 %v771, %v1671
        %1673 = vmatmul.bf16.gmra.mxu0 %v627
        %v1674 = vpop.f32.mrf.mxu0
        %v1675 = vadd.f32 %v771, %v1674
        %v1676 = vpop.f32.mrf.mxu0
        %v1677 = vadd.f32 %v771, %v1676
        %1678 = vmatmul.bf16.gmra.mxu0 %v629
        %v1679 = vpop.f32.mrf.mxu0
        %v1680 = vadd.f32 %v771, %v1679
        %v1681 = vpop.f32.mrf.mxu0
        %v1682 = vadd.f32 %v771, %v1681
        %1683 = vmatmul.bf16.gmra.mxu0 %v631
        %v1684 = vpop.f32.mrf.mxu0
        %v1685 = vadd.f32 %v771, %v1684
        %v1686 = vpop.f32.mrf.mxu0
        %v1687 = vadd.f32 %v771, %v1686
        %1688 = vmatmul.bf16.gmra.mxu0 %v633
        %v1689 = vpop.f32.mrf.mxu0
        %v1690 = vadd.f32 %v771, %v1689
        %v1691 = vpop.f32.mrf.mxu0
        %v1692 = vadd.f32 %v771, %v1691
        %1693 = vmatmul.bf16.gmra.mxu0 %v635
        %v1694 = vpop.f32.mrf.mxu0
        %v1695 = vadd.f32 %v771, %v1694
        %v1696 = vpop.f32.mrf.mxu0
        %v1697 = vadd.f32 %v771, %v1696
        %1698 = vmatmul.bf16.gmra.mxu0 %v637
        %v1699 = vpop.f32.mrf.mxu0
        %v1700 = vadd.f32 %v771, %v1699
        %v1701 = vpop.f32.mrf.mxu0
        %v1702 = vadd.f32 %v771, %v1701
        %1703 = vdwg.mxu0
        %1704 = vmatpush.bf16.msra.mxu0 %v1242
        %1705 = vmatpush.bf16.msra.mxu0 %v1235
        %1706 = vmatpush.bf16.msra.mxu0 %v1228
        %1707 = vmatpush.bf16.msra.mxu0 %v1221
        %1708 = vmatpush.bf16.msra.mxu0 %v1214
        %1709 = vmatpush.bf16.msra.mxu0 %v1207
        %1710 = vmatpush.bf16.msra.mxu0 %v1200
        %1711 = vmatpush.bf16.msra.mxu0 %v1193
        %1712 = vmatmul.bf16.gmra.mxu0 %v616
        %v1713 = vpop.f32.mrf.mxu0
        %v1714 = vadd.f32 %v1645, %v1713
        %v1715 = vpop.f32.mrf.mxu0
        %v1716 = vadd.f32 %v1647, %v1715
        %1717 = vmatmul.bf16.gmra.mxu0 %v618
        %v1718 = vpop.f32.mrf.mxu0
        %v1719 = vadd.f32 %v1650, %v1718
        %v1720 = vpop.f32.mrf.mxu0
        %v1721 = vadd.f32 %v1652, %v1720
        %1722 = vmatmul.bf16.gmra.mxu0 %v620
        %v1723 = vpop.f32.mrf.mxu0
        %v1724 = vadd.f32 %v1655, %v1723
        %v1725 = vpop.f32.mrf.mxu0
        %v1726 = vadd.f32 %v1657, %v1725
        %1727 = vmatmul.bf16.gmra.mxu0 %v622
        %v1728 = vpop.f32.mrf.mxu0
        %v1729 = vadd.f32 %v1660, %v1728
        %v1730 = vpop.f32.mrf.mxu0
        %v1731 = vadd.f32 %v1662, %v1730
        %1732 = vmatmul.bf16.gmra.mxu0 %v624
        %v1733 = vpop.f32.mrf.mxu0
        %v1734 = vadd.f32 %v1665, %v1733
        %v1735 = vpop.f32.mrf.mxu0
        %v1736 = vadd.f32 %v1667, %v1735
        %1737 = vmatmul.bf16.gmra.mxu0 %v626
        %v1738 = vpop.f32.mrf.mxu0
        %v1739 = vadd.f32 %v1670, %v1738
        %v1740 = vpop.f32.mrf.mxu0
        %v1741 = vadd.f32 %v1672, %v1740
        %1742 = vmatmul.bf16.gmra.mxu0 %v628
        %v1743 = vpop.f32.mrf.mxu0
        %v1744 = vadd.f32 %v1675, %v1743
        %v1745 = vpop.f32.mrf.mxu0
        %v1746 = vadd.f32 %v1677, %v1745
        %1747 = vmatmul.bf16.gmra.mxu0 %v630
        %v1748 = vpop.f32.mrf.mxu0
        %v1749 = vadd.f32 %v1680, %v1748
        %v1750 = vpop.f32.mrf.mxu0
        %v1751 = vadd.f32 %v1682, %v1750
        %1752 = vmatmul.bf16.gmra.mxu0 %v632
        %v1753 = vpop.f32.mrf.mxu0
        %v1754 = vadd.f32 %v1685, %v1753
        %v1755 = vpop.f32.mrf.mxu0
        %v1756 = vadd.f32 %v1687, %v1755
        %1757 = vmatmul.bf16.gmra.mxu0 %v634
        %v1758 = vpop.f32.mrf.mxu0
        %v1759 = vadd.f32 %v1690, %v1758
        %v1760 = vpop.f32.mrf.mxu0
        %v1761 = vadd.f32 %v1692, %v1760
        %1762 = vmatmul.bf16.gmra.mxu0 %v636
        %v1763 = vpop.f32.mrf.mxu0
        %v1764 = vadd.f32 %v1695, %v1763
        %v1765 = vpop.f32.mrf.mxu0
        %v1766 = vadd.f32 %v1697, %v1765
        %1767 = vmatmul.bf16.gmra.mxu0 %v638
        %v1768 = vpop.f32.mrf.mxu0
        %v1769 = vadd.f32 %v1700, %v1768
        %v1770 = vpop.f32.mrf.mxu0
        %v1771 = vadd.f32 %v1702, %v1770
        %1772 = vdwg.mxu0
        %1773 = vmatpush.bf16.msra.mxu0 %v1187
        %1774 = vmatpush.bf16.msra.mxu0 %v1180
        %1775 = vmatpush.bf16.msra.mxu0 %v1173
        %1776 = vmatpush.bf16.msra.mxu0 %v1166
        %1777 = vmatpush.bf16.msra.mxu0 %v1159
        %1778 = vmatpush.bf16.msra.mxu0 %v1152
        %1779 = vmatpush.bf16.msra.mxu0 %v1145
        %1780 = vmatpush.bf16.msra.mxu0 %v1138
        %1781 = vmatmul.bf16.gmra.mxu0 %v615
        %v1782 = vpop.f32.mrf.mxu0
        %v1783 = vadd.f32 %v772, %v1782
        %v1784 = vpop.f32.mrf.mxu0
        %v1785 = vadd.f32 %v772, %v1784
        %1786 = vmatmul.bf16.gmra.mxu0 %v617
        %v1787 = vpop.f32.mrf.mxu0
        %v1788 = vadd.f32 %v772, %v1787
        %v1789 = vpop.f32.mrf.mxu0
        %v1790 = vadd.f32 %v772, %v1789
        %1791 = vmatmul.bf16.gmra.mxu0 %v619
        %v1792 = vpop.f32.mrf.mxu0
        %v1793 = vadd.f32 %v772, %v1792
        %v1794 = vpop.f32.mrf.mxu0
        %v1795 = vadd.f32 %v772, %v1794
        %1796 = vmatmul.bf16.gmra.mxu0 %v621
        %v1797 = vpop.f32.mrf.mxu0
        %v1798 = vadd.f32 %v772, %v1797
        %v1799 = vpop.f32.mrf.mxu0
        %v1800 = vadd.f32 %v772, %v1799
        %1801 = vmatmul.bf16.gmra.mxu0 %v623
        %v1802 = vpop.f32.mrf.mxu0
        %v1803 = vadd.f32 %v772, %v1802
        %v1804 = vpop.f32.mrf.mxu0
        %v1805 = vadd.f32 %v772, %v1804
        %1806 = vmatmul.bf16.gmra.mxu0 %v625
        %v1807 = vpop.f32.mrf.mxu0
        %v1808 = vadd.f32 %v772, %v1807
        %v1809 = vpop.f32.mrf.mxu0
        %v1810 = vadd.f32 %v772, %v1809
        %1811 = vmatmul.bf16.gmra.mxu0 %v627
        %v1812 = vpop.f32.mrf.mxu0
        %v1813 = vadd.f32 %v772, %v1812
        %v1814 = vpop.f32.mrf.mxu0
        %v1815 = vadd.f32 %v772, %v1814
        %1816 = vmatmul.bf16.gmra.mxu0 %v629
        %v1817 = vpop.f32.mrf.mxu0
        %v1818 = vadd.f32 %v772, %v1817
        %v1819 = vpop.f32.mrf.mxu0
        %v1820 = vadd.f32 %v772, %v1819
        %1821 = vmatmul.bf16.gmra.mxu0 %v631
        %v1822 = vpop.f32.mrf.mxu0
        %v1823 = vadd.f32 %v772, %v1822
        %v1824 = vpop.f32.mrf.mxu0
        %v1825 = vadd.f32 %v772, %v1824
        %1826 = vmatmul.bf16.gmra.mxu0 %v633
        %v1827 = vpop.f32.mrf.mxu0
        %v1828 = vadd.f32 %v772, %v1827
        %v1829 = vpop.f32.mrf.mxu0
        %v1830 = vadd.f32 %v772, %v1829
        %1831 = vmatmul.bf16.gmra.mxu0 %v635
        %v1832 = vpop.f32.mrf.mxu0
        %v1833 = vadd.f32 %v772, %v1832
        %v1834 = vpop.f32.mrf.mxu0
        %v1835 = vadd.f32 %v772, %v1834
        %1836 = vmatmul.bf16.gmra.mxu0 %v637
        %v1837 = vpop.f32.mrf.mxu0
        %v1838 = vadd.f32 %v772, %v1837
        %v1839 = vpop.f32.mrf.mxu0
        %v1840 = vadd.f32 %v772, %v1839
        %1841 = vdwg.mxu0
        %1842 = vmatpush.bf16.msra.mxu0 %v1243
        %1843 = vmatpush.bf16.msra.mxu0 %v1236
        %1844 = vmatpush.bf16.msra.mxu0 %v1229
        %1845 = vmatpush.bf16.msra.mxu0 %v1222
        %1846 = vmatpush.bf16.msra.mxu0 %v1215
        %1847 = vmatpush.bf16.msra.mxu0 %v1208
        %1848 = vmatpush.bf16.msra.mxu0 %v1201
        %1849 = vmatpush.bf16.msra.mxu0 %v1194
        %1850 = vmatmul.bf16.gmra.mxu0 %v616
        %v1851 = vpop.f32.mrf.mxu0
        %v1852 = vadd.f32 %v1783, %v1851
        %v1853 = vpop.f32.mrf.mxu0
        %v1854 = vadd.f32 %v1785, %v1853
        %1855 = vmatmul.bf16.gmra.mxu0 %v618
        %v1856 = vpop.f32.mrf.mxu0
        %v1857 = vadd.f32 %v1788, %v1856
        %v1858 = vpop.f32.mrf.mxu0
        %v1859 = vadd.f32 %v1790, %v1858
        %1860 = vmatmul.bf16.gmra.mxu0 %v620
        %v1861 = vpop.f32.mrf.mxu0
        %v1862 = vadd.f32 %v1793, %v1861
        %v1863 = vpop.f32.mrf.mxu0
        %v1864 = vadd.f32 %v1795, %v1863
        %1865 = vmatmul.bf16.gmra.mxu0 %v622
        %v1866 = vpop.f32.mrf.mxu0
        %v1867 = vadd.f32 %v1798, %v1866
        %v1868 = vpop.f32.mrf.mxu0
        %v1869 = vadd.f32 %v1800, %v1868
        %1870 = vmatmul.bf16.gmra.mxu0 %v624
        %v1871 = vpop.f32.mrf.mxu0
        %v1872 = vadd.f32 %v1803, %v1871
        %v1873 = vpop.f32.mrf.mxu0
        %v1874 = vadd.f32 %v1805, %v1873
        %1875 = vmatmul.bf16.gmra.mxu0 %v626
        %v1876 = vpop.f32.mrf.mxu0
        %v1877 = vadd.f32 %v1808, %v1876
        %v1878 = vpop.f32.mrf.mxu0
        %v1879 = vadd.f32 %v1810, %v1878
        %1880 = vmatmul.bf16.gmra.mxu0 %v628
        %v1881 = vpop.f32.mrf.mxu0
        %v1882 = vadd.f32 %v1813, %v1881
        %v1883 = vpop.f32.mrf.mxu0
        %v1884 = vadd.f32 %v1815, %v1883
        %1885 = vmatmul.bf16.gmra.mxu0 %v630
        %v1886 = vpop.f32.mrf.mxu0
        %v1887 = vadd.f32 %v1818, %v1886
        %v1888 = vpop.f32.mrf.mxu0
        %v1889 = vadd.f32 %v1820, %v1888
        %1890 = vmatmul.bf16.gmra.mxu0 %v632
        %v1891 = vpop.f32.mrf.mxu0
        %v1892 = vadd.f32 %v1823, %v1891
        %v1893 = vpop.f32.mrf.mxu0
        %v1894 = vadd.f32 %v1825, %v1893
        %1895 = vmatmul.bf16.gmra.mxu0 %v634
        %v1896 = vpop.f32.mrf.mxu0
        %v1897 = vadd.f32 %v1828, %v1896
        %v1898 = vpop.f32.mrf.mxu0
        %v1899 = vadd.f32 %v1830, %v1898
        %1900 = vmatmul.bf16.gmra.mxu0 %v636
        %v1901 = vpop.f32.mrf.mxu0
        %v1902 = vadd.f32 %v1833, %v1901
        %v1903 = vpop.f32.mrf.mxu0
        %v1904 = vadd.f32 %v1835, %v1903
        %1905 = vmatmul.bf16.gmra.mxu0 %v638
        %v1906 = vpop.f32.mrf.mxu0
        %v1907 = vadd.f32 %v1838, %v1906
        %v1908 = vpop.f32.mrf.mxu0
        %v1909 = vadd.f32 %v1840, %v1908
        %1910 = vdwg.mxu0
        %1911 = vmatpush.bf16.msra.mxu0 %v1188
        %1912 = vmatpush.bf16.msra.mxu0 %v1181
        %1913 = vmatpush.bf16.msra.mxu0 %v1174
        %1914 = vmatpush.bf16.msra.mxu0 %v1167
        %1915 = vmatpush.bf16.msra.mxu0 %v1160
        %1916 = vmatpush.bf16.msra.mxu0 %v1153
        %1917 = vmatpush.bf16.msra.mxu0 %v1146
        %1918 = vmatpush.bf16.msra.mxu0 %v1139
        %1919 = vmatmul.bf16.gmra.mxu0 %v615
        %v1920 = vpop.f32.mrf.mxu0
        %v1921 = vadd.f32 %v773, %v1920
        %v1922 = vpop.f32.mrf.mxu0
        %v1923 = vadd.f32 %v773, %v1922
        %1924 = vmatmul.bf16.gmra.mxu0 %v617
        %v1925 = vpop.f32.mrf.mxu0
        %v1926 = vadd.f32 %v773, %v1925
        %v1927 = vpop.f32.mrf.mxu0
        %v1928 = vadd.f32 %v773, %v1927
        %1929 = vmatmul.bf16.gmra.mxu0 %v619
        %v1930 = vpop.f32.mrf.mxu0
        %v1931 = vadd.f32 %v773, %v1930
        %v1932 = vpop.f32.mrf.mxu0
        %v1933 = vadd.f32 %v773, %v1932
        %1934 = vmatmul.bf16.gmra.mxu0 %v621
        %v1935 = vpop.f32.mrf.mxu0
        %v1936 = vadd.f32 %v773, %v1935
        %v1937 = vpop.f32.mrf.mxu0
        %v1938 = vadd.f32 %v773, %v1937
        %1939 = vmatmul.bf16.gmra.mxu0 %v623
        %v1940 = vpop.f32.mrf.mxu0
        %v1941 = vadd.f32 %v773, %v1940
        %v1942 = vpop.f32.mrf.mxu0
        %v1943 = vadd.f32 %v773, %v1942
        %1944 = vmatmul.bf16.gmra.mxu0 %v625
        %v1945 = vpop.f32.mrf.mxu0
        %v1946 = vadd.f32 %v773, %v1945
        %v1947 = vpop.f32.mrf.mxu0
        %v1948 = vadd.f32 %v773, %v1947
        %1949 = vmatmul.bf16.gmra.mxu0 %v627
        %v1950 = vpop.f32.mrf.mxu0
        %v1951 = vadd.f32 %v773, %v1950
        %v1952 = vpop.f32.mrf.mxu0
        %v1953 = vadd.f32 %v773, %v1952
        %1954 = vmatmul.bf16.gmra.mxu0 %v629
        %v1955 = vpop.f32.mrf.mxu0
        %v1956 = vadd.f32 %v773, %v1955
        %v1957 = vpop.f32.mrf.mxu0
        %v1958 = vadd.f32 %v773, %v1957
        %1959 = vmatmul.bf16.gmra.mxu0 %v631
        %v1960 = vpop.f32.mrf.mxu0
        %v1961 = vadd.f32 %v773, %v1960
        %v1962 = vpop.f32.mrf.mxu0
        %v1963 = vadd.f32 %v773, %v1962
        %1964 = vmatmul.bf16.gmra.mxu0 %v633
        %v1965 = vpop.f32.mrf.mxu0
        %v1966 = vadd.f32 %v773, %v1965
        %v1967 = vpop.f32.mrf.mxu0
        %v1968 = vadd.f32 %v773, %v1967
        %1969 = vmatmul.bf16.gmra.mxu0 %v635
        %v1970 = vpop.f32.mrf.mxu0
        %v1971 = vadd.f32 %v773, %v1970
        %v1972 = vpop.f32.mrf.mxu0
        %v1973 = vadd.f32 %v773, %v1972
        %1974 = vmatmul.bf16.gmra.mxu0 %v637
        %v1975 = vpop.f32.mrf.mxu0
        %v1976 = vadd.f32 %v773, %v1975
        %v1977 = vpop.f32.mrf.mxu0
        %v1978 = vadd.f32 %v773, %v1977
        %1979 = vdwg.mxu0
        %1980 = vmatpush.bf16.msra.mxu0 %v1244
        %1981 = vmatpush.bf16.msra.mxu0 %v1237
        %1982 = vmatpush.bf16.msra.mxu0 %v1230
        %1983 = vmatpush.bf16.msra.mxu0 %v1223
        %1984 = vmatpush.bf16.msra.mxu0 %v1216
        %1985 = vmatpush.bf16.msra.mxu0 %v1209
        %1986 = vmatpush.bf16.msra.mxu0 %v1202
        %1987 = vmatpush.bf16.msra.mxu0 %v1195
        %1988 = vmatmul.bf16.gmra.mxu0 %v616
        %v1989 = vpop.f32.mrf.mxu0
        %v1990 = vadd.f32 %v1921, %v1989
        %v1991 = vpop.f32.mrf.mxu0
        %v1992 = vadd.f32 %v1923, %v1991
        %1993 = vmatmul.bf16.gmra.mxu0 %v618
        %v1994 = vpop.f32.mrf.mxu0
        %v1995 = vadd.f32 %v1926, %v1994
        %v1996 = vpop.f32.mrf.mxu0
        %v1997 = vadd.f32 %v1928, %v1996
        %1998 = vmatmul.bf16.gmra.mxu0 %v620
        %v1999 = vpop.f32.mrf.mxu0
        %v2000 = vadd.f32 %v1931, %v1999
        %v2001 = vpop.f32.mrf.mxu0
        %v2002 = vadd.f32 %v1933, %v2001
        %2003 = vmatmul.bf16.gmra.mxu0 %v622
        %v2004 = vpop.f32.mrf.mxu0
        %v2005 = vadd.f32 %v1936, %v2004
        %v2006 = vpop.f32.mrf.mxu0
        %v2007 = vadd.f32 %v1938, %v2006
        %2008 = vmatmul.bf16.gmra.mxu0 %v624
        %v2009 = vpop.f32.mrf.mxu0
        %v2010 = vadd.f32 %v1941, %v2009
        %v2011 = vpop.f32.mrf.mxu0
        %v2012 = vadd.f32 %v1943, %v2011
        %2013 = vmatmul.bf16.gmra.mxu0 %v626
        %v2014 = vpop.f32.mrf.mxu0
        %v2015 = vadd.f32 %v1946, %v2014
        %v2016 = vpop.f32.mrf.mxu0
        %v2017 = vadd.f32 %v1948, %v2016
        %2018 = vmatmul.bf16.gmra.mxu0 %v628
        %v2019 = vpop.f32.mrf.mxu0
        %v2020 = vadd.f32 %v1951, %v2019
        %v2021 = vpop.f32.mrf.mxu0
        %v2022 = vadd.f32 %v1953, %v2021
        %2023 = vmatmul.bf16.gmra.mxu0 %v630
        %v2024 = vpop.f32.mrf.mxu0
        %v2025 = vadd.f32 %v1956, %v2024
        %v2026 = vpop.f32.mrf.mxu0
        %v2027 = vadd.f32 %v1958, %v2026
        %2028 = vmatmul.bf16.gmra.mxu0 %v632
        %v2029 = vpop.f32.mrf.mxu0
        %v2030 = vadd.f32 %v1961, %v2029
        %v2031 = vpop.f32.mrf.mxu0
        %v2032 = vadd.f32 %v1963, %v2031
        %2033 = vmatmul.bf16.gmra.mxu0 %v634
        %v2034 = vpop.f32.mrf.mxu0
        %v2035 = vadd.f32 %v1966, %v2034
        %v2036 = vpop.f32.mrf.mxu0
        %v2037 = vadd.f32 %v1968, %v2036
        %2038 = vmatmul.bf16.gmra.mxu0 %v636
        %v2039 = vpop.f32.mrf.mxu0
        %v2040 = vadd.f32 %v1971, %v2039
        %v2041 = vpop.f32.mrf.mxu0
        %v2042 = vadd.f32 %v1973, %v2041
        %2043 = vmatmul.bf16.gmra.mxu0 %v638
        %v2044 = vpop.f32.mrf.mxu0
        %v2045 = vadd.f32 %v1976, %v2044
        %v2046 = vpop.f32.mrf.mxu0
        %v2047 = vadd.f32 %v1978, %v2046
        %2048 = vdwg.mxu0
        %2049 = vmatpush.bf16.msra.mxu0 %v1189
        %2050 = vmatpush.bf16.msra.mxu0 %v1182
        %2051 = vmatpush.bf16.msra.mxu0 %v1175
        %2052 = vmatpush.bf16.msra.mxu0 %v1168
        %2053 = vmatpush.bf16.msra.mxu0 %v1161
        %2054 = vmatpush.bf16.msra.mxu0 %v1154
        %2055 = vmatpush.bf16.msra.mxu0 %v1147
        %2056 = vmatpush.bf16.msra.mxu0 %v1140
        %2057 = vmatmul.bf16.gmra.mxu0 %v615
        %v2058 = vpop.f32.mrf.mxu0
        %v2059 = vadd.f32 %v774, %v2058
        %v2060 = vpop.f32.mrf.mxu0
        %v2061 = vadd.f32 %v774, %v2060
        %2062 = vmatmul.bf16.gmra.mxu0 %v617
        %v2063 = vpop.f32.mrf.mxu0
        %v2064 = vadd.f32 %v774, %v2063
        %v2065 = vpop.f32.mrf.mxu0
        %v2066 = vadd.f32 %v774, %v2065
        %2067 = vmatmul.bf16.gmra.mxu0 %v619
        %v2068 = vpop.f32.mrf.mxu0
        %v2069 = vadd.f32 %v774, %v2068
        %v2070 = vpop.f32.mrf.mxu0
        %v2071 = vadd.f32 %v774, %v2070
        %2072 = vmatmul.bf16.gmra.mxu0 %v621
        %v2073 = vpop.f32.mrf.mxu0
        %v2074 = vadd.f32 %v774, %v2073
        %v2075 = vpop.f32.mrf.mxu0
        %v2076 = vadd.f32 %v774, %v2075
        %2077 = vmatmul.bf16.gmra.mxu0 %v623
        %v2078 = vpop.f32.mrf.mxu0
        %v2079 = vadd.f32 %v774, %v2078
        %v2080 = vpop.f32.mrf.mxu0
        %v2081 = vadd.f32 %v774, %v2080
        %2082 = vmatmul.bf16.gmra.mxu0 %v625
        %v2083 = vpop.f32.mrf.mxu0
        %v2084 = vadd.f32 %v774, %v2083
        %v2085 = vpop.f32.mrf.mxu0
        %v2086 = vadd.f32 %v774, %v2085
        %2087 = vmatmul.bf16.gmra.mxu0 %v627
        %v2088 = vpop.f32.mrf.mxu0
        %v2089 = vadd.f32 %v774, %v2088
        %v2090 = vpop.f32.mrf.mxu0
        %v2091 = vadd.f32 %v774, %v2090
        %2092 = vmatmul.bf16.gmra.mxu0 %v629
        %v2093 = vpop.f32.mrf.mxu0
        %v2094 = vadd.f32 %v774, %v2093
        %v2095 = vpop.f32.mrf.mxu0
        %v2096 = vadd.f32 %v774, %v2095
        %2097 = vmatmul.bf16.gmra.mxu0 %v631
        %v2098 = vpop.f32.mrf.mxu0
        %v2099 = vadd.f32 %v774, %v2098
        %v2100 = vpop.f32.mrf.mxu0
        %v2101 = vadd.f32 %v774, %v2100
        %2102 = vmatmul.bf16.gmra.mxu0 %v633
        %v2103 = vpop.f32.mrf.mxu0
        %v2104 = vadd.f32 %v774, %v2103
        %v2105 = vpop.f32.mrf.mxu0
        %v2106 = vadd.f32 %v774, %v2105
        %2107 = vmatmul.bf16.gmra.mxu0 %v635
        %v2108 = vpop.f32.mrf.mxu0
        %v2109 = vadd.f32 %v774, %v2108
        %v2110 = vpop.f32.mrf.mxu0
        %v2111 = vadd.f32 %v774, %v2110
        %2112 = vmatmul.bf16.gmra.mxu0 %v637
        %v2113 = vpop.f32.mrf.mxu0
        %v2114 = vadd.f32 %v774, %v2113
        %v2115 = vpop.f32.mrf.mxu0
        %v2116 = vadd.f32 %v774, %v2115
        %2117 = vdwg.mxu0
        %2118 = vmatpush.bf16.msra.mxu0 %v1245
        %2119 = vmatpush.bf16.msra.mxu0 %v1238
        %2120 = vmatpush.bf16.msra.mxu0 %v1231
        %2121 = vmatpush.bf16.msra.mxu0 %v1224
        %2122 = vmatpush.bf16.msra.mxu0 %v1217
        %2123 = vmatpush.bf16.msra.mxu0 %v1210
        %2124 = vmatpush.bf16.msra.mxu0 %v1203
        %2125 = vmatpush.bf16.msra.mxu0 %v1196
        %2126 = vmatmul.bf16.gmra.mxu0 %v616
        %v2127 = vpop.f32.mrf.mxu0
        %v2128 = vadd.f32 %v2059, %v2127
        %v2129 = vpop.f32.mrf.mxu0
        %v2130 = vadd.f32 %v2061, %v2129
        %2131 = vmatmul.bf16.gmra.mxu0 %v618
        %v2132 = vpop.f32.mrf.mxu0
        %v2133 = vadd.f32 %v2064, %v2132
        %v2134 = vpop.f32.mrf.mxu0
        %v2135 = vadd.f32 %v2066, %v2134
        %2136 = vmatmul.bf16.gmra.mxu0 %v620
        %v2137 = vpop.f32.mrf.mxu0
        %v2138 = vadd.f32 %v2069, %v2137
        %v2139 = vpop.f32.mrf.mxu0
        %v2140 = vadd.f32 %v2071, %v2139
        %2141 = vmatmul.bf16.gmra.mxu0 %v622
        %v2142 = vpop.f32.mrf.mxu0
        %v2143 = vadd.f32 %v2074, %v2142
        %v2144 = vpop.f32.mrf.mxu0
        %v2145 = vadd.f32 %v2076, %v2144
        %2146 = vmatmul.bf16.gmra.mxu0 %v624
        %v2147 = vpop.f32.mrf.mxu0
        %v2148 = vadd.f32 %v2079, %v2147
        %v2149 = vpop.f32.mrf.mxu0
        %v2150 = vadd.f32 %v2081, %v2149
        %2151 = vmatmul.bf16.gmra.mxu0 %v626
        %v2152 = vpop.f32.mrf.mxu0
        %v2153 = vadd.f32 %v2084, %v2152
        %v2154 = vpop.f32.mrf.mxu0
        %v2155 = vadd.f32 %v2086, %v2154
        %2156 = vmatmul.bf16.gmra.mxu0 %v628
        %v2157 = vpop.f32.mrf.mxu0
        %v2158 = vadd.f32 %v2089, %v2157
        %v2159 = vpop.f32.mrf.mxu0
        %v2160 = vadd.f32 %v2091, %v2159
        %2161 = vmatmul.bf16.gmra.mxu0 %v630
        %v2162 = vpop.f32.mrf.mxu0
        %v2163 = vadd.f32 %v2094, %v2162
        %v2164 = vpop.f32.mrf.mxu0
        %v2165 = vadd.f32 %v2096, %v2164
        %2166 = vmatmul.bf16.gmra.mxu0 %v632
        %v2167 = vpop.f32.mrf.mxu0
        %v2168 = vadd.f32 %v2099, %v2167
        %v2169 = vpop.f32.mrf.mxu0
        %v2170 = vadd.f32 %v2101, %v2169
        %2171 = vmatmul.bf16.gmra.mxu0 %v634
        %v2172 = vpop.f32.mrf.mxu0
        %v2173 = vadd.f32 %v2104, %v2172
        %v2174 = vpop.f32.mrf.mxu0
        %v2175 = vadd.f32 %v2106, %v2174
        %2176 = vmatmul.bf16.gmra.mxu0 %v636
        %v2177 = vpop.f32.mrf.mxu0
        %v2178 = vadd.f32 %v2109, %v2177
        %v2179 = vpop.f32.mrf.mxu0
        %v2180 = vadd.f32 %v2111, %v2179
        %2181 = vmatmul.bf16.gmra.mxu0 %v638
        %v2182 = vpop.f32.mrf.mxu0
        %v2183 = vadd.f32 %v2114, %v2182
        %v2184 = vpop.f32.mrf.mxu0
        %v2185 = vadd.f32 %v2116, %v2184
        %2186 = vdwg.mxu0
        %2187 = vmatpush.bf16.msra.mxu0 %v1190
        %2188 = vmatpush.bf16.msra.mxu0 %v1183
        %2189 = vmatpush.bf16.msra.mxu0 %v1176
        %2190 = vmatpush.bf16.msra.mxu0 %v1169
        %2191 = vmatpush.bf16.msra.mxu0 %v1162
        %2192 = vmatpush.bf16.msra.mxu0 %v1155
        %2193 = vmatpush.bf16.msra.mxu0 %v1148
        %2194 = vmatpush.bf16.msra.mxu0 %v1141
        %2195 = vmatmul.bf16.gmra.mxu0 %v615
        %v2196 = vpop.f32.mrf.mxu0
        %v2197 = vadd.f32 %v775, %v2196
        %v2198 = vpop.f32.mrf.mxu0
        %v2199 = vadd.f32 %v775, %v2198
        %2200 = vmatmul.bf16.gmra.mxu0 %v617
        %v2201 = vpop.f32.mrf.mxu0
        %v2202 = vadd.f32 %v775, %v2201
        %v2203 = vpop.f32.mrf.mxu0
        %v2204 = vadd.f32 %v775, %v2203
        %2205 = vmatmul.bf16.gmra.mxu0 %v619
        %v2206 = vpop.f32.mrf.mxu0
        %v2207 = vadd.f32 %v775, %v2206
        %v2208 = vpop.f32.mrf.mxu0
        %v2209 = vadd.f32 %v775, %v2208
        %2210 = vmatmul.bf16.gmra.mxu0 %v621
        %v2211 = vpop.f32.mrf.mxu0
        %v2212 = vadd.f32 %v775, %v2211
        %v2213 = vpop.f32.mrf.mxu0
        %v2214 = vadd.f32 %v775, %v2213
        %2215 = vmatmul.bf16.gmra.mxu0 %v623
        %v2216 = vpop.f32.mrf.mxu0
        %v2217 = vadd.f32 %v775, %v2216
        %v2218 = vpop.f32.mrf.mxu0
        %v2219 = vadd.f32 %v775, %v2218
        %2220 = vmatmul.bf16.gmra.mxu0 %v625
        %v2221 = vpop.f32.mrf.mxu0
        %v2222 = vadd.f32 %v775, %v2221
        %v2223 = vpop.f32.mrf.mxu0
        %v2224 = vadd.f32 %v775, %v2223
        %2225 = vmatmul.bf16.gmra.mxu0 %v627
        %v2226 = vpop.f32.mrf.mxu0
        %v2227 = vadd.f32 %v775, %v2226
        %v2228 = vpop.f32.mrf.mxu0
        %v2229 = vadd.f32 %v775, %v2228
        %2230 = vmatmul.bf16.gmra.mxu0 %v629
        %v2231 = vpop.f32.mrf.mxu0
        %v2232 = vadd.f32 %v775, %v2231
        %v2233 = vpop.f32.mrf.mxu0
        %v2234 = vadd.f32 %v775, %v2233
        %2235 = vmatmul.bf16.gmra.mxu0 %v631
        %v2236 = vpop.f32.mrf.mxu0
        %v2237 = vadd.f32 %v775, %v2236
        %v2238 = vpop.f32.mrf.mxu0
        %v2239 = vadd.f32 %v775, %v2238
        %2240 = vmatmul.bf16.gmra.mxu0 %v633
        %v2241 = vpop.f32.mrf.mxu0
        %v2242 = vadd.f32 %v775, %v2241
        %v2243 = vpop.f32.mrf.mxu0
        %v2244 = vadd.f32 %v775, %v2243
        %2245 = vmatmul.bf16.gmra.mxu0 %v635
        %v2246 = vpop.f32.mrf.mxu0
        %v2247 = vadd.f32 %v775, %v2246
        %v2248 = vpop.f32.mrf.mxu0
        %v2249 = vadd.f32 %v775, %v2248
        %2250 = vmatmul.bf16.gmra.mxu0 %v637
        %v2251 = vpop.f32.mrf.mxu0
        %v2252 = vadd.f32 %v775, %v2251
        %v2253 = vpop.f32.mrf.mxu0
        %v2254 = vadd.f32 %v775, %v2253
        %2255 = vdwg.mxu0
        %2256 = vmatpush.bf16.msra.mxu0 %v1246
        %2257 = vmatpush.bf16.msra.mxu0 %v1239
        %2258 = vmatpush.bf16.msra.mxu0 %v1232
        %2259 = vmatpush.bf16.msra.mxu0 %v1225
        %2260 = vmatpush.bf16.msra.mxu0 %v1218
        %2261 = vmatpush.bf16.msra.mxu0 %v1211
        %2262 = vmatpush.bf16.msra.mxu0 %v1204
        %2263 = vmatpush.bf16.msra.mxu0 %v1197
        %2264 = vmatmul.bf16.gmra.mxu0 %v616
        %v2265 = vpop.f32.mrf.mxu0
        %v2266 = vadd.f32 %v2197, %v2265
        %v2267 = vpop.f32.mrf.mxu0
        %v2268 = vadd.f32 %v2199, %v2267
        %2269 = vmatmul.bf16.gmra.mxu0 %v618
        %v2270 = vpop.f32.mrf.mxu0
        %v2271 = vadd.f32 %v2202, %v2270
        %v2272 = vpop.f32.mrf.mxu0
        %v2273 = vadd.f32 %v2204, %v2272
        %2274 = vmatmul.bf16.gmra.mxu0 %v620
        %v2275 = vpop.f32.mrf.mxu0
        %v2276 = vadd.f32 %v2207, %v2275
        %v2277 = vpop.f32.mrf.mxu0
        %v2278 = vadd.f32 %v2209, %v2277
        %2279 = vmatmul.bf16.gmra.mxu0 %v622
        %v2280 = vpop.f32.mrf.mxu0
        %v2281 = vadd.f32 %v2212, %v2280
        %v2282 = vpop.f32.mrf.mxu0
        %v2283 = vadd.f32 %v2214, %v2282
        %2284 = vmatmul.bf16.gmra.mxu0 %v624
        %v2285 = vpop.f32.mrf.mxu0
        %v2286 = vadd.f32 %v2217, %v2285
        %v2287 = vpop.f32.mrf.mxu0
        %v2288 = vadd.f32 %v2219, %v2287
        %2289 = vmatmul.bf16.gmra.mxu0 %v626
        %v2290 = vpop.f32.mrf.mxu0
        %v2291 = vadd.f32 %v2222, %v2290
        %v2292 = vpop.f32.mrf.mxu0
        %v2293 = vadd.f32 %v2224, %v2292
        %2294 = vmatmul.bf16.gmra.mxu0 %v628
        %v2295 = vpop.f32.mrf.mxu0
        %v2296 = vadd.f32 %v2227, %v2295
        %v2297 = vpop.f32.mrf.mxu0
        %v2298 = vadd.f32 %v2229, %v2297
        %2299 = vmatmul.bf16.gmra.mxu0 %v630
        %v2300 = vpop.f32.mrf.mxu0
        %v2301 = vadd.f32 %v2232, %v2300
        %v2302 = vpop.f32.mrf.mxu0
        %v2303 = vadd.f32 %v2234, %v2302
        %2304 = vmatmul.bf16.gmra.mxu0 %v632
        %v2305 = vpop.f32.mrf.mxu0
        %v2306 = vadd.f32 %v2237, %v2305
        %v2307 = vpop.f32.mrf.mxu0
        %v2308 = vadd.f32 %v2239, %v2307
        %2309 = vmatmul.bf16.gmra.mxu0 %v634
        %v2310 = vpop.f32.mrf.mxu0
        %v2311 = vadd.f32 %v2242, %v2310
        %v2312 = vpop.f32.mrf.mxu0
        %v2313 = vadd.f32 %v2244, %v2312
        %2314 = vmatmul.bf16.gmra.mxu0 %v636
        %v2315 = vpop.f32.mrf.mxu0
        %v2316 = vadd.f32 %v2247, %v2315
        %v2317 = vpop.f32.mrf.mxu0
        %v2318 = vadd.f32 %v2249, %v2317
        %2319 = vmatmul.bf16.gmra.mxu0 %v638
        %v2320 = vpop.f32.mrf.mxu0
        %v2321 = vadd.f32 %v2252, %v2320
        %v2322 = vpop.f32.mrf.mxu0
        %v2323 = vadd.f32 %v2254, %v2322
        %2324 = vdwg.mxu0
        %v2325 = vxor.u32 %v1438, 2147483648
        %v2326 = vxor.u32 %v1576, 2147483648
        %v2327 = vxor.u32 %v1714, 2147483648
        %v2328 = vxor.u32 %v1852, 2147483648
        %v2329 = vxor.u32 %v1990, 2147483648
        %v2330 = vxor.u32 %v2128, 2147483648
        %v2331 = vxor.u32 %v2266, 2147483648
        %v2332 = vxor.u32 %v1440, 2147483648
        %v2333 = vxor.u32 %v1578, 2147483648
        %v2334 = vxor.u32 %v1716, 2147483648
        %v2335 = vxor.u32 %v1854, 2147483648
        %v2336 = vxor.u32 %v1992, 2147483648
        %v2337 = vxor.u32 %v2130, 2147483648
        %v2338 = vxor.u32 %v2268, 2147483648
        %v2339 = vxor.u32 %v1443, 2147483648
        %v2340 = vxor.u32 %v1581, 2147483648
        %v2341 = vxor.u32 %v1719, 2147483648
        %v2342 = vxor.u32 %v1857, 2147483648
        %v2343 = vxor.u32 %v1995, 2147483648
        %v2344 = vxor.u32 %v2133, 2147483648
        %v2345 = vxor.u32 %v2271, 2147483648
        %v2346 = vxor.u32 %v1445, 2147483648
        %v2347 = vxor.u32 %v1583, 2147483648
        %v2348 = vxor.u32 %v1721, 2147483648
        %v2349 = vxor.u32 %v1859, 2147483648
        %v2350 = vxor.u32 %v1997, 2147483648
        %v2351 = vxor.u32 %v2135, 2147483648
        %v2352 = vxor.u32 %v2273, 2147483648
        %v2353 = vxor.u32 %v1448, 2147483648
        %v2354 = vxor.u32 %v1586, 2147483648
        %v2355 = vxor.u32 %v1724, 2147483648
        %v2356 = vxor.u32 %v1862, 2147483648
        %v2357 = vxor.u32 %v2000, 2147483648
        %v2358 = vxor.u32 %v2138, 2147483648
        %v2359 = vxor.u32 %v2276, 2147483648
        %v2360 = vxor.u32 %v1450, 2147483648
        %v2361 = vxor.u32 %v1588, 2147483648
        %v2362 = vxor.u32 %v1726, 2147483648
        %v2363 = vxor.u32 %v1864, 2147483648
        %v2364 = vxor.u32 %v2002, 2147483648
        %v2365 = vxor.u32 %v2140, 2147483648
        %v2366 = vxor.u32 %v2278, 2147483648
        %v2367 = vxor.u32 %v1453, 2147483648
        %v2368 = vxor.u32 %v1591, 2147483648
        %v2369 = vxor.u32 %v1729, 2147483648
        %v2370 = vxor.u32 %v1867, 2147483648
        %v2371 = vxor.u32 %v2005, 2147483648
        %v2372 = vxor.u32 %v2143, 2147483648
        %v2373 = vxor.u32 %v2281, 2147483648
        %v2374 = vxor.u32 %v1455, 2147483648
        %v2375 = vxor.u32 %v1593, 2147483648
        %v2376 = vxor.u32 %v1731, 2147483648
        %v2377 = vxor.u32 %v1869, 2147483648
        %v2378 = vxor.u32 %v2007, 2147483648
        %v2379 = vxor.u32 %v2145, 2147483648
        %v2380 = vxor.u32 %v2283, 2147483648
        %v2381 = vxor.u32 %v1458, 2147483648
        %v2382 = vxor.u32 %v1596, 2147483648
        %v2383 = vxor.u32 %v1734, 2147483648
        %v2384 = vxor.u32 %v1872, 2147483648
        %v2385 = vxor.u32 %v2010, 2147483648
        %v2386 = vxor.u32 %v2148, 2147483648
        %v2387 = vxor.u32 %v2286, 2147483648
        %v2388 = vxor.u32 %v1460, 2147483648
        %v2389 = vxor.u32 %v1598, 2147483648
        %v2390 = vxor.u32 %v1736, 2147483648
        %v2391 = vxor.u32 %v1874, 2147483648
        %v2392 = vxor.u32 %v2012, 2147483648
        %v2393 = vxor.u32 %v2150, 2147483648
        %v2394 = vxor.u32 %v2288, 2147483648
        %v2395 = vxor.u32 %v1463, 2147483648
        %v2396 = vxor.u32 %v1601, 2147483648
        %v2397 = vxor.u32 %v1739, 2147483648
        %v2398 = vxor.u32 %v1877, 2147483648
        %v2399 = vxor.u32 %v2015, 2147483648
        %v2400 = vxor.u32 %v2153, 2147483648
        %v2401 = vxor.u32 %v2291, 2147483648
        %v2402 = vxor.u32 %v1465, 2147483648
        %v2403 = vxor.u32 %v1603, 2147483648
        %v2404 = vxor.u32 %v1741, 2147483648
        %v2405 = vxor.u32 %v1879, 2147483648
        %v2406 = vxor.u32 %v2017, 2147483648
        %v2407 = vxor.u32 %v2155, 2147483648
        %v2408 = vxor.u32 %v2293, 2147483648
        %v2409 = vxor.u32 %v1468, 2147483648
        %v2410 = vxor.u32 %v1606, 2147483648
        %v2411 = vxor.u32 %v1744, 2147483648
        %v2412 = vxor.u32 %v1882, 2147483648
        %v2413 = vxor.u32 %v2020, 2147483648
        %v2414 = vxor.u32 %v2158, 2147483648
        %v2415 = vxor.u32 %v2296, 2147483648
        %v2416 = vxor.u32 %v1470, 2147483648
        %v2417 = vxor.u32 %v1608, 2147483648
        %v2418 = vxor.u32 %v1746, 2147483648
        %v2419 = vxor.u32 %v1884, 2147483648
        %v2420 = vxor.u32 %v2022, 2147483648
        %v2421 = vxor.u32 %v2160, 2147483648
        %v2422 = vxor.u32 %v2298, 2147483648
        %v2423 = vxor.u32 %v1473, 2147483648
        %v2424 = vxor.u32 %v1611, 2147483648
        %v2425 = vxor.u32 %v1749, 2147483648
        %v2426 = vxor.u32 %v1887, 2147483648
        %v2427 = vxor.u32 %v2025, 2147483648
        %v2428 = vxor.u32 %v2163, 2147483648
        %v2429 = vxor.u32 %v2301, 2147483648
        %v2430 = vxor.u32 %v1475, 2147483648
        %v2431 = vxor.u32 %v1613, 2147483648
        %v2432 = vxor.u32 %v1751, 2147483648
        %v2433 = vxor.u32 %v1889, 2147483648
        %v2434 = vxor.u32 %v2027, 2147483648
        %v2435 = vxor.u32 %v2165, 2147483648
        %v2436 = vxor.u32 %v2303, 2147483648
        %v2437 = vxor.u32 %v1478, 2147483648
        %v2438 = vxor.u32 %v1616, 2147483648
        %v2439 = vxor.u32 %v1754, 2147483648
        %v2440 = vxor.u32 %v1892, 2147483648
        %v2441 = vxor.u32 %v2030, 2147483648
        %v2442 = vxor.u32 %v2168, 2147483648
        %v2443 = vxor.u32 %v2306, 2147483648
        %v2444 = vxor.u32 %v1480, 2147483648
        %v2445 = vxor.u32 %v1618, 2147483648
        %v2446 = vxor.u32 %v1756, 2147483648
        %v2447 = vxor.u32 %v1894, 2147483648
        %v2448 = vxor.u32 %v2032, 2147483648
        %v2449 = vxor.u32 %v2170, 2147483648
        %v2450 = vxor.u32 %v2308, 2147483648
        %v2451 = vxor.u32 %v1483, 2147483648
        %v2452 = vxor.u32 %v1621, 2147483648
        %v2453 = vxor.u32 %v1759, 2147483648
        %v2454 = vxor.u32 %v1897, 2147483648
        %v2455 = vxor.u32 %v2035, 2147483648
        %v2456 = vxor.u32 %v2173, 2147483648
        %v2457 = vxor.u32 %v2311, 2147483648
        %v2458 = vxor.u32 %v1485, 2147483648
        %v2459 = vxor.u32 %v1623, 2147483648
        %v2460 = vxor.u32 %v1761, 2147483648
        %v2461 = vxor.u32 %v1899, 2147483648
        %v2462 = vxor.u32 %v2037, 2147483648
        %v2463 = vxor.u32 %v2175, 2147483648
        %v2464 = vxor.u32 %v2313, 2147483648
        %v2465 = vxor.u32 %v1488, 2147483648
        %v2466 = vxor.u32 %v1626, 2147483648
        %v2467 = vxor.u32 %v1764, 2147483648
        %v2468 = vxor.u32 %v1902, 2147483648
        %v2469 = vxor.u32 %v2040, 2147483648
        %v2470 = vxor.u32 %v2178, 2147483648
        %v2471 = vxor.u32 %v2316, 2147483648
        %v2472 = vxor.u32 %v1490, 2147483648
        %v2473 = vxor.u32 %v1628, 2147483648
        %v2474 = vxor.u32 %v1766, 2147483648
        %v2475 = vxor.u32 %v1904, 2147483648
        %v2476 = vxor.u32 %v2042, 2147483648
        %v2477 = vxor.u32 %v2180, 2147483648
        %v2478 = vxor.u32 %v2318, 2147483648
        %v2479 = vxor.u32 %v1493, 2147483648
        %v2480 = vxor.u32 %v1631, 2147483648
        %v2481 = vxor.u32 %v1769, 2147483648
        %v2482 = vxor.u32 %v1907, 2147483648
        %v2483 = vxor.u32 %v2045, 2147483648
        %v2484 = vxor.u32 %v2183, 2147483648
        %v2485 = vxor.u32 %v2321, 2147483648
        %v2486 = vxor.u32 %v1495, 2147483648
        %v2487 = vxor.u32 %v1633, 2147483648
        %v2488 = vxor.u32 %v1771, 2147483648
        %v2489 = vxor.u32 %v1909, 2147483648
        %v2490 = vxor.u32 %v2047, 2147483648
        %v2491 = vxor.u32 %v2185, 2147483648
        %v2492 = vxor.u32 %v2323, 2147483648
        %v2493 = vmul.f32 %v2325, 1.442695
        %v2494 = vpow.pop %v2493
        %v2495 = vmul.f32 %v2326, 1.442695
        %v2496 = vpow.pop %v2495
        %v2497 = vmul.f32 %v2327, 1.442695
        %v2498 = vpow.pop %v2497
        %v2499 = vmul.f32 %v2328, 1.442695
        %v2500 = vpow.pop %v2499
        %v2501 = vmul.f32 %v2329, 1.442695
        %v2502 = vpow.pop %v2501
        %v2503 = vmul.f32 %v2330, 1.442695
        %v2504 = vpow.pop %v2503
        %v2505 = vmul.f32 %v2331, 1.442695
        %v2506 = vpow.pop %v2505
        %v2507 = vmul.f32 %v2332, 1.442695
        %v2508 = vpow.pop %v2507
        %v2509 = vmul.f32 %v2333, 1.442695
        %v2510 = vpow.pop %v2509
        %v2511 = vmul.f32 %v2334, 1.442695
        %v2512 = vpow.pop %v2511
        %v2513 = vmul.f32 %v2335, 1.442695
        %v2514 = vpow.pop %v2513
        %v2515 = vmul.f32 %v2336, 1.442695
        %v2516 = vpow.pop %v2515
        %v2517 = vmul.f32 %v2337, 1.442695
        %v2518 = vpow.pop %v2517
        %v2519 = vmul.f32 %v2338, 1.442695
        %v2520 = vpow.pop %v2519
        %v2521 = vmul.f32 %v2339, 1.442695
        %v2522 = vpow.pop %v2521
        %v2523 = vmul.f32 %v2340, 1.442695
        %v2524 = vpow.pop %v2523
        %v2525 = vmul.f32 %v2341, 1.442695
        %v2526 = vpow.pop %v2525
        %v2527 = vmul.f32 %v2342, 1.442695
        %v2528 = vpow.pop %v2527
        %v2529 = vmul.f32 %v2343, 1.442695
        %v2530 = vpow.pop %v2529
        %v2531 = vmul.f32 %v2344, 1.442695
        %v2532 = vpow.pop %v2531
        %v2533 = vmul.f32 %v2345, 1.442695
        %v2534 = vpow.pop %v2533
        %v2535 = vmul.f32 %v2346, 1.442695
        %v2536 = vpow.pop %v2535
        %v2537 = vmul.f32 %v2347, 1.442695
        %v2538 = vpow.pop %v2537
        %v2539 = vmul.f32 %v2348, 1.442695
        %v2540 = vpow.pop %v2539
        %v2541 = vmul.f32 %v2349, 1.442695
        %v2542 = vpow.pop %v2541
        %v2543 = vmul.f32 %v2350, 1.442695
        %v2544 = vpow.pop %v2543
        %v2545 = vmul.f32 %v2351, 1.442695
        %v2546 = vpow.pop %v2545
        %v2547 = vmul.f32 %v2352, 1.442695
        %v2548 = vpow.pop %v2547
        %v2549 = vmul.f32 %v2353, 1.442695
        %v2550 = vpow.pop %v2549
        %v2551 = vmul.f32 %v2354, 1.442695
        %v2552 = vpow.pop %v2551
        %v2553 = vmul.f32 %v2355, 1.442695
        %v2554 = vpow.pop %v2553
        %v2555 = vmul.f32 %v2356, 1.442695
        %v2556 = vpow.pop %v2555
        %v2557 = vmul.f32 %v2357, 1.442695
        %v2558 = vpow.pop %v2557
        %v2559 = vmul.f32 %v2358, 1.442695
        %v2560 = vpow.pop %v2559
        %v2561 = vmul.f32 %v2359, 1.442695
        %v2562 = vpow.pop %v2561
        %v2563 = vmul.f32 %v2360, 1.442695
        %v2564 = vpow.pop %v2563
        %v2565 = vmul.f32 %v2361, 1.442695
        %v2566 = vpow.pop %v2565
        %v2567 = vmul.f32 %v2362, 1.442695
        %v2568 = vpow.pop %v2567
        %v2569 = vmul.f32 %v2363, 1.442695
        %v2570 = vpow.pop %v2569
        %v2571 = vmul.f32 %v2364, 1.442695
        %v2572 = vpow.pop %v2571
        %v2573 = vmul.f32 %v2365, 1.442695
        %v2574 = vpow.pop %v2573
        %v2575 = vmul.f32 %v2366, 1.442695
        %v2576 = vpow.pop %v2575
        %v2577 = vmul.f32 %v2367, 1.442695
        %v2578 = vpow.pop %v2577
        %v2579 = vmul.f32 %v2368, 1.442695
        %v2580 = vpow.pop %v2579
        %v2581 = vmul.f32 %v2369, 1.442695
        %v2582 = vpow.pop %v2581
        %v2583 = vmul.f32 %v2370, 1.442695
        %v2584 = vpow.pop %v2583
        %v2585 = vmul.f32 %v2371, 1.442695
        %v2586 = vpow.pop %v2585
        %v2587 = vmul.f32 %v2372, 1.442695
        %v2588 = vpow.pop %v2587
        %v2589 = vmul.f32 %v2373, 1.442695
        %v2590 = vpow.pop %v2589
        %v2591 = vmul.f32 %v2374, 1.442695
        %v2592 = vpow.pop %v2591
        %v2593 = vmul.f32 %v2375, 1.442695
        %v2594 = vpow.pop %v2593
        %v2595 = vmul.f32 %v2376, 1.442695
        %v2596 = vpow.pop %v2595
        %v2597 = vmul.f32 %v2377, 1.442695
        %v2598 = vpow.pop %v2597
        %v2599 = vmul.f32 %v2378, 1.442695
        %v2600 = vpow.pop %v2599
        %v2601 = vmul.f32 %v2379, 1.442695
        %v2602 = vpow.pop %v2601
        %v2603 = vmul.f32 %v2380, 1.442695
        %v2604 = vpow.pop %v2603
        %v2605 = vmul.f32 %v2381, 1.442695
        %v2606 = vpow.pop %v2605
        %v2607 = vmul.f32 %v2382, 1.442695
        %v2608 = vpow.pop %v2607
        %v2609 = vmul.f32 %v2383, 1.442695
        %v2610 = vpow.pop %v2609
        %v2611 = vmul.f32 %v2384, 1.442695
        %v2612 = vpow.pop %v2611
        %v2613 = vmul.f32 %v2385, 1.442695
        %v2614 = vpow.pop %v2613
        %v2615 = vmul.f32 %v2386, 1.442695
        %v2616 = vpow.pop %v2615
        %v2617 = vmul.f32 %v2387, 1.442695
        %v2618 = vpow.pop %v2617
        %v2619 = vmul.f32 %v2388, 1.442695
        %v2620 = vpow.pop %v2619
        %v2621 = vmul.f32 %v2389, 1.442695
        %v2622 = vpow.pop %v2621
        %v2623 = vmul.f32 %v2390, 1.442695
        %v2624 = vpow.pop %v2623
        %v2625 = vmul.f32 %v2391, 1.442695
        %v2626 = vpow.pop %v2625
        %v2627 = vmul.f32 %v2392, 1.442695
        %v2628 = vpow.pop %v2627
        %v2629 = vmul.f32 %v2393, 1.442695
        %v2630 = vpow.pop %v2629
        %v2631 = vmul.f32 %v2394, 1.442695
        %v2632 = vpow.pop %v2631
        %v2633 = vmul.f32 %v2395, 1.442695
        %v2634 = vpow.pop %v2633
        %v2635 = vmul.f32 %v2396, 1.442695
        %v2636 = vpow.pop %v2635
        %v2637 = vmul.f32 %v2397, 1.442695
        %v2638 = vpow.pop %v2637
        %v2639 = vmul.f32 %v2398, 1.442695
        %v2640 = vpow.pop %v2639
        %v2641 = vmul.f32 %v2399, 1.442695
        %v2642 = vpow.pop %v2641
        %v2643 = vmul.f32 %v2400, 1.442695
        %v2644 = vpow.pop %v2643
        %v2645 = vmul.f32 %v2401, 1.442695
        %v2646 = vpow.pop %v2645
        %v2647 = vmul.f32 %v2402, 1.442695
        %v2648 = vpow.pop %v2647
        %v2649 = vmul.f32 %v2403, 1.442695
        %v2650 = vpow.pop %v2649
        %v2651 = vmul.f32 %v2404, 1.442695
        %v2652 = vpow.pop %v2651
        %v2653 = vmul.f32 %v2405, 1.442695
        %v2654 = vpow.pop %v2653
        %v2655 = vmul.f32 %v2406, 1.442695
        %v2656 = vpow.pop %v2655
        %v2657 = vmul.f32 %v2407, 1.442695
        %v2658 = vpow.pop %v2657
        %v2659 = vmul.f32 %v2408, 1.442695
        %v2660 = vpow.pop %v2659
        %v2661 = vmul.f32 %v2409, 1.442695
        %v2662 = vpow.pop %v2661
        %v2663 = vmul.f32 %v2410, 1.442695
        %v2664 = vpow.pop %v2663
        %v2665 = vmul.f32 %v2411, 1.442695
        %v2666 = vpow.pop %v2665
        %v2667 = vmul.f32 %v2412, 1.442695
        %v2668 = vpow.pop %v2667
        %v2669 = vmul.f32 %v2413, 1.442695
        %v2670 = vpow.pop %v2669
        %v2671 = vmul.f32 %v2414, 1.442695
        %v2672 = vpow.pop %v2671
        %v2673 = vmul.f32 %v2415, 1.442695
        %v2674 = vpow.pop %v2673
        %v2675 = vmul.f32 %v2416, 1.442695
        %v2676 = vpow.pop %v2675
        %v2677 = vmul.f32 %v2417, 1.442695
        %v2678 = vpow.pop %v2677
        %v2679 = vmul.f32 %v2418, 1.442695
        %v2680 = vpow.pop %v2679
        %v2681 = vmul.f32 %v2419, 1.442695
        %v2682 = vpow.pop %v2681
        %v2683 = vmul.f32 %v2420, 1.442695
        %v2684 = vpow.pop %v2683
        %v2685 = vmul.f32 %v2421, 1.442695
        %v2686 = vpow.pop %v2685
        %v2687 = vmul.f32 %v2422, 1.442695
        %v2688 = vpow.pop %v2687
        %v2689 = vmul.f32 %v2423, 1.442695
        %v2690 = vpow.pop %v2689
        %v2691 = vmul.f32 %v2424, 1.442695
        %v2692 = vpow.pop %v2691
        %v2693 = vmul.f32 %v2425, 1.442695
        %v2694 = vpow.pop %v2693
        %v2695 = vmul.f32 %v2426, 1.442695
        %v2696 = vpow.pop %v2695
        %v2697 = vmul.f32 %v2427, 1.442695
        %v2698 = vpow.pop %v2697
        %v2699 = vmul.f32 %v2428, 1.442695
        %v2700 = vpow.pop %v2699
        %v2701 = vmul.f32 %v2429, 1.442695
        %v2702 = vpow.pop %v2701
        %v2703 = vmul.f32 %v2430, 1.442695
        %v2704 = vpow.pop %v2703
        %v2705 = vmul.f32 %v2431, 1.442695
        %v2706 = vpow.pop %v2705
        %v2707 = vmul.f32 %v2432, 1.442695
        %v2708 = vpow.pop %v2707
        %v2709 = vmul.f32 %v2433, 1.442695
        %v2710 = vpow.pop %v2709
        %v2711 = vmul.f32 %v2434, 1.442695
        %v2712 = vpow.pop %v2711
        %v2713 = vmul.f32 %v2435, 1.442695
        %v2714 = vpow.pop %v2713
        %v2715 = vmul.f32 %v2436, 1.442695
        %v2716 = vpow.pop %v2715
        %v2717 = vmul.f32 %v2437, 1.442695
        %v2718 = vpow.pop %v2717
        %v2719 = vmul.f32 %v2438, 1.442695
        %v2720 = vpow.pop %v2719
        %v2721 = vmul.f32 %v2439, 1.442695
        %v2722 = vpow.pop %v2721
        %v2723 = vmul.f32 %v2440, 1.442695
        %v2724 = vpow.pop %v2723
        %v2725 = vmul.f32 %v2441, 1.442695
        %v2726 = vpow.pop %v2725
        %v2727 = vmul.f32 %v2442, 1.442695
        %v2728 = vpow.pop %v2727
        %v2729 = vmul.f32 %v2443, 1.442695
        %v2730 = vpow.pop %v2729
        %v2731 = vmul.f32 %v2444, 1.442695
        %v2732 = vpow.pop %v2731
        %v2733 = vmul.f32 %v2445, 1.442695
        %v2734 = vpow.pop %v2733
        %v2735 = vmul.f32 %v2446, 1.442695
        %v2736 = vpow.pop %v2735
        %v2737 = vmul.f32 %v2447, 1.442695
        %v2738 = vpow.pop %v2737
        %v2739 = vmul.f32 %v2448, 1.442695
        %v2740 = vpow.pop %v2739
        %v2741 = vmul.f32 %v2449, 1.442695
        %v2742 = vpow.pop %v2741
        %v2743 = vmul.f32 %v2450, 1.442695
        %v2744 = vpow.pop %v2743
        %v2745 = vmul.f32 %v2451, 1.442695
        %v2746 = vpow.pop %v2745
        %v2747 = vmul.f32 %v2452, 1.442695
        %v2748 = vpow.pop %v2747
        %v2749 = vmul.f32 %v2453, 1.442695
        %v2750 = vpow.pop %v2749
        %v2751 = vmul.f32 %v2454, 1.442695
        %v2752 = vpow.pop %v2751
        %v2753 = vmul.f32 %v2455, 1.442695
        %v2754 = vpow.pop %v2753
        %v2755 = vmul.f32 %v2456, 1.442695
        %v2756 = vpow.pop %v2755
        %v2757 = vmul.f32 %v2457, 1.442695
        %v2758 = vpow.pop %v2757
        %v2759 = vmul.f32 %v2458, 1.442695
        %v2760 = vpow.pop %v2759
        %v2761 = vmul.f32 %v2459, 1.442695
        %v2762 = vpow.pop %v2761
        %v2763 = vmul.f32 %v2460, 1.442695
        %v2764 = vpow.pop %v2763
        %v2765 = vmul.f32 %v2461, 1.442695
        %v2766 = vpow.pop %v2765
        %v2767 = vmul.f32 %v2462, 1.442695
        %v2768 = vpow.pop %v2767
        %v2769 = vmul.f32 %v2463, 1.442695
        %v2770 = vpow.pop %v2769
        %v2771 = vmul.f32 %v2464, 1.442695
        %v2772 = vpow.pop %v2771
        %v2773 = vmul.f32 %v2465, 1.442695
        %v2774 = vpow.pop %v2773
        %v2775 = vmul.f32 %v2466, 1.442695
        %v2776 = vpow.pop %v2775
        %v2777 = vmul.f32 %v2467, 1.442695
        %v2778 = vpow.pop %v2777
        %v2779 = vmul.f32 %v2468, 1.442695
        %v2780 = vpow.pop %v2779
        %v2781 = vmul.f32 %v2469, 1.442695
        %v2782 = vpow.pop %v2781
        %v2783 = vmul.f32 %v2470, 1.442695
        %v2784 = vpow.pop %v2783
        %v2785 = vmul.f32 %v2471, 1.442695
        %v2786 = vpow.pop %v2785
        %v2787 = vmul.f32 %v2472, 1.442695
        %v2788 = vpow.pop %v2787
        %v2789 = vmul.f32 %v2473, 1.442695
        %v2790 = vpow.pop %v2789
        %v2791 = vmul.f32 %v2474, 1.442695
        %v2792 = vpow.pop %v2791
        %v2793 = vmul.f32 %v2475, 1.442695
        %v2794 = vpow.pop %v2793
        %v2795 = vmul.f32 %v2476, 1.442695
        %v2796 = vpow.pop %v2795
        %v2797 = vmul.f32 %v2477, 1.442695
        %v2798 = vpow.pop %v2797
        %v2799 = vmul.f32 %v2478, 1.442695
        %v2800 = vpow.pop %v2799
        %v2801 = vmul.f32 %v2479, 1.442695
        %v2802 = vpow.pop %v2801
        %v2803 = vmul.f32 %v2480, 1.442695
        %v2804 = vpow.pop %v2803
        %v2805 = vmul.f32 %v2481, 1.442695
        %v2806 = vpow.pop %v2805
        %v2807 = vmul.f32 %v2482, 1.442695
        %v2808 = vpow.pop %v2807
        %v2809 = vmul.f32 %v2483, 1.442695
        %v2810 = vpow.pop %v2809
        %v2811 = vmul.f32 %v2484, 1.442695
        %v2812 = vpow.pop %v2811
        %v2813 = vmul.f32 %v2485, 1.442695
        %v2814 = vpow.pop %v2813
        %v2815 = vmul.f32 %v2486, 1.442695
        %v2816 = vpow.pop %v2815
        %v2817 = vmul.f32 %v2487, 1.442695
        %v2818 = vpow.pop %v2817
        %v2819 = vmul.f32 %v2488, 1.442695
        %v2820 = vpow.pop %v2819
        %v2821 = vmul.f32 %v2489, 1.442695
        %v2822 = vpow.pop %v2821
        %v2823 = vmul.f32 %v2490, 1.442695
        %v2824 = vpow.pop %v2823
        %v2825 = vmul.f32 %v2491, 1.442695
        %v2826 = vpow.pop %v2825
        %v2827 = vmul.f32 %v2492, 1.442695
        %v2828 = vpow.pop %v2827
        %v2829 = vadd.f32 %v2494, 1.0
        %v2830 = vadd.f32 %v2496, 1.0
        %v2831 = vadd.f32 %v2498, 1.0
        %v2832 = vadd.f32 %v2500, 1.0
        %v2833 = vadd.f32 %v2502, 1.0
        %v2834 = vadd.f32 %v2504, 1.0
        %v2835 = vadd.f32 %v2506, 1.0
        %v2836 = vadd.f32 %v2508, 1.0
        %v2837 = vadd.f32 %v2510, 1.0
        %v2838 = vadd.f32 %v2512, 1.0
        %v2839 = vadd.f32 %v2514, 1.0
        %v2840 = vadd.f32 %v2516, 1.0
        %v2841 = vadd.f32 %v2518, 1.0
        %v2842 = vadd.f32 %v2520, 1.0
        %v2843 = vadd.f32 %v2522, 1.0
        %v2844 = vadd.f32 %v2524, 1.0
        %v2845 = vadd.f32 %v2526, 1.0
        %v2846 = vadd.f32 %v2528, 1.0
        %v2847 = vadd.f32 %v2530, 1.0
        %v2848 = vadd.f32 %v2532, 1.0
        %v2849 = vadd.f32 %v2534, 1.0
        %v2850 = vadd.f32 %v2536, 1.0
        %v2851 = vadd.f32 %v2538, 1.0
        %v2852 = vadd.f32 %v2540, 1.0
        %v2853 = vadd.f32 %v2542, 1.0
        %v2854 = vadd.f32 %v2544, 1.0
        %v2855 = vadd.f32 %v2546, 1.0
        %v2856 = vadd.f32 %v2548, 1.0
        %v2857 = vadd.f32 %v2550, 1.0
        %v2858 = vadd.f32 %v2552, 1.0
        %v2859 = vadd.f32 %v2554, 1.0
        %v2860 = vadd.f32 %v2556, 1.0
        %v2861 = vadd.f32 %v2558, 1.0
        %v2862 = vadd.f32 %v2560, 1.0
        %v2863 = vadd.f32 %v2562, 1.0
        %v2864 = vadd.f32 %v2564, 1.0
        %v2865 = vadd.f32 %v2566, 1.0
        %v2866 = vadd.f32 %v2568, 1.0
        %v2867 = vadd.f32 %v2570, 1.0
        %v2868 = vadd.f32 %v2572, 1.0
        %v2869 = vadd.f32 %v2574, 1.0
        %v2870 = vadd.f32 %v2576, 1.0
        %v2871 = vadd.f32 %v2578, 1.0
        %v2872 = vadd.f32 %v2580, 1.0
        %v2873 = vadd.f32 %v2582, 1.0
        %v2874 = vadd.f32 %v2584, 1.0
        %v2875 = vadd.f32 %v2586, 1.0
        %v2876 = vadd.f32 %v2588, 1.0
        %v2877 = vadd.f32 %v2590, 1.0
        %v2878 = vadd.f32 %v2592, 1.0
        %v2879 = vadd.f32 %v2594, 1.0
        %v2880 = vadd.f32 %v2596, 1.0
        %v2881 = vadd.f32 %v2598, 1.0
        %v2882 = vadd.f32 %v2600, 1.0
        %v2883 = vadd.f32 %v2602, 1.0
        %v2884 = vadd.f32 %v2604, 1.0
        %v2885 = vadd.f32 %v2606, 1.0
        %v2886 = vadd.f32 %v2608, 1.0
        %v2887 = vadd.f32 %v2610, 1.0
        %v2888 = vadd.f32 %v2612, 1.0
        %v2889 = vadd.f32 %v2614, 1.0
        %v2890 = vadd.f32 %v2616, 1.0
        %v2891 = vadd.f32 %v2618, 1.0
        %v2892 = vadd.f32 %v2620, 1.0
        %v2893 = vadd.f32 %v2622, 1.0
        %v2894 = vadd.f32 %v2624, 1.0
        %v2895 = vadd.f32 %v2626, 1.0
        %v2896 = vadd.f32 %v2628, 1.0
        %v2897 = vadd.f32 %v2630, 1.0
        %v2898 = vadd.f32 %v2632, 1.0
        %v2899 = vadd.f32 %v2634, 1.0
        %v2900 = vadd.f32 %v2636, 1.0
        %v2901 = vadd.f32 %v2638, 1.0
        %v2902 = vadd.f32 %v2640, 1.0
        %v2903 = vadd.f32 %v2642, 1.0
        %v2904 = vadd.f32 %v2644, 1.0
        %v2905 = vadd.f32 %v2646, 1.0
        %v2906 = vadd.f32 %v2648, 1.0
        %v2907 = vadd.f32 %v2650, 1.0
        %v2908 = vadd.f32 %v2652, 1.0
        %v2909 = vadd.f32 %v2654, 1.0
        %v2910 = vadd.f32 %v2656, 1.0
        %v2911 = vadd.f32 %v2658, 1.0
        %v2912 = vadd.f32 %v2660, 1.0
        %v2913 = vadd.f32 %v2662, 1.0
        %v2914 = vadd.f32 %v2664, 1.0
        %v2915 = vadd.f32 %v2666, 1.0
        %v2916 = vadd.f32 %v2668, 1.0
        %v2917 = vadd.f32 %v2670, 1.0
        %v2918 = vadd.f32 %v2672, 1.0
        %v2919 = vadd.f32 %v2674, 1.0
        %v2920 = vadd.f32 %v2676, 1.0
        %v2921 = vadd.f32 %v2678, 1.0
        %v2922 = vadd.f32 %v2680, 1.0
        %v2923 = vadd.f32 %v2682, 1.0
        %v2924 = vadd.f32 %v2684, 1.0
        %v2925 = vadd.f32 %v2686, 1.0
        %v2926 = vadd.f32 %v2688, 1.0
        %v2927 = vadd.f32 %v2690, 1.0
        %v2928 = vadd.f32 %v2692, 1.0
        %v2929 = vadd.f32 %v2694, 1.0
        %v2930 = vadd.f32 %v2696, 1.0
        %v2931 = vadd.f32 %v2698, 1.0
        %v2932 = vadd.f32 %v2700, 1.0
        %v2933 = vadd.f32 %v2702, 1.0
        %v2934 = vadd.f32 %v2704, 1.0
        %v2935 = vadd.f32 %v2706, 1.0
        %v2936 = vadd.f32 %v2708, 1.0
        %v2937 = vadd.f32 %v2710, 1.0
        %v2938 = vadd.f32 %v2712, 1.0
        %v2939 = vadd.f32 %v2714, 1.0
        %v2940 = vadd.f32 %v2716, 1.0
        %v2941 = vadd.f32 %v2718, 1.0
        %v2942 = vadd.f32 %v2720, 1.0
        %v2943 = vadd.f32 %v2722, 1.0
        %v2944 = vadd.f32 %v2724, 1.0
        %v2945 = vadd.f32 %v2726, 1.0
        %v2946 = vadd.f32 %v2728, 1.0
        %v2947 = vadd.f32 %v2730, 1.0
        %v2948 = vadd.f32 %v2732, 1.0
        %v2949 = vadd.f32 %v2734, 1.0
        %v2950 = vadd.f32 %v2736, 1.0
        %v2951 = vadd.f32 %v2738, 1.0
        %v2952 = vadd.f32 %v2740, 1.0
        %v2953 = vadd.f32 %v2742, 1.0
        %v2954 = vadd.f32 %v2744, 1.0
        %v2955 = vadd.f32 %v2746, 1.0
        %v2956 = vadd.f32 %v2748, 1.0
        %v2957 = vadd.f32 %v2750, 1.0
        %v2958 = vadd.f32 %v2752, 1.0
        %v2959 = vadd.f32 %v2754, 1.0
        %v2960 = vadd.f32 %v2756, 1.0
        %v2961 = vadd.f32 %v2758, 1.0
        %v2962 = vadd.f32 %v2760, 1.0
        %v2963 = vadd.f32 %v2762, 1.0
        %v2964 = vadd.f32 %v2764, 1.0
        %v2965 = vadd.f32 %v2766, 1.0
        %v2966 = vadd.f32 %v2768, 1.0
        %v2967 = vadd.f32 %v2770, 1.0
        %v2968 = vadd.f32 %v2772, 1.0
        %v2969 = vadd.f32 %v2774, 1.0
        %v2970 = vadd.f32 %v2776, 1.0
        %v2971 = vadd.f32 %v2778, 1.0
        %v2972 = vadd.f32 %v2780, 1.0
        %v2973 = vadd.f32 %v2782, 1.0
        %v2974 = vadd.f32 %v2784, 1.0
        %v2975 = vadd.f32 %v2786, 1.0
        %v2976 = vadd.f32 %v2788, 1.0
        %v2977 = vadd.f32 %v2790, 1.0
        %v2978 = vadd.f32 %v2792, 1.0
        %v2979 = vadd.f32 %v2794, 1.0
        %v2980 = vadd.f32 %v2796, 1.0
        %v2981 = vadd.f32 %v2798, 1.0
        %v2982 = vadd.f32 %v2800, 1.0
        %v2983 = vadd.f32 %v2802, 1.0
        %v2984 = vadd.f32 %v2804, 1.0
        %v2985 = vadd.f32 %v2806, 1.0
        %v2986 = vadd.f32 %v2808, 1.0
        %v2987 = vadd.f32 %v2810, 1.0
        %v2988 = vadd.f32 %v2812, 1.0
        %v2989 = vadd.f32 %v2814, 1.0
        %v2990 = vadd.f32 %v2816, 1.0
        %v2991 = vadd.f32 %v2818, 1.0
        %v2992 = vadd.f32 %v2820, 1.0
        %v2993 = vadd.f32 %v2822, 1.0
        %v2994 = vadd.f32 %v2824, 1.0
        %v2995 = vadd.f32 %v2826, 1.0
        %v2996 = vadd.f32 %v2828, 1.0
        %v2997 = vrcp.pop %v2829
        %v2998 = vmul.f32 %v2829, %v2997
        %v2999 = vsub.f32 1.0, %v2998
        %v3000 = vmul.f32 %v2997, %v2999
        %v3001 = vadd.f32 %v2997, %v3000
        %vm3002 = vweird.f32 %v2829
        %vm3003 = vweird.f32 %v2997
        %vm3004 = vmor %vm3002, %vm3003
        %v3005 = vsel %vm3004, %v2997, %v3001
        %v3006 = vand.u32 2147483647, %v2829
        %vm3007 = vcmp.eq.f32.partialorder %v3006, 8.507059e+37
        %v3008 = vand.u32 %v2829, 2147483648
        %v3009 = vor.u32 1.1754944e-38, %v3008
        %v3010 = vsel %vm3007, %v3009, %v3005
        %v3011 = vmul.f32 1.0, %v3010
        %v3012 = vrcp.pop %v2830
        %v3013 = vmul.f32 %v2830, %v3012
        %v3014 = vsub.f32 1.0, %v3013
        %v3015 = vmul.f32 %v3012, %v3014
        %v3016 = vadd.f32 %v3012, %v3015
        %vm3017 = vweird.f32 %v2830
        %vm3018 = vweird.f32 %v3012
        %vm3019 = vmor %vm3017, %vm3018
        %v3020 = vsel %vm3019, %v3012, %v3016
        %v3021 = vand.u32 2147483647, %v2830
        %vm3022 = vcmp.eq.f32.partialorder %v3021, 8.507059e+37
        %v3023 = vand.u32 %v2830, 2147483648
        %v3024 = vor.u32 1.1754944e-38, %v3023
        %v3025 = vsel %vm3022, %v3024, %v3020
        %v3026 = vmul.f32 1.0, %v3025
        %v3027 = vrcp.pop %v2831
        %v3028 = vmul.f32 %v2831, %v3027
        %v3029 = vsub.f32 1.0, %v3028
        %v3030 = vmul.f32 %v3027, %v3029
        %v3031 = vadd.f32 %v3027, %v3030
        %vm3032 = vweird.f32 %v2831
        %vm3033 = vweird.f32 %v3027
        %vm3034 = vmor %vm3032, %vm3033
        %v3035 = vsel %vm3034, %v3027, %v3031
        %v3036 = vand.u32 2147483647, %v2831
        %vm3037 = vcmp.eq.f32.partialorder %v3036, 8.507059e+37
        %v3038 = vand.u32 %v2831, 2147483648
        %v3039 = vor.u32 1.1754944e-38, %v3038
        %v3040 = vsel %vm3037, %v3039, %v3035
        %v3041 = vmul.f32 1.0, %v3040
        %v3042 = vrcp.pop %v2832
        %v3043 = vmul.f32 %v2832, %v3042
        %v3044 = vsub.f32 1.0, %v3043
        %v3045 = vmul.f32 %v3042, %v3044
        %v3046 = vadd.f32 %v3042, %v3045
        %vm3047 = vweird.f32 %v2832
        %vm3048 = vweird.f32 %v3042
        %vm3049 = vmor %vm3047, %vm3048
        %v3050 = vsel %vm3049, %v3042, %v3046
        %v3051 = vand.u32 2147483647, %v2832
        %vm3052 = vcmp.eq.f32.partialorder %v3051, 8.507059e+37
        %v3053 = vand.u32 %v2832, 2147483648
        %v3054 = vor.u32 1.1754944e-38, %v3053
        %v3055 = vsel %vm3052, %v3054, %v3050
        %v3056 = vmul.f32 1.0, %v3055
        %v3057 = vrcp.pop %v2833
        %v3058 = vmul.f32 %v2833, %v3057
        %v3059 = vsub.f32 1.0, %v3058
        %v3060 = vmul.f32 %v3057, %v3059
        %v3061 = vadd.f32 %v3057, %v3060
        %vm3062 = vweird.f32 %v2833
        %vm3063 = vweird.f32 %v3057
        %vm3064 = vmor %vm3062, %vm3063
        %v3065 = vsel %vm3064, %v3057, %v3061
        %v3066 = vand.u32 2147483647, %v2833
        %vm3067 = vcmp.eq.f32.partialorder %v3066, 8.507059e+37
        %v3068 = vand.u32 %v2833, 2147483648
        %v3069 = vor.u32 1.1754944e-38, %v3068
        %v3070 = vsel %vm3067, %v3069, %v3065
        %v3071 = vmul.f32 1.0, %v3070
        %v3072 = vrcp.pop %v2834
        %v3073 = vmul.f32 %v2834, %v3072
        %v3074 = vsub.f32 1.0, %v3073
        %v3075 = vmul.f32 %v3072, %v3074
        %v3076 = vadd.f32 %v3072, %v3075
        %vm3077 = vweird.f32 %v2834
        %vm3078 = vweird.f32 %v3072
        %vm3079 = vmor %vm3077, %vm3078
        %v3080 = vsel %vm3079, %v3072, %v3076
        %v3081 = vand.u32 2147483647, %v2834
        %vm3082 = vcmp.eq.f32.partialorder %v3081, 8.507059e+37
        %v3083 = vand.u32 %v2834, 2147483648
        %v3084 = vor.u32 1.1754944e-38, %v3083
        %v3085 = vsel %vm3082, %v3084, %v3080
        %v3086 = vmul.f32 1.0, %v3085
        %v3087 = vrcp.pop %v2835
        %v3088 = vmul.f32 %v2835, %v3087
        %v3089 = vsub.f32 1.0, %v3088
        %v3090 = vmul.f32 %v3087, %v3089
        %v3091 = vadd.f32 %v3087, %v3090
        %vm3092 = vweird.f32 %v2835
        %vm3093 = vweird.f32 %v3087
        %vm3094 = vmor %vm3092, %vm3093
        %v3095 = vsel %vm3094, %v3087, %v3091
        %v3096 = vand.u32 2147483647, %v2835
        %vm3097 = vcmp.eq.f32.partialorder %v3096, 8.507059e+37
        %v3098 = vand.u32 %v2835, 2147483648
        %v3099 = vor.u32 1.1754944e-38, %v3098
        %v3100 = vsel %vm3097, %v3099, %v3095
        %v3101 = vmul.f32 1.0, %v3100
        %v3102 = vrcp.pop %v2836
        %v3103 = vmul.f32 %v2836, %v3102
        %v3104 = vsub.f32 1.0, %v3103
        %v3105 = vmul.f32 %v3102, %v3104
        %v3106 = vadd.f32 %v3102, %v3105
        %vm3107 = vweird.f32 %v2836
        %vm3108 = vweird.f32 %v3102
        %vm3109 = vmor %vm3107, %vm3108
        %v3110 = vsel %vm3109, %v3102, %v3106
        %v3111 = vand.u32 2147483647, %v2836
        %vm3112 = vcmp.eq.f32.partialorder %v3111, 8.507059e+37
        %v3113 = vand.u32 %v2836, 2147483648
        %v3114 = vor.u32 1.1754944e-38, %v3113
        %v3115 = vsel %vm3112, %v3114, %v3110
        %v3116 = vmul.f32 1.0, %v3115
        %v3117 = vrcp.pop %v2837
        %v3118 = vmul.f32 %v2837, %v3117
        %v3119 = vsub.f32 1.0, %v3118
        %v3120 = vmul.f32 %v3117, %v3119
        %v3121 = vadd.f32 %v3117, %v3120
        %vm3122 = vweird.f32 %v2837
        %vm3123 = vweird.f32 %v3117
        %vm3124 = vmor %vm3122, %vm3123
        %v3125 = vsel %vm3124, %v3117, %v3121
        %v3126 = vand.u32 2147483647, %v2837
        %vm3127 = vcmp.eq.f32.partialorder %v3126, 8.507059e+37
        %v3128 = vand.u32 %v2837, 2147483648
        %v3129 = vor.u32 1.1754944e-38, %v3128
        %v3130 = vsel %vm3127, %v3129, %v3125
        %v3131 = vmul.f32 1.0, %v3130
        %v3132 = vrcp.pop %v2838
        %v3133 = vmul.f32 %v2838, %v3132
        %v3134 = vsub.f32 1.0, %v3133
        %v3135 = vmul.f32 %v3132, %v3134
        %v3136 = vadd.f32 %v3132, %v3135
        %vm3137 = vweird.f32 %v2838
        %vm3138 = vweird.f32 %v3132
        %vm3139 = vmor %vm3137, %vm3138
        %v3140 = vsel %vm3139, %v3132, %v3136
        %v3141 = vand.u32 2147483647, %v2838
        %vm3142 = vcmp.eq.f32.partialorder %v3141, 8.507059e+37
        %v3143 = vand.u32 %v2838, 2147483648
        %v3144 = vor.u32 1.1754944e-38, %v3143
        %v3145 = vsel %vm3142, %v3144, %v3140
        %v3146 = vmul.f32 1.0, %v3145
        %v3147 = vrcp.pop %v2839
        %v3148 = vmul.f32 %v2839, %v3147
        %v3149 = vsub.f32 1.0, %v3148
        %v3150 = vmul.f32 %v3147, %v3149
        %v3151 = vadd.f32 %v3147, %v3150
        %vm3152 = vweird.f32 %v2839
        %vm3153 = vweird.f32 %v3147
        %vm3154 = vmor %vm3152, %vm3153
        %v3155 = vsel %vm3154, %v3147, %v3151
        %v3156 = vand.u32 2147483647, %v2839
        %vm3157 = vcmp.eq.f32.partialorder %v3156, 8.507059e+37
        %v3158 = vand.u32 %v2839, 2147483648
        %v3159 = vor.u32 1.1754944e-38, %v3158
        %v3160 = vsel %vm3157, %v3159, %v3155
        %v3161 = vmul.f32 1.0, %v3160
        %v3162 = vrcp.pop %v2840
        %v3163 = vmul.f32 %v2840, %v3162
        %v3164 = vsub.f32 1.0, %v3163
        %v3165 = vmul.f32 %v3162, %v3164
        %v3166 = vadd.f32 %v3162, %v3165
        %vm3167 = vweird.f32 %v2840
        %vm3168 = vweird.f32 %v3162
        %vm3169 = vmor %vm3167, %vm3168
        %v3170 = vsel %vm3169, %v3162, %v3166
        %v3171 = vand.u32 2147483647, %v2840
        %vm3172 = vcmp.eq.f32.partialorder %v3171, 8.507059e+37
        %v3173 = vand.u32 %v2840, 2147483648
        %v3174 = vor.u32 1.1754944e-38, %v3173
        %v3175 = vsel %vm3172, %v3174, %v3170
        %v3176 = vmul.f32 1.0, %v3175
        %v3177 = vrcp.pop %v2841
        %v3178 = vmul.f32 %v2841, %v3177
        %v3179 = vsub.f32 1.0, %v3178
        %v3180 = vmul.f32 %v3177, %v3179
        %v3181 = vadd.f32 %v3177, %v3180
        %vm3182 = vweird.f32 %v2841
        %vm3183 = vweird.f32 %v3177
        %vm3184 = vmor %vm3182, %vm3183
        %v3185 = vsel %vm3184, %v3177, %v3181
        %v3186 = vand.u32 2147483647, %v2841
        %vm3187 = vcmp.eq.f32.partialorder %v3186, 8.507059e+37
        %v3188 = vand.u32 %v2841, 2147483648
        %v3189 = vor.u32 1.1754944e-38, %v3188
        %v3190 = vsel %vm3187, %v3189, %v3185
        %v3191 = vmul.f32 1.0, %v3190
        %v3192 = vrcp.pop %v2842
        %v3193 = vmul.f32 %v2842, %v3192
        %v3194 = vsub.f32 1.0, %v3193
        %v3195 = vmul.f32 %v3192, %v3194
        %v3196 = vadd.f32 %v3192, %v3195
        %vm3197 = vweird.f32 %v2842
        %vm3198 = vweird.f32 %v3192
        %vm3199 = vmor %vm3197, %vm3198
        %v3200 = vsel %vm3199, %v3192, %v3196
        %v3201 = vand.u32 2147483647, %v2842
        %vm3202 = vcmp.eq.f32.partialorder %v3201, 8.507059e+37
        %v3203 = vand.u32 %v2842, 2147483648
        %v3204 = vor.u32 1.1754944e-38, %v3203
        %v3205 = vsel %vm3202, %v3204, %v3200
        %v3206 = vmul.f32 1.0, %v3205
        %v3207 = vrcp.pop %v2843
        %v3208 = vmul.f32 %v2843, %v3207
        %v3209 = vsub.f32 1.0, %v3208
        %v3210 = vmul.f32 %v3207, %v3209
        %v3211 = vadd.f32 %v3207, %v3210
        %vm3212 = vweird.f32 %v2843
        %vm3213 = vweird.f32 %v3207
        %vm3214 = vmor %vm3212, %vm3213
        %v3215 = vsel %vm3214, %v3207, %v3211
        %v3216 = vand.u32 2147483647, %v2843
        %vm3217 = vcmp.eq.f32.partialorder %v3216, 8.507059e+37
        %v3218 = vand.u32 %v2843, 2147483648
        %v3219 = vor.u32 1.1754944e-38, %v3218
        %v3220 = vsel %vm3217, %v3219, %v3215
        %v3221 = vmul.f32 1.0, %v3220
        %v3222 = vrcp.pop %v2844
        %v3223 = vmul.f32 %v2844, %v3222
        %v3224 = vsub.f32 1.0, %v3223
        %v3225 = vmul.f32 %v3222, %v3224
        %v3226 = vadd.f32 %v3222, %v3225
        %vm3227 = vweird.f32 %v2844
        %vm3228 = vweird.f32 %v3222
        %vm3229 = vmor %vm3227, %vm3228
        %v3230 = vsel %vm3229, %v3222, %v3226
        %v3231 = vand.u32 2147483647, %v2844
        %vm3232 = vcmp.eq.f32.partialorder %v3231, 8.507059e+37
        %v3233 = vand.u32 %v2844, 2147483648
        %v3234 = vor.u32 1.1754944e-38, %v3233
        %v3235 = vsel %vm3232, %v3234, %v3230
        %v3236 = vmul.f32 1.0, %v3235
        %v3237 = vrcp.pop %v2845
        %v3238 = vmul.f32 %v2845, %v3237
        %v3239 = vsub.f32 1.0, %v3238
        %v3240 = vmul.f32 %v3237, %v3239
        %v3241 = vadd.f32 %v3237, %v3240
        %vm3242 = vweird.f32 %v2845
        %vm3243 = vweird.f32 %v3237
        %vm3244 = vmor %vm3242, %vm3243
        %v3245 = vsel %vm3244, %v3237, %v3241
        %v3246 = vand.u32 2147483647, %v2845
        %vm3247 = vcmp.eq.f32.partialorder %v3246, 8.507059e+37
        %v3248 = vand.u32 %v2845, 2147483648
        %v3249 = vor.u32 1.1754944e-38, %v3248
        %v3250 = vsel %vm3247, %v3249, %v3245
        %v3251 = vmul.f32 1.0, %v3250
        %v3252 = vrcp.pop %v2846
        %v3253 = vmul.f32 %v2846, %v3252
        %v3254 = vsub.f32 1.0, %v3253
        %v3255 = vmul.f32 %v3252, %v3254
        %v3256 = vadd.f32 %v3252, %v3255
        %vm3257 = vweird.f32 %v2846
        %vm3258 = vweird.f32 %v3252
        %vm3259 = vmor %vm3257, %vm3258
        %v3260 = vsel %vm3259, %v3252, %v3256
        %v3261 = vand.u32 2147483647, %v2846
        %vm3262 = vcmp.eq.f32.partialorder %v3261, 8.507059e+37
        %v3263 = vand.u32 %v2846, 2147483648
        %v3264 = vor.u32 1.1754944e-38, %v3263
        %v3265 = vsel %vm3262, %v3264, %v3260
        %v3266 = vmul.f32 1.0, %v3265
        %v3267 = vrcp.pop %v2847
        %v3268 = vmul.f32 %v2847, %v3267
        %v3269 = vsub.f32 1.0, %v3268
        %v3270 = vmul.f32 %v3267, %v3269
        %v3271 = vadd.f32 %v3267, %v3270
        %vm3272 = vweird.f32 %v2847
        %vm3273 = vweird.f32 %v3267
        %vm3274 = vmor %vm3272, %vm3273
        %v3275 = vsel %vm3274, %v3267, %v3271
        %v3276 = vand.u32 2147483647, %v2847
        %vm3277 = vcmp.eq.f32.partialorder %v3276, 8.507059e+37
        %v3278 = vand.u32 %v2847, 2147483648
        %v3279 = vor.u32 1.1754944e-38, %v3278
        %v3280 = vsel %vm3277, %v3279, %v3275
        %v3281 = vmul.f32 1.0, %v3280
        %v3282 = vrcp.pop %v2848
        %v3283 = vmul.f32 %v2848, %v3282
        %v3284 = vsub.f32 1.0, %v3283
        %v3285 = vmul.f32 %v3282, %v3284
        %v3286 = vadd.f32 %v3282, %v3285
        %vm3287 = vweird.f32 %v2848
        %vm3288 = vweird.f32 %v3282
        %vm3289 = vmor %vm3287, %vm3288
        %v3290 = vsel %vm3289, %v3282, %v3286
        %v3291 = vand.u32 2147483647, %v2848
        %vm3292 = vcmp.eq.f32.partialorder %v3291, 8.507059e+37
        %v3293 = vand.u32 %v2848, 2147483648
        %v3294 = vor.u32 1.1754944e-38, %v3293
        %v3295 = vsel %vm3292, %v3294, %v3290
        %v3296 = vmul.f32 1.0, %v3295
        %v3297 = vrcp.pop %v2849
        %v3298 = vmul.f32 %v2849, %v3297
        %v3299 = vsub.f32 1.0, %v3298
        %v3300 = vmul.f32 %v3297, %v3299
        %v3301 = vadd.f32 %v3297, %v3300
        %vm3302 = vweird.f32 %v2849
        %vm3303 = vweird.f32 %v3297
        %vm3304 = vmor %vm3302, %vm3303
        %v3305 = vsel %vm3304, %v3297, %v3301
        %v3306 = vand.u32 2147483647, %v2849
        %vm3307 = vcmp.eq.f32.partialorder %v3306, 8.507059e+37
        %v3308 = vand.u32 %v2849, 2147483648
        %v3309 = vor.u32 1.1754944e-38, %v3308
        %v3310 = vsel %vm3307, %v3309, %v3305
        %v3311 = vmul.f32 1.0, %v3310
        %v3312 = vrcp.pop %v2850
        %v3313 = vmul.f32 %v2850, %v3312
        %v3314 = vsub.f32 1.0, %v3313
        %v3315 = vmul.f32 %v3312, %v3314
        %v3316 = vadd.f32 %v3312, %v3315
        %vm3317 = vweird.f32 %v2850
        %vm3318 = vweird.f32 %v3312
        %vm3319 = vmor %vm3317, %vm3318
        %v3320 = vsel %vm3319, %v3312, %v3316
        %v3321 = vand.u32 2147483647, %v2850
        %vm3322 = vcmp.eq.f32.partialorder %v3321, 8.507059e+37
        %v3323 = vand.u32 %v2850, 2147483648
        %v3324 = vor.u32 1.1754944e-38, %v3323
        %v3325 = vsel %vm3322, %v3324, %v3320
        %v3326 = vmul.f32 1.0, %v3325
        %v3327 = vrcp.pop %v2851
        %v3328 = vmul.f32 %v2851, %v3327
        %v3329 = vsub.f32 1.0, %v3328
        %v3330 = vmul.f32 %v3327, %v3329
        %v3331 = vadd.f32 %v3327, %v3330
        %vm3332 = vweird.f32 %v2851
        %vm3333 = vweird.f32 %v3327
        %vm3334 = vmor %vm3332, %vm3333
        %v3335 = vsel %vm3334, %v3327, %v3331
        %v3336 = vand.u32 2147483647, %v2851
        %vm3337 = vcmp.eq.f32.partialorder %v3336, 8.507059e+37
        %v3338 = vand.u32 %v2851, 2147483648
        %v3339 = vor.u32 1.1754944e-38, %v3338
        %v3340 = vsel %vm3337, %v3339, %v3335
        %v3341 = vmul.f32 1.0, %v3340
        %v3342 = vrcp.pop %v2852
        %v3343 = vmul.f32 %v2852, %v3342
        %v3344 = vsub.f32 1.0, %v3343
        %v3345 = vmul.f32 %v3342, %v3344
        %v3346 = vadd.f32 %v3342, %v3345
        %vm3347 = vweird.f32 %v2852
        %vm3348 = vweird.f32 %v3342
        %vm3349 = vmor %vm3347, %vm3348
        %v3350 = vsel %vm3349, %v3342, %v3346
        %v3351 = vand.u32 2147483647, %v2852
        %vm3352 = vcmp.eq.f32.partialorder %v3351, 8.507059e+37
        %v3353 = vand.u32 %v2852, 2147483648
        %v3354 = vor.u32 1.1754944e-38, %v3353
        %v3355 = vsel %vm3352, %v3354, %v3350
        %v3356 = vmul.f32 1.0, %v3355
        %v3357 = vrcp.pop %v2853
        %v3358 = vmul.f32 %v2853, %v3357
        %v3359 = vsub.f32 1.0, %v3358
        %v3360 = vmul.f32 %v3357, %v3359
        %v3361 = vadd.f32 %v3357, %v3360
        %vm3362 = vweird.f32 %v2853
        %vm3363 = vweird.f32 %v3357
        %vm3364 = vmor %vm3362, %vm3363
        %v3365 = vsel %vm3364, %v3357, %v3361
        %v3366 = vand.u32 2147483647, %v2853
        %vm3367 = vcmp.eq.f32.partialorder %v3366, 8.507059e+37
        %v3368 = vand.u32 %v2853, 2147483648
        %v3369 = vor.u32 1.1754944e-38, %v3368
        %v3370 = vsel %vm3367, %v3369, %v3365
        %v3371 = vmul.f32 1.0, %v3370
        %v3372 = vrcp.pop %v2854
        %v3373 = vmul.f32 %v2854, %v3372
        %v3374 = vsub.f32 1.0, %v3373
        %v3375 = vmul.f32 %v3372, %v3374
        %v3376 = vadd.f32 %v3372, %v3375
        %vm3377 = vweird.f32 %v2854
        %vm3378 = vweird.f32 %v3372
        %vm3379 = vmor %vm3377, %vm3378
        %v3380 = vsel %vm3379, %v3372, %v3376
        %v3381 = vand.u32 2147483647, %v2854
        %vm3382 = vcmp.eq.f32.partialorder %v3381, 8.507059e+37
        %v3383 = vand.u32 %v2854, 2147483648
        %v3384 = vor.u32 1.1754944e-38, %v3383
        %v3385 = vsel %vm3382, %v3384, %v3380
        %v3386 = vmul.f32 1.0, %v3385
        %v3387 = vrcp.pop %v2855
        %v3388 = vmul.f32 %v2855, %v3387
        %v3389 = vsub.f32 1.0, %v3388
        %v3390 = vmul.f32 %v3387, %v3389
        %v3391 = vadd.f32 %v3387, %v3390
        %vm3392 = vweird.f32 %v2855
        %vm3393 = vweird.f32 %v3387
        %vm3394 = vmor %vm3392, %vm3393
        %v3395 = vsel %vm3394, %v3387, %v3391
        %v3396 = vand.u32 2147483647, %v2855
        %vm3397 = vcmp.eq.f32.partialorder %v3396, 8.507059e+37
        %v3398 = vand.u32 %v2855, 2147483648
        %v3399 = vor.u32 1.1754944e-38, %v3398
        %v3400 = vsel %vm3397, %v3399, %v3395
        %v3401 = vmul.f32 1.0, %v3400
        %v3402 = vrcp.pop %v2856
        %v3403 = vmul.f32 %v2856, %v3402
        %v3404 = vsub.f32 1.0, %v3403
        %v3405 = vmul.f32 %v3402, %v3404
        %v3406 = vadd.f32 %v3402, %v3405
        %vm3407 = vweird.f32 %v2856
        %vm3408 = vweird.f32 %v3402
        %vm3409 = vmor %vm3407, %vm3408
        %v3410 = vsel %vm3409, %v3402, %v3406
        %v3411 = vand.u32 2147483647, %v2856
        %vm3412 = vcmp.eq.f32.partialorder %v3411, 8.507059e+37
        %v3413 = vand.u32 %v2856, 2147483648
        %v3414 = vor.u32 1.1754944e-38, %v3413
        %v3415 = vsel %vm3412, %v3414, %v3410
        %v3416 = vmul.f32 1.0, %v3415
        %v3417 = vrcp.pop %v2857
        %v3418 = vmul.f32 %v2857, %v3417
        %v3419 = vsub.f32 1.0, %v3418
        %v3420 = vmul.f32 %v3417, %v3419
        %v3421 = vadd.f32 %v3417, %v3420
        %vm3422 = vweird.f32 %v2857
        %vm3423 = vweird.f32 %v3417
        %vm3424 = vmor %vm3422, %vm3423
        %v3425 = vsel %vm3424, %v3417, %v3421
        %v3426 = vand.u32 2147483647, %v2857
        %vm3427 = vcmp.eq.f32.partialorder %v3426, 8.507059e+37
        %v3428 = vand.u32 %v2857, 2147483648
        %v3429 = vor.u32 1.1754944e-38, %v3428
        %v3430 = vsel %vm3427, %v3429, %v3425
        %v3431 = vmul.f32 1.0, %v3430
        %v3432 = vrcp.pop %v2858
        %v3433 = vmul.f32 %v2858, %v3432
        %v3434 = vsub.f32 1.0, %v3433
        %v3435 = vmul.f32 %v3432, %v3434
        %v3436 = vadd.f32 %v3432, %v3435
        %vm3437 = vweird.f32 %v2858
        %vm3438 = vweird.f32 %v3432
        %vm3439 = vmor %vm3437, %vm3438
        %v3440 = vsel %vm3439, %v3432, %v3436
        %v3441 = vand.u32 2147483647, %v2858
        %vm3442 = vcmp.eq.f32.partialorder %v3441, 8.507059e+37
        %v3443 = vand.u32 %v2858, 2147483648
        %v3444 = vor.u32 1.1754944e-38, %v3443
        %v3445 = vsel %vm3442, %v3444, %v3440
        %v3446 = vmul.f32 1.0, %v3445
        %v3447 = vrcp.pop %v2859
        %v3448 = vmul.f32 %v2859, %v3447
        %v3449 = vsub.f32 1.0, %v3448
        %v3450 = vmul.f32 %v3447, %v3449
        %v3451 = vadd.f32 %v3447, %v3450
        %vm3452 = vweird.f32 %v2859
        %vm3453 = vweird.f32 %v3447
        %vm3454 = vmor %vm3452, %vm3453
        %v3455 = vsel %vm3454, %v3447, %v3451
        %v3456 = vand.u32 2147483647, %v2859
        %vm3457 = vcmp.eq.f32.partialorder %v3456, 8.507059e+37
        %v3458 = vand.u32 %v2859, 2147483648
        %v3459 = vor.u32 1.1754944e-38, %v3458
        %v3460 = vsel %vm3457, %v3459, %v3455
        %v3461 = vmul.f32 1.0, %v3460
        %v3462 = vrcp.pop %v2860
        %v3463 = vmul.f32 %v2860, %v3462
        %v3464 = vsub.f32 1.0, %v3463
        %v3465 = vmul.f32 %v3462, %v3464
        %v3466 = vadd.f32 %v3462, %v3465
        %vm3467 = vweird.f32 %v2860
        %vm3468 = vweird.f32 %v3462
        %vm3469 = vmor %vm3467, %vm3468
        %v3470 = vsel %vm3469, %v3462, %v3466
        %v3471 = vand.u32 2147483647, %v2860
        %vm3472 = vcmp.eq.f32.partialorder %v3471, 8.507059e+37
        %v3473 = vand.u32 %v2860, 2147483648
        %v3474 = vor.u32 1.1754944e-38, %v3473
        %v3475 = vsel %vm3472, %v3474, %v3470
        %v3476 = vmul.f32 1.0, %v3475
        %v3477 = vrcp.pop %v2861
        %v3478 = vmul.f32 %v2861, %v3477
        %v3479 = vsub.f32 1.0, %v3478
        %v3480 = vmul.f32 %v3477, %v3479
        %v3481 = vadd.f32 %v3477, %v3480
        %vm3482 = vweird.f32 %v2861
        %vm3483 = vweird.f32 %v3477
        %vm3484 = vmor %vm3482, %vm3483
        %v3485 = vsel %vm3484, %v3477, %v3481
        %v3486 = vand.u32 2147483647, %v2861
        %vm3487 = vcmp.eq.f32.partialorder %v3486, 8.507059e+37
        %v3488 = vand.u32 %v2861, 2147483648
        %v3489 = vor.u32 1.1754944e-38, %v3488
        %v3490 = vsel %vm3487, %v3489, %v3485
        %v3491 = vmul.f32 1.0, %v3490
        %v3492 = vrcp.pop %v2862
        %v3493 = vmul.f32 %v2862, %v3492
        %v3494 = vsub.f32 1.0, %v3493
        %v3495 = vmul.f32 %v3492, %v3494
        %v3496 = vadd.f32 %v3492, %v3495
        %vm3497 = vweird.f32 %v2862
        %vm3498 = vweird.f32 %v3492
        %vm3499 = vmor %vm3497, %vm3498
        %v3500 = vsel %vm3499, %v3492, %v3496
        %v3501 = vand.u32 2147483647, %v2862
        %vm3502 = vcmp.eq.f32.partialorder %v3501, 8.507059e+37
        %v3503 = vand.u32 %v2862, 2147483648
        %v3504 = vor.u32 1.1754944e-38, %v3503
        %v3505 = vsel %vm3502, %v3504, %v3500
        %v3506 = vmul.f32 1.0, %v3505
        %v3507 = vrcp.pop %v2863
        %v3508 = vmul.f32 %v2863, %v3507
        %v3509 = vsub.f32 1.0, %v3508
        %v3510 = vmul.f32 %v3507, %v3509
        %v3511 = vadd.f32 %v3507, %v3510
        %vm3512 = vweird.f32 %v2863
        %vm3513 = vweird.f32 %v3507
        %vm3514 = vmor %vm3512, %vm3513
        %v3515 = vsel %vm3514, %v3507, %v3511
        %v3516 = vand.u32 2147483647, %v2863
        %vm3517 = vcmp.eq.f32.partialorder %v3516, 8.507059e+37
        %v3518 = vand.u32 %v2863, 2147483648
        %v3519 = vor.u32 1.1754944e-38, %v3518
        %v3520 = vsel %vm3517, %v3519, %v3515
        %v3521 = vmul.f32 1.0, %v3520
        %v3522 = vrcp.pop %v2864
        %v3523 = vmul.f32 %v2864, %v3522
        %v3524 = vsub.f32 1.0, %v3523
        %v3525 = vmul.f32 %v3522, %v3524
        %v3526 = vadd.f32 %v3522, %v3525
        %vm3527 = vweird.f32 %v2864
        %vm3528 = vweird.f32 %v3522
        %vm3529 = vmor %vm3527, %vm3528
        %v3530 = vsel %vm3529, %v3522, %v3526
        %v3531 = vand.u32 2147483647, %v2864
        %vm3532 = vcmp.eq.f32.partialorder %v3531, 8.507059e+37
        %v3533 = vand.u32 %v2864, 2147483648
        %v3534 = vor.u32 1.1754944e-38, %v3533
        %v3535 = vsel %vm3532, %v3534, %v3530
        %v3536 = vmul.f32 1.0, %v3535
        %v3537 = vrcp.pop %v2865
        %v3538 = vmul.f32 %v2865, %v3537
        %v3539 = vsub.f32 1.0, %v3538
        %v3540 = vmul.f32 %v3537, %v3539
        %v3541 = vadd.f32 %v3537, %v3540
        %vm3542 = vweird.f32 %v2865
        %vm3543 = vweird.f32 %v3537
        %vm3544 = vmor %vm3542, %vm3543
        %v3545 = vsel %vm3544, %v3537, %v3541
        %v3546 = vand.u32 2147483647, %v2865
        %vm3547 = vcmp.eq.f32.partialorder %v3546, 8.507059e+37
        %v3548 = vand.u32 %v2865, 2147483648
        %v3549 = vor.u32 1.1754944e-38, %v3548
        %v3550 = vsel %vm3547, %v3549, %v3545
        %v3551 = vmul.f32 1.0, %v3550
        %v3552 = vrcp.pop %v2866
        %v3553 = vmul.f32 %v2866, %v3552
        %v3554 = vsub.f32 1.0, %v3553
        %v3555 = vmul.f32 %v3552, %v3554
        %v3556 = vadd.f32 %v3552, %v3555
        %vm3557 = vweird.f32 %v2866
        %vm3558 = vweird.f32 %v3552
        %vm3559 = vmor %vm3557, %vm3558
        %v3560 = vsel %vm3559, %v3552, %v3556
        %v3561 = vand.u32 2147483647, %v2866
        %vm3562 = vcmp.eq.f32.partialorder %v3561, 8.507059e+37
        %v3563 = vand.u32 %v2866, 2147483648
        %v3564 = vor.u32 1.1754944e-38, %v3563
        %v3565 = vsel %vm3562, %v3564, %v3560
        %v3566 = vmul.f32 1.0, %v3565
        %v3567 = vrcp.pop %v2867
        %v3568 = vmul.f32 %v2867, %v3567
        %v3569 = vsub.f32 1.0, %v3568
        %v3570 = vmul.f32 %v3567, %v3569
        %v3571 = vadd.f32 %v3567, %v3570
        %vm3572 = vweird.f32 %v2867
        %vm3573 = vweird.f32 %v3567
        %vm3574 = vmor %vm3572, %vm3573
        %v3575 = vsel %vm3574, %v3567, %v3571
        %v3576 = vand.u32 2147483647, %v2867
        %vm3577 = vcmp.eq.f32.partialorder %v3576, 8.507059e+37
        %v3578 = vand.u32 %v2867, 2147483648
        %v3579 = vor.u32 1.1754944e-38, %v3578
        %v3580 = vsel %vm3577, %v3579, %v3575
        %v3581 = vmul.f32 1.0, %v3580
        %v3582 = vrcp.pop %v2868
        %v3583 = vmul.f32 %v2868, %v3582
        %v3584 = vsub.f32 1.0, %v3583
        %v3585 = vmul.f32 %v3582, %v3584
        %v3586 = vadd.f32 %v3582, %v3585
        %vm3587 = vweird.f32 %v2868
        %vm3588 = vweird.f32 %v3582
        %vm3589 = vmor %vm3587, %vm3588
        %v3590 = vsel %vm3589, %v3582, %v3586
        %v3591 = vand.u32 2147483647, %v2868
        %vm3592 = vcmp.eq.f32.partialorder %v3591, 8.507059e+37
        %v3593 = vand.u32 %v2868, 2147483648
        %v3594 = vor.u32 1.1754944e-38, %v3593
        %v3595 = vsel %vm3592, %v3594, %v3590
        %v3596 = vmul.f32 1.0, %v3595
        %v3597 = vrcp.pop %v2869
        %v3598 = vmul.f32 %v2869, %v3597
        %v3599 = vsub.f32 1.0, %v3598
        %v3600 = vmul.f32 %v3597, %v3599
        %v3601 = vadd.f32 %v3597, %v3600
        %vm3602 = vweird.f32 %v2869
        %vm3603 = vweird.f32 %v3597
        %vm3604 = vmor %vm3602, %vm3603
        %v3605 = vsel %vm3604, %v3597, %v3601
        %v3606 = vand.u32 2147483647, %v2869
        %vm3607 = vcmp.eq.f32.partialorder %v3606, 8.507059e+37
        %v3608 = vand.u32 %v2869, 2147483648
        %v3609 = vor.u32 1.1754944e-38, %v3608
        %v3610 = vsel %vm3607, %v3609, %v3605
        %v3611 = vmul.f32 1.0, %v3610
        %v3612 = vrcp.pop %v2870
        %v3613 = vmul.f32 %v2870, %v3612
        %v3614 = vsub.f32 1.0, %v3613
        %v3615 = vmul.f32 %v3612, %v3614
        %v3616 = vadd.f32 %v3612, %v3615
        %vm3617 = vweird.f32 %v2870
        %vm3618 = vweird.f32 %v3612
        %vm3619 = vmor %vm3617, %vm3618
        %v3620 = vsel %vm3619, %v3612, %v3616
        %v3621 = vand.u32 2147483647, %v2870
        %vm3622 = vcmp.eq.f32.partialorder %v3621, 8.507059e+37
        %v3623 = vand.u32 %v2870, 2147483648
        %v3624 = vor.u32 1.1754944e-38, %v3623
        %v3625 = vsel %vm3622, %v3624, %v3620
        %v3626 = vmul.f32 1.0, %v3625
        %v3627 = vrcp.pop %v2871
        %v3628 = vmul.f32 %v2871, %v3627
        %v3629 = vsub.f32 1.0, %v3628
        %v3630 = vmul.f32 %v3627, %v3629
        %v3631 = vadd.f32 %v3627, %v3630
        %vm3632 = vweird.f32 %v2871
        %vm3633 = vweird.f32 %v3627
        %vm3634 = vmor %vm3632, %vm3633
        %v3635 = vsel %vm3634, %v3627, %v3631
        %v3636 = vand.u32 2147483647, %v2871
        %vm3637 = vcmp.eq.f32.partialorder %v3636, 8.507059e+37
        %v3638 = vand.u32 %v2871, 2147483648
        %v3639 = vor.u32 1.1754944e-38, %v3638
        %v3640 = vsel %vm3637, %v3639, %v3635
        %v3641 = vmul.f32 1.0, %v3640
        %v3642 = vrcp.pop %v2872
        %v3643 = vmul.f32 %v2872, %v3642
        %v3644 = vsub.f32 1.0, %v3643
        %v3645 = vmul.f32 %v3642, %v3644
        %v3646 = vadd.f32 %v3642, %v3645
        %vm3647 = vweird.f32 %v2872
        %vm3648 = vweird.f32 %v3642
        %vm3649 = vmor %vm3647, %vm3648
        %v3650 = vsel %vm3649, %v3642, %v3646
        %v3651 = vand.u32 2147483647, %v2872
        %vm3652 = vcmp.eq.f32.partialorder %v3651, 8.507059e+37
        %v3653 = vand.u32 %v2872, 2147483648
        %v3654 = vor.u32 1.1754944e-38, %v3653
        %v3655 = vsel %vm3652, %v3654, %v3650
        %v3656 = vmul.f32 1.0, %v3655
        %v3657 = vrcp.pop %v2873
        %v3658 = vmul.f32 %v2873, %v3657
        %v3659 = vsub.f32 1.0, %v3658
        %v3660 = vmul.f32 %v3657, %v3659
        %v3661 = vadd.f32 %v3657, %v3660
        %vm3662 = vweird.f32 %v2873
        %vm3663 = vweird.f32 %v3657
        %vm3664 = vmor %vm3662, %vm3663
        %v3665 = vsel %vm3664, %v3657, %v3661
        %v3666 = vand.u32 2147483647, %v2873
        %vm3667 = vcmp.eq.f32.partialorder %v3666, 8.507059e+37
        %v3668 = vand.u32 %v2873, 2147483648
        %v3669 = vor.u32 1.1754944e-38, %v3668
        %v3670 = vsel %vm3667, %v3669, %v3665
        %v3671 = vmul.f32 1.0, %v3670
        %v3672 = vrcp.pop %v2874
        %v3673 = vmul.f32 %v2874, %v3672
        %v3674 = vsub.f32 1.0, %v3673
        %v3675 = vmul.f32 %v3672, %v3674
        %v3676 = vadd.f32 %v3672, %v3675
        %vm3677 = vweird.f32 %v2874
        %vm3678 = vweird.f32 %v3672
        %vm3679 = vmor %vm3677, %vm3678
        %v3680 = vsel %vm3679, %v3672, %v3676
        %v3681 = vand.u32 2147483647, %v2874
        %vm3682 = vcmp.eq.f32.partialorder %v3681, 8.507059e+37
        %v3683 = vand.u32 %v2874, 2147483648
        %v3684 = vor.u32 1.1754944e-38, %v3683
        %v3685 = vsel %vm3682, %v3684, %v3680
        %v3686 = vmul.f32 1.0, %v3685
        %v3687 = vrcp.pop %v2875
        %v3688 = vmul.f32 %v2875, %v3687
        %v3689 = vsub.f32 1.0, %v3688
        %v3690 = vmul.f32 %v3687, %v3689
        %v3691 = vadd.f32 %v3687, %v3690
        %vm3692 = vweird.f32 %v2875
        %vm3693 = vweird.f32 %v3687
        %vm3694 = vmor %vm3692, %vm3693
        %v3695 = vsel %vm3694, %v3687, %v3691
        %v3696 = vand.u32 2147483647, %v2875
        %vm3697 = vcmp.eq.f32.partialorder %v3696, 8.507059e+37
        %v3698 = vand.u32 %v2875, 2147483648
        %v3699 = vor.u32 1.1754944e-38, %v3698
        %v3700 = vsel %vm3697, %v3699, %v3695
        %v3701 = vmul.f32 1.0, %v3700
        %v3702 = vrcp.pop %v2876
        %v3703 = vmul.f32 %v2876, %v3702
        %v3704 = vsub.f32 1.0, %v3703
        %v3705 = vmul.f32 %v3702, %v3704
        %v3706 = vadd.f32 %v3702, %v3705
        %vm3707 = vweird.f32 %v2876
        %vm3708 = vweird.f32 %v3702
        %vm3709 = vmor %vm3707, %vm3708
        %v3710 = vsel %vm3709, %v3702, %v3706
        %v3711 = vand.u32 2147483647, %v2876
        %vm3712 = vcmp.eq.f32.partialorder %v3711, 8.507059e+37
        %v3713 = vand.u32 %v2876, 2147483648
        %v3714 = vor.u32 1.1754944e-38, %v3713
        %v3715 = vsel %vm3712, %v3714, %v3710
        %v3716 = vmul.f32 1.0, %v3715
        %v3717 = vrcp.pop %v2877
        %v3718 = vmul.f32 %v2877, %v3717
        %v3719 = vsub.f32 1.0, %v3718
        %v3720 = vmul.f32 %v3717, %v3719
        %v3721 = vadd.f32 %v3717, %v3720
        %vm3722 = vweird.f32 %v2877
        %vm3723 = vweird.f32 %v3717
        %vm3724 = vmor %vm3722, %vm3723
        %v3725 = vsel %vm3724, %v3717, %v3721
        %v3726 = vand.u32 2147483647, %v2877
        %vm3727 = vcmp.eq.f32.partialorder %v3726, 8.507059e+37
        %v3728 = vand.u32 %v2877, 2147483648
        %v3729 = vor.u32 1.1754944e-38, %v3728
        %v3730 = vsel %vm3727, %v3729, %v3725
        %v3731 = vmul.f32 1.0, %v3730
        %v3732 = vrcp.pop %v2878
        %v3733 = vmul.f32 %v2878, %v3732
        %v3734 = vsub.f32 1.0, %v3733
        %v3735 = vmul.f32 %v3732, %v3734
        %v3736 = vadd.f32 %v3732, %v3735
        %vm3737 = vweird.f32 %v2878
        %vm3738 = vweird.f32 %v3732
        %vm3739 = vmor %vm3737, %vm3738
        %v3740 = vsel %vm3739, %v3732, %v3736
        %v3741 = vand.u32 2147483647, %v2878
        %vm3742 = vcmp.eq.f32.partialorder %v3741, 8.507059e+37
        %v3743 = vand.u32 %v2878, 2147483648
        %v3744 = vor.u32 1.1754944e-38, %v3743
        %v3745 = vsel %vm3742, %v3744, %v3740
        %v3746 = vmul.f32 1.0, %v3745
        %v3747 = vrcp.pop %v2879
        %v3748 = vmul.f32 %v2879, %v3747
        %v3749 = vsub.f32 1.0, %v3748
        %v3750 = vmul.f32 %v3747, %v3749
        %v3751 = vadd.f32 %v3747, %v3750
        %vm3752 = vweird.f32 %v2879
        %vm3753 = vweird.f32 %v3747
        %vm3754 = vmor %vm3752, %vm3753
        %v3755 = vsel %vm3754, %v3747, %v3751
        %v3756 = vand.u32 2147483647, %v2879
        %vm3757 = vcmp.eq.f32.partialorder %v3756, 8.507059e+37
        %v3758 = vand.u32 %v2879, 2147483648
        %v3759 = vor.u32 1.1754944e-38, %v3758
        %v3760 = vsel %vm3757, %v3759, %v3755
        %v3761 = vmul.f32 1.0, %v3760
        %v3762 = vrcp.pop %v2880
        %v3763 = vmul.f32 %v2880, %v3762
        %v3764 = vsub.f32 1.0, %v3763
        %v3765 = vmul.f32 %v3762, %v3764
        %v3766 = vadd.f32 %v3762, %v3765
        %vm3767 = vweird.f32 %v2880
        %vm3768 = vweird.f32 %v3762
        %vm3769 = vmor %vm3767, %vm3768
        %v3770 = vsel %vm3769, %v3762, %v3766
        %v3771 = vand.u32 2147483647, %v2880
        %vm3772 = vcmp.eq.f32.partialorder %v3771, 8.507059e+37
        %v3773 = vand.u32 %v2880, 2147483648
        %v3774 = vor.u32 1.1754944e-38, %v3773
        %v3775 = vsel %vm3772, %v3774, %v3770
        %v3776 = vmul.f32 1.0, %v3775
        %v3777 = vrcp.pop %v2881
        %v3778 = vmul.f32 %v2881, %v3777
        %v3779 = vsub.f32 1.0, %v3778
        %v3780 = vmul.f32 %v3777, %v3779
        %v3781 = vadd.f32 %v3777, %v3780
        %vm3782 = vweird.f32 %v2881
        %vm3783 = vweird.f32 %v3777
        %vm3784 = vmor %vm3782, %vm3783
        %v3785 = vsel %vm3784, %v3777, %v3781
        %v3786 = vand.u32 2147483647, %v2881
        %vm3787 = vcmp.eq.f32.partialorder %v3786, 8.507059e+37
        %v3788 = vand.u32 %v2881, 2147483648
        %v3789 = vor.u32 1.1754944e-38, %v3788
        %v3790 = vsel %vm3787, %v3789, %v3785
        %v3791 = vmul.f32 1.0, %v3790
        %v3792 = vrcp.pop %v2882
        %v3793 = vmul.f32 %v2882, %v3792
        %v3794 = vsub.f32 1.0, %v3793
        %v3795 = vmul.f32 %v3792, %v3794
        %v3796 = vadd.f32 %v3792, %v3795
        %vm3797 = vweird.f32 %v2882
        %vm3798 = vweird.f32 %v3792
        %vm3799 = vmor %vm3797, %vm3798
        %v3800 = vsel %vm3799, %v3792, %v3796
        %v3801 = vand.u32 2147483647, %v2882
        %vm3802 = vcmp.eq.f32.partialorder %v3801, 8.507059e+37
        %v3803 = vand.u32 %v2882, 2147483648
        %v3804 = vor.u32 1.1754944e-38, %v3803
        %v3805 = vsel %vm3802, %v3804, %v3800
        %v3806 = vmul.f32 1.0, %v3805
        %v3807 = vrcp.pop %v2883
        %v3808 = vmul.f32 %v2883, %v3807
        %v3809 = vsub.f32 1.0, %v3808
        %v3810 = vmul.f32 %v3807, %v3809
        %v3811 = vadd.f32 %v3807, %v3810
        %vm3812 = vweird.f32 %v2883
        %vm3813 = vweird.f32 %v3807
        %vm3814 = vmor %vm3812, %vm3813
        %v3815 = vsel %vm3814, %v3807, %v3811
        %v3816 = vand.u32 2147483647, %v2883
        %vm3817 = vcmp.eq.f32.partialorder %v3816, 8.507059e+37
        %v3818 = vand.u32 %v2883, 2147483648
        %v3819 = vor.u32 1.1754944e-38, %v3818
        %v3820 = vsel %vm3817, %v3819, %v3815
        %v3821 = vmul.f32 1.0, %v3820
        %v3822 = vrcp.pop %v2884
        %v3823 = vmul.f32 %v2884, %v3822
        %v3824 = vsub.f32 1.0, %v3823
        %v3825 = vmul.f32 %v3822, %v3824
        %v3826 = vadd.f32 %v3822, %v3825
        %vm3827 = vweird.f32 %v2884
        %vm3828 = vweird.f32 %v3822
        %vm3829 = vmor %vm3827, %vm3828
        %v3830 = vsel %vm3829, %v3822, %v3826
        %v3831 = vand.u32 2147483647, %v2884
        %vm3832 = vcmp.eq.f32.partialorder %v3831, 8.507059e+37
        %v3833 = vand.u32 %v2884, 2147483648
        %v3834 = vor.u32 1.1754944e-38, %v3833
        %v3835 = vsel %vm3832, %v3834, %v3830
        %v3836 = vmul.f32 1.0, %v3835
        %v3837 = vrcp.pop %v2885
        %v3838 = vmul.f32 %v2885, %v3837
        %v3839 = vsub.f32 1.0, %v3838
        %v3840 = vmul.f32 %v3837, %v3839
        %v3841 = vadd.f32 %v3837, %v3840
        %vm3842 = vweird.f32 %v2885
        %vm3843 = vweird.f32 %v3837
        %vm3844 = vmor %vm3842, %vm3843
        %v3845 = vsel %vm3844, %v3837, %v3841
        %v3846 = vand.u32 2147483647, %v2885
        %vm3847 = vcmp.eq.f32.partialorder %v3846, 8.507059e+37
        %v3848 = vand.u32 %v2885, 2147483648
        %v3849 = vor.u32 1.1754944e-38, %v3848
        %v3850 = vsel %vm3847, %v3849, %v3845
        %v3851 = vmul.f32 1.0, %v3850
        %v3852 = vrcp.pop %v2886
        %v3853 = vmul.f32 %v2886, %v3852
        %v3854 = vsub.f32 1.0, %v3853
        %v3855 = vmul.f32 %v3852, %v3854
        %v3856 = vadd.f32 %v3852, %v3855
        %vm3857 = vweird.f32 %v2886
        %vm3858 = vweird.f32 %v3852
        %vm3859 = vmor %vm3857, %vm3858
        %v3860 = vsel %vm3859, %v3852, %v3856
        %v3861 = vand.u32 2147483647, %v2886
        %vm3862 = vcmp.eq.f32.partialorder %v3861, 8.507059e+37
        %v3863 = vand.u32 %v2886, 2147483648
        %v3864 = vor.u32 1.1754944e-38, %v3863
        %v3865 = vsel %vm3862, %v3864, %v3860
        %v3866 = vmul.f32 1.0, %v3865
        %v3867 = vrcp.pop %v2887
        %v3868 = vmul.f32 %v2887, %v3867
        %v3869 = vsub.f32 1.0, %v3868
        %v3870 = vmul.f32 %v3867, %v3869
        %v3871 = vadd.f32 %v3867, %v3870
        %vm3872 = vweird.f32 %v2887
        %vm3873 = vweird.f32 %v3867
        %vm3874 = vmor %vm3872, %vm3873
        %v3875 = vsel %vm3874, %v3867, %v3871
        %v3876 = vand.u32 2147483647, %v2887
        %vm3877 = vcmp.eq.f32.partialorder %v3876, 8.507059e+37
        %v3878 = vand.u32 %v2887, 2147483648
        %v3879 = vor.u32 1.1754944e-38, %v3878
        %v3880 = vsel %vm3877, %v3879, %v3875
        %v3881 = vmul.f32 1.0, %v3880
        %v3882 = vrcp.pop %v2888
        %v3883 = vmul.f32 %v2888, %v3882
        %v3884 = vsub.f32 1.0, %v3883
        %v3885 = vmul.f32 %v3882, %v3884
        %v3886 = vadd.f32 %v3882, %v3885
        %vm3887 = vweird.f32 %v2888
        %vm3888 = vweird.f32 %v3882
        %vm3889 = vmor %vm3887, %vm3888
        %v3890 = vsel %vm3889, %v3882, %v3886
        %v3891 = vand.u32 2147483647, %v2888
        %vm3892 = vcmp.eq.f32.partialorder %v3891, 8.507059e+37
        %v3893 = vand.u32 %v2888, 2147483648
        %v3894 = vor.u32 1.1754944e-38, %v3893
        %v3895 = vsel %vm3892, %v3894, %v3890
        %v3896 = vmul.f32 1.0, %v3895
        %v3897 = vrcp.pop %v2889
        %v3898 = vmul.f32 %v2889, %v3897
        %v3899 = vsub.f32 1.0, %v3898
        %v3900 = vmul.f32 %v3897, %v3899
        %v3901 = vadd.f32 %v3897, %v3900
        %vm3902 = vweird.f32 %v2889
        %vm3903 = vweird.f32 %v3897
        %vm3904 = vmor %vm3902, %vm3903
        %v3905 = vsel %vm3904, %v3897, %v3901
        %v3906 = vand.u32 2147483647, %v2889
        %vm3907 = vcmp.eq.f32.partialorder %v3906, 8.507059e+37
        %v3908 = vand.u32 %v2889, 2147483648
        %v3909 = vor.u32 1.1754944e-38, %v3908
        %v3910 = vsel %vm3907, %v3909, %v3905
        %v3911 = vmul.f32 1.0, %v3910
        %v3912 = vrcp.pop %v2890
        %v3913 = vmul.f32 %v2890, %v3912
        %v3914 = vsub.f32 1.0, %v3913
        %v3915 = vmul.f32 %v3912, %v3914
        %v3916 = vadd.f32 %v3912, %v3915
        %vm3917 = vweird.f32 %v2890
        %vm3918 = vweird.f32 %v3912
        %vm3919 = vmor %vm3917, %vm3918
        %v3920 = vsel %vm3919, %v3912, %v3916
        %v3921 = vand.u32 2147483647, %v2890
        %vm3922 = vcmp.eq.f32.partialorder %v3921, 8.507059e+37
        %v3923 = vand.u32 %v2890, 2147483648
        %v3924 = vor.u32 1.1754944e-38, %v3923
        %v3925 = vsel %vm3922, %v3924, %v3920
        %v3926 = vmul.f32 1.0, %v3925
        %v3927 = vrcp.pop %v2891
        %v3928 = vmul.f32 %v2891, %v3927
        %v3929 = vsub.f32 1.0, %v3928
        %v3930 = vmul.f32 %v3927, %v3929
        %v3931 = vadd.f32 %v3927, %v3930
        %vm3932 = vweird.f32 %v2891
        %vm3933 = vweird.f32 %v3927
        %vm3934 = vmor %vm3932, %vm3933
        %v3935 = vsel %vm3934, %v3927, %v3931
        %v3936 = vand.u32 2147483647, %v2891
        %vm3937 = vcmp.eq.f32.partialorder %v3936, 8.507059e+37
        %v3938 = vand.u32 %v2891, 2147483648
        %v3939 = vor.u32 1.1754944e-38, %v3938
        %v3940 = vsel %vm3937, %v3939, %v3935
        %v3941 = vmul.f32 1.0, %v3940
        %v3942 = vrcp.pop %v2892
        %v3943 = vmul.f32 %v2892, %v3942
        %v3944 = vsub.f32 1.0, %v3943
        %v3945 = vmul.f32 %v3942, %v3944
        %v3946 = vadd.f32 %v3942, %v3945
        %vm3947 = vweird.f32 %v2892
        %vm3948 = vweird.f32 %v3942
        %vm3949 = vmor %vm3947, %vm3948
        %v3950 = vsel %vm3949, %v3942, %v3946
        %v3951 = vand.u32 2147483647, %v2892
        %vm3952 = vcmp.eq.f32.partialorder %v3951, 8.507059e+37
        %v3953 = vand.u32 %v2892, 2147483648
        %v3954 = vor.u32 1.1754944e-38, %v3953
        %v3955 = vsel %vm3952, %v3954, %v3950
        %v3956 = vmul.f32 1.0, %v3955
        %v3957 = vrcp.pop %v2893
        %v3958 = vmul.f32 %v2893, %v3957
        %v3959 = vsub.f32 1.0, %v3958
        %v3960 = vmul.f32 %v3957, %v3959
        %v3961 = vadd.f32 %v3957, %v3960
        %vm3962 = vweird.f32 %v2893
        %vm3963 = vweird.f32 %v3957
        %vm3964 = vmor %vm3962, %vm3963
        %v3965 = vsel %vm3964, %v3957, %v3961
        %v3966 = vand.u32 2147483647, %v2893
        %vm3967 = vcmp.eq.f32.partialorder %v3966, 8.507059e+37
        %v3968 = vand.u32 %v2893, 2147483648
        %v3969 = vor.u32 1.1754944e-38, %v3968
        %v3970 = vsel %vm3967, %v3969, %v3965
        %v3971 = vmul.f32 1.0, %v3970
        %v3972 = vrcp.pop %v2894
        %v3973 = vmul.f32 %v2894, %v3972
        %v3974 = vsub.f32 1.0, %v3973
        %v3975 = vmul.f32 %v3972, %v3974
        %v3976 = vadd.f32 %v3972, %v3975
        %vm3977 = vweird.f32 %v2894
        %vm3978 = vweird.f32 %v3972
        %vm3979 = vmor %vm3977, %vm3978
        %v3980 = vsel %vm3979, %v3972, %v3976
        %v3981 = vand.u32 2147483647, %v2894
        %vm3982 = vcmp.eq.f32.partialorder %v3981, 8.507059e+37
        %v3983 = vand.u32 %v2894, 2147483648
        %v3984 = vor.u32 1.1754944e-38, %v3983
        %v3985 = vsel %vm3982, %v3984, %v3980
        %v3986 = vmul.f32 1.0, %v3985
        %v3987 = vrcp.pop %v2895
        %v3988 = vmul.f32 %v2895, %v3987
        %v3989 = vsub.f32 1.0, %v3988
        %v3990 = vmul.f32 %v3987, %v3989
        %v3991 = vadd.f32 %v3987, %v3990
        %vm3992 = vweird.f32 %v2895
        %vm3993 = vweird.f32 %v3987
        %vm3994 = vmor %vm3992, %vm3993
        %v3995 = vsel %vm3994, %v3987, %v3991
        %v3996 = vand.u32 2147483647, %v2895
        %vm3997 = vcmp.eq.f32.partialorder %v3996, 8.507059e+37
        %v3998 = vand.u32 %v2895, 2147483648
        %v3999 = vor.u32 1.1754944e-38, %v3998
        %v4000 = vsel %vm3997, %v3999, %v3995
        %v4001 = vmul.f32 1.0, %v4000
        %v4002 = vrcp.pop %v2896
        %v4003 = vmul.f32 %v2896, %v4002
        %v4004 = vsub.f32 1.0, %v4003
        %v4005 = vmul.f32 %v4002, %v4004
        %v4006 = vadd.f32 %v4002, %v4005
        %vm4007 = vweird.f32 %v2896
        %vm4008 = vweird.f32 %v4002
        %vm4009 = vmor %vm4007, %vm4008
        %v4010 = vsel %vm4009, %v4002, %v4006
        %v4011 = vand.u32 2147483647, %v2896
        %vm4012 = vcmp.eq.f32.partialorder %v4011, 8.507059e+37
        %v4013 = vand.u32 %v2896, 2147483648
        %v4014 = vor.u32 1.1754944e-38, %v4013
        %v4015 = vsel %vm4012, %v4014, %v4010
        %v4016 = vmul.f32 1.0, %v4015
        %v4017 = vrcp.pop %v2897
        %v4018 = vmul.f32 %v2897, %v4017
        %v4019 = vsub.f32 1.0, %v4018
        %v4020 = vmul.f32 %v4017, %v4019
        %v4021 = vadd.f32 %v4017, %v4020
        %vm4022 = vweird.f32 %v2897
        %vm4023 = vweird.f32 %v4017
        %vm4024 = vmor %vm4022, %vm4023
        %v4025 = vsel %vm4024, %v4017, %v4021
        %v4026 = vand.u32 2147483647, %v2897
        %vm4027 = vcmp.eq.f32.partialorder %v4026, 8.507059e+37
        %v4028 = vand.u32 %v2897, 2147483648
        %v4029 = vor.u32 1.1754944e-38, %v4028
        %v4030 = vsel %vm4027, %v4029, %v4025
        %v4031 = vmul.f32 1.0, %v4030
        %v4032 = vrcp.pop %v2898
        %v4033 = vmul.f32 %v2898, %v4032
        %v4034 = vsub.f32 1.0, %v4033
        %v4035 = vmul.f32 %v4032, %v4034
        %v4036 = vadd.f32 %v4032, %v4035
        %vm4037 = vweird.f32 %v2898
        %vm4038 = vweird.f32 %v4032
        %vm4039 = vmor %vm4037, %vm4038
        %v4040 = vsel %vm4039, %v4032, %v4036
        %v4041 = vand.u32 2147483647, %v2898
        %vm4042 = vcmp.eq.f32.partialorder %v4041, 8.507059e+37
        %v4043 = vand.u32 %v2898, 2147483648
        %v4044 = vor.u32 1.1754944e-38, %v4043
        %v4045 = vsel %vm4042, %v4044, %v4040
        %v4046 = vmul.f32 1.0, %v4045
        %v4047 = vrcp.pop %v2899
        %v4048 = vmul.f32 %v2899, %v4047
        %v4049 = vsub.f32 1.0, %v4048
        %v4050 = vmul.f32 %v4047, %v4049
        %v4051 = vadd.f32 %v4047, %v4050
        %vm4052 = vweird.f32 %v2899
        %vm4053 = vweird.f32 %v4047
        %vm4054 = vmor %vm4052, %vm4053
        %v4055 = vsel %vm4054, %v4047, %v4051
        %v4056 = vand.u32 2147483647, %v2899
        %vm4057 = vcmp.eq.f32.partialorder %v4056, 8.507059e+37
        %v4058 = vand.u32 %v2899, 2147483648
        %v4059 = vor.u32 1.1754944e-38, %v4058
        %v4060 = vsel %vm4057, %v4059, %v4055
        %v4061 = vmul.f32 1.0, %v4060
        %v4062 = vrcp.pop %v2900
        %v4063 = vmul.f32 %v2900, %v4062
        %v4064 = vsub.f32 1.0, %v4063
        %v4065 = vmul.f32 %v4062, %v4064
        %v4066 = vadd.f32 %v4062, %v4065
        %vm4067 = vweird.f32 %v2900
        %vm4068 = vweird.f32 %v4062
        %vm4069 = vmor %vm4067, %vm4068
        %v4070 = vsel %vm4069, %v4062, %v4066
        %v4071 = vand.u32 2147483647, %v2900
        %vm4072 = vcmp.eq.f32.partialorder %v4071, 8.507059e+37
        %v4073 = vand.u32 %v2900, 2147483648
        %v4074 = vor.u32 1.1754944e-38, %v4073
        %v4075 = vsel %vm4072, %v4074, %v4070
        %v4076 = vmul.f32 1.0, %v4075
        %v4077 = vrcp.pop %v2901
        %v4078 = vmul.f32 %v2901, %v4077
        %v4079 = vsub.f32 1.0, %v4078
        %v4080 = vmul.f32 %v4077, %v4079
        %v4081 = vadd.f32 %v4077, %v4080
        %vm4082 = vweird.f32 %v2901
        %vm4083 = vweird.f32 %v4077
        %vm4084 = vmor %vm4082, %vm4083
        %v4085 = vsel %vm4084, %v4077, %v4081
        %v4086 = vand.u32 2147483647, %v2901
        %vm4087 = vcmp.eq.f32.partialorder %v4086, 8.507059e+37
        %v4088 = vand.u32 %v2901, 2147483648
        %v4089 = vor.u32 1.1754944e-38, %v4088
        %v4090 = vsel %vm4087, %v4089, %v4085
        %v4091 = vmul.f32 1.0, %v4090
        %v4092 = vrcp.pop %v2902
        %v4093 = vmul.f32 %v2902, %v4092
        %v4094 = vsub.f32 1.0, %v4093
        %v4095 = vmul.f32 %v4092, %v4094
        %v4096 = vadd.f32 %v4092, %v4095
        %vm4097 = vweird.f32 %v2902
        %vm4098 = vweird.f32 %v4092
        %vm4099 = vmor %vm4097, %vm4098
        %v4100 = vsel %vm4099, %v4092, %v4096
        %v4101 = vand.u32 2147483647, %v2902
        %vm4102 = vcmp.eq.f32.partialorder %v4101, 8.507059e+37
        %v4103 = vand.u32 %v2902, 2147483648
        %v4104 = vor.u32 1.1754944e-38, %v4103
        %v4105 = vsel %vm4102, %v4104, %v4100
        %v4106 = vmul.f32 1.0, %v4105
        %v4107 = vrcp.pop %v2903
        %v4108 = vmul.f32 %v2903, %v4107
        %v4109 = vsub.f32 1.0, %v4108
        %v4110 = vmul.f32 %v4107, %v4109
        %v4111 = vadd.f32 %v4107, %v4110
        %vm4112 = vweird.f32 %v2903
        %vm4113 = vweird.f32 %v4107
        %vm4114 = vmor %vm4112, %vm4113
        %v4115 = vsel %vm4114, %v4107, %v4111
        %v4116 = vand.u32 2147483647, %v2903
        %vm4117 = vcmp.eq.f32.partialorder %v4116, 8.507059e+37
        %v4118 = vand.u32 %v2903, 2147483648
        %v4119 = vor.u32 1.1754944e-38, %v4118
        %v4120 = vsel %vm4117, %v4119, %v4115
        %v4121 = vmul.f32 1.0, %v4120
        %v4122 = vrcp.pop %v2904
        %v4123 = vmul.f32 %v2904, %v4122
        %v4124 = vsub.f32 1.0, %v4123
        %v4125 = vmul.f32 %v4122, %v4124
        %v4126 = vadd.f32 %v4122, %v4125
        %vm4127 = vweird.f32 %v2904
        %vm4128 = vweird.f32 %v4122
        %vm4129 = vmor %vm4127, %vm4128
        %v4130 = vsel %vm4129, %v4122, %v4126
        %v4131 = vand.u32 2147483647, %v2904
        %vm4132 = vcmp.eq.f32.partialorder %v4131, 8.507059e+37
        %v4133 = vand.u32 %v2904, 2147483648
        %v4134 = vor.u32 1.1754944e-38, %v4133
        %v4135 = vsel %vm4132, %v4134, %v4130
        %v4136 = vmul.f32 1.0, %v4135
        %v4137 = vrcp.pop %v2905
        %v4138 = vmul.f32 %v2905, %v4137
        %v4139 = vsub.f32 1.0, %v4138
        %v4140 = vmul.f32 %v4137, %v4139
        %v4141 = vadd.f32 %v4137, %v4140
        %vm4142 = vweird.f32 %v2905
        %vm4143 = vweird.f32 %v4137
        %vm4144 = vmor %vm4142, %vm4143
        %v4145 = vsel %vm4144, %v4137, %v4141
        %v4146 = vand.u32 2147483647, %v2905
        %vm4147 = vcmp.eq.f32.partialorder %v4146, 8.507059e+37
        %v4148 = vand.u32 %v2905, 2147483648
        %v4149 = vor.u32 1.1754944e-38, %v4148
        %v4150 = vsel %vm4147, %v4149, %v4145
        %v4151 = vmul.f32 1.0, %v4150
        %v4152 = vrcp.pop %v2906
        %v4153 = vmul.f32 %v2906, %v4152
        %v4154 = vsub.f32 1.0, %v4153
        %v4155 = vmul.f32 %v4152, %v4154
        %v4156 = vadd.f32 %v4152, %v4155
        %vm4157 = vweird.f32 %v2906
        %vm4158 = vweird.f32 %v4152
        %vm4159 = vmor %vm4157, %vm4158
        %v4160 = vsel %vm4159, %v4152, %v4156
        %v4161 = vand.u32 2147483647, %v2906
        %vm4162 = vcmp.eq.f32.partialorder %v4161, 8.507059e+37
        %v4163 = vand.u32 %v2906, 2147483648
        %v4164 = vor.u32 1.1754944e-38, %v4163
        %v4165 = vsel %vm4162, %v4164, %v4160
        %v4166 = vmul.f32 1.0, %v4165
        %v4167 = vrcp.pop %v2907
        %v4168 = vmul.f32 %v2907, %v4167
        %v4169 = vsub.f32 1.0, %v4168
        %v4170 = vmul.f32 %v4167, %v4169
        %v4171 = vadd.f32 %v4167, %v4170
        %vm4172 = vweird.f32 %v2907
        %vm4173 = vweird.f32 %v4167
        %vm4174 = vmor %vm4172, %vm4173
        %v4175 = vsel %vm4174, %v4167, %v4171
        %v4176 = vand.u32 2147483647, %v2907
        %vm4177 = vcmp.eq.f32.partialorder %v4176, 8.507059e+37
        %v4178 = vand.u32 %v2907, 2147483648
        %v4179 = vor.u32 1.1754944e-38, %v4178
        %v4180 = vsel %vm4177, %v4179, %v4175
        %v4181 = vmul.f32 1.0, %v4180
        %v4182 = vrcp.pop %v2908
        %v4183 = vmul.f32 %v2908, %v4182
        %v4184 = vsub.f32 1.0, %v4183
        %v4185 = vmul.f32 %v4182, %v4184
        %v4186 = vadd.f32 %v4182, %v4185
        %vm4187 = vweird.f32 %v2908
        %vm4188 = vweird.f32 %v4182
        %vm4189 = vmor %vm4187, %vm4188
        %v4190 = vsel %vm4189, %v4182, %v4186
        %v4191 = vand.u32 2147483647, %v2908
        %vm4192 = vcmp.eq.f32.partialorder %v4191, 8.507059e+37
        %v4193 = vand.u32 %v2908, 2147483648
        %v4194 = vor.u32 1.1754944e-38, %v4193
        %v4195 = vsel %vm4192, %v4194, %v4190
        %v4196 = vmul.f32 1.0, %v4195
        %v4197 = vrcp.pop %v2909
        %v4198 = vmul.f32 %v2909, %v4197
        %v4199 = vsub.f32 1.0, %v4198
        %v4200 = vmul.f32 %v4197, %v4199
        %v4201 = vadd.f32 %v4197, %v4200
        %vm4202 = vweird.f32 %v2909
        %vm4203 = vweird.f32 %v4197
        %vm4204 = vmor %vm4202, %vm4203
        %v4205 = vsel %vm4204, %v4197, %v4201
        %v4206 = vand.u32 2147483647, %v2909
        %vm4207 = vcmp.eq.f32.partialorder %v4206, 8.507059e+37
        %v4208 = vand.u32 %v2909, 2147483648
        %v4209 = vor.u32 1.1754944e-38, %v4208
        %v4210 = vsel %vm4207, %v4209, %v4205
        %v4211 = vmul.f32 1.0, %v4210
        %v4212 = vrcp.pop %v2910
        %v4213 = vmul.f32 %v2910, %v4212
        %v4214 = vsub.f32 1.0, %v4213
        %v4215 = vmul.f32 %v4212, %v4214
        %v4216 = vadd.f32 %v4212, %v4215
        %vm4217 = vweird.f32 %v2910
        %vm4218 = vweird.f32 %v4212
        %vm4219 = vmor %vm4217, %vm4218
        %v4220 = vsel %vm4219, %v4212, %v4216
        %v4221 = vand.u32 2147483647, %v2910
        %vm4222 = vcmp.eq.f32.partialorder %v4221, 8.507059e+37
        %v4223 = vand.u32 %v2910, 2147483648
        %v4224 = vor.u32 1.1754944e-38, %v4223
        %v4225 = vsel %vm4222, %v4224, %v4220
        %v4226 = vmul.f32 1.0, %v4225
        %v4227 = vrcp.pop %v2911
        %v4228 = vmul.f32 %v2911, %v4227
        %v4229 = vsub.f32 1.0, %v4228
        %v4230 = vmul.f32 %v4227, %v4229
        %v4231 = vadd.f32 %v4227, %v4230
        %vm4232 = vweird.f32 %v2911
        %vm4233 = vweird.f32 %v4227
        %vm4234 = vmor %vm4232, %vm4233
        %v4235 = vsel %vm4234, %v4227, %v4231
        %v4236 = vand.u32 2147483647, %v2911
        %vm4237 = vcmp.eq.f32.partialorder %v4236, 8.507059e+37
        %v4238 = vand.u32 %v2911, 2147483648
        %v4239 = vor.u32 1.1754944e-38, %v4238
        %v4240 = vsel %vm4237, %v4239, %v4235
        %v4241 = vmul.f32 1.0, %v4240
        %v4242 = vrcp.pop %v2912
        %v4243 = vmul.f32 %v2912, %v4242
        %v4244 = vsub.f32 1.0, %v4243
        %v4245 = vmul.f32 %v4242, %v4244
        %v4246 = vadd.f32 %v4242, %v4245
        %vm4247 = vweird.f32 %v2912
        %vm4248 = vweird.f32 %v4242
        %vm4249 = vmor %vm4247, %vm4248
        %v4250 = vsel %vm4249, %v4242, %v4246
        %v4251 = vand.u32 2147483647, %v2912
        %vm4252 = vcmp.eq.f32.partialorder %v4251, 8.507059e+37
        %v4253 = vand.u32 %v2912, 2147483648
        %v4254 = vor.u32 1.1754944e-38, %v4253
        %v4255 = vsel %vm4252, %v4254, %v4250
        %v4256 = vmul.f32 1.0, %v4255
        %v4257 = vrcp.pop %v2913
        %v4258 = vmul.f32 %v2913, %v4257
        %v4259 = vsub.f32 1.0, %v4258
        %v4260 = vmul.f32 %v4257, %v4259
        %v4261 = vadd.f32 %v4257, %v4260
        %vm4262 = vweird.f32 %v2913
        %vm4263 = vweird.f32 %v4257
        %vm4264 = vmor %vm4262, %vm4263
        %v4265 = vsel %vm4264, %v4257, %v4261
        %v4266 = vand.u32 2147483647, %v2913
        %vm4267 = vcmp.eq.f32.partialorder %v4266, 8.507059e+37
        %v4268 = vand.u32 %v2913, 2147483648
        %v4269 = vor.u32 1.1754944e-38, %v4268
        %v4270 = vsel %vm4267, %v4269, %v4265
        %v4271 = vmul.f32 1.0, %v4270
        %v4272 = vrcp.pop %v2914
        %v4273 = vmul.f32 %v2914, %v4272
        %v4274 = vsub.f32 1.0, %v4273
        %v4275 = vmul.f32 %v4272, %v4274
        %v4276 = vadd.f32 %v4272, %v4275
        %vm4277 = vweird.f32 %v2914
        %vm4278 = vweird.f32 %v4272
        %vm4279 = vmor %vm4277, %vm4278
        %v4280 = vsel %vm4279, %v4272, %v4276
        %v4281 = vand.u32 2147483647, %v2914
        %vm4282 = vcmp.eq.f32.partialorder %v4281, 8.507059e+37
        %v4283 = vand.u32 %v2914, 2147483648
        %v4284 = vor.u32 1.1754944e-38, %v4283
        %v4285 = vsel %vm4282, %v4284, %v4280
        %v4286 = vmul.f32 1.0, %v4285
        %v4287 = vrcp.pop %v2915
        %v4288 = vmul.f32 %v2915, %v4287
        %v4289 = vsub.f32 1.0, %v4288
        %v4290 = vmul.f32 %v4287, %v4289
        %v4291 = vadd.f32 %v4287, %v4290
        %vm4292 = vweird.f32 %v2915
        %vm4293 = vweird.f32 %v4287
        %vm4294 = vmor %vm4292, %vm4293
        %v4295 = vsel %vm4294, %v4287, %v4291
        %v4296 = vand.u32 2147483647, %v2915
        %vm4297 = vcmp.eq.f32.partialorder %v4296, 8.507059e+37
        %v4298 = vand.u32 %v2915, 2147483648
        %v4299 = vor.u32 1.1754944e-38, %v4298
        %v4300 = vsel %vm4297, %v4299, %v4295
        %v4301 = vmul.f32 1.0, %v4300
        %v4302 = vrcp.pop %v2916
        %v4303 = vmul.f32 %v2916, %v4302
        %v4304 = vsub.f32 1.0, %v4303
        %v4305 = vmul.f32 %v4302, %v4304
        %v4306 = vadd.f32 %v4302, %v4305
        %vm4307 = vweird.f32 %v2916
        %vm4308 = vweird.f32 %v4302
        %vm4309 = vmor %vm4307, %vm4308
        %v4310 = vsel %vm4309, %v4302, %v4306
        %v4311 = vand.u32 2147483647, %v2916
        %vm4312 = vcmp.eq.f32.partialorder %v4311, 8.507059e+37
        %v4313 = vand.u32 %v2916, 2147483648
        %v4314 = vor.u32 1.1754944e-38, %v4313
        %v4315 = vsel %vm4312, %v4314, %v4310
        %v4316 = vmul.f32 1.0, %v4315
        %v4317 = vrcp.pop %v2917
        %v4318 = vmul.f32 %v2917, %v4317
        %v4319 = vsub.f32 1.0, %v4318
        %v4320 = vmul.f32 %v4317, %v4319
        %v4321 = vadd.f32 %v4317, %v4320
        %vm4322 = vweird.f32 %v2917
        %vm4323 = vweird.f32 %v4317
        %vm4324 = vmor %vm4322, %vm4323
        %v4325 = vsel %vm4324, %v4317, %v4321
        %v4326 = vand.u32 2147483647, %v2917
        %vm4327 = vcmp.eq.f32.partialorder %v4326, 8.507059e+37
        %v4328 = vand.u32 %v2917, 2147483648
        %v4329 = vor.u32 1.1754944e-38, %v4328
        %v4330 = vsel %vm4327, %v4329, %v4325
        %v4331 = vmul.f32 1.0, %v4330
        %v4332 = vrcp.pop %v2918
        %v4333 = vmul.f32 %v2918, %v4332
        %v4334 = vsub.f32 1.0, %v4333
        %v4335 = vmul.f32 %v4332, %v4334
        %v4336 = vadd.f32 %v4332, %v4335
        %vm4337 = vweird.f32 %v2918
        %vm4338 = vweird.f32 %v4332
        %vm4339 = vmor %vm4337, %vm4338
        %v4340 = vsel %vm4339, %v4332, %v4336
        %v4341 = vand.u32 2147483647, %v2918
        %vm4342 = vcmp.eq.f32.partialorder %v4341, 8.507059e+37
        %v4343 = vand.u32 %v2918, 2147483648
        %v4344 = vor.u32 1.1754944e-38, %v4343
        %v4345 = vsel %vm4342, %v4344, %v4340
        %v4346 = vmul.f32 1.0, %v4345
        %v4347 = vrcp.pop %v2919
        %v4348 = vmul.f32 %v2919, %v4347
        %v4349 = vsub.f32 1.0, %v4348
        %v4350 = vmul.f32 %v4347, %v4349
        %v4351 = vadd.f32 %v4347, %v4350
        %vm4352 = vweird.f32 %v2919
        %vm4353 = vweird.f32 %v4347
        %vm4354 = vmor %vm4352, %vm4353
        %v4355 = vsel %vm4354, %v4347, %v4351
        %v4356 = vand.u32 2147483647, %v2919
        %vm4357 = vcmp.eq.f32.partialorder %v4356, 8.507059e+37
        %v4358 = vand.u32 %v2919, 2147483648
        %v4359 = vor.u32 1.1754944e-38, %v4358
        %v4360 = vsel %vm4357, %v4359, %v4355
        %v4361 = vmul.f32 1.0, %v4360
        %v4362 = vrcp.pop %v2920
        %v4363 = vmul.f32 %v2920, %v4362
        %v4364 = vsub.f32 1.0, %v4363
        %v4365 = vmul.f32 %v4362, %v4364
        %v4366 = vadd.f32 %v4362, %v4365
        %vm4367 = vweird.f32 %v2920
        %vm4368 = vweird.f32 %v4362
        %vm4369 = vmor %vm4367, %vm4368
        %v4370 = vsel %vm4369, %v4362, %v4366
        %v4371 = vand.u32 2147483647, %v2920
        %vm4372 = vcmp.eq.f32.partialorder %v4371, 8.507059e+37
        %v4373 = vand.u32 %v2920, 2147483648
        %v4374 = vor.u32 1.1754944e-38, %v4373
        %v4375 = vsel %vm4372, %v4374, %v4370
        %v4376 = vmul.f32 1.0, %v4375
        %v4377 = vrcp.pop %v2921
        %v4378 = vmul.f32 %v2921, %v4377
        %v4379 = vsub.f32 1.0, %v4378
        %v4380 = vmul.f32 %v4377, %v4379
        %v4381 = vadd.f32 %v4377, %v4380
        %vm4382 = vweird.f32 %v2921
        %vm4383 = vweird.f32 %v4377
        %vm4384 = vmor %vm4382, %vm4383
        %v4385 = vsel %vm4384, %v4377, %v4381
        %v4386 = vand.u32 2147483647, %v2921
        %vm4387 = vcmp.eq.f32.partialorder %v4386, 8.507059e+37
        %v4388 = vand.u32 %v2921, 2147483648
        %v4389 = vor.u32 1.1754944e-38, %v4388
        %v4390 = vsel %vm4387, %v4389, %v4385
        %v4391 = vmul.f32 1.0, %v4390
        %v4392 = vrcp.pop %v2922
        %v4393 = vmul.f32 %v2922, %v4392
        %v4394 = vsub.f32 1.0, %v4393
        %v4395 = vmul.f32 %v4392, %v4394
        %v4396 = vadd.f32 %v4392, %v4395
        %vm4397 = vweird.f32 %v2922
        %vm4398 = vweird.f32 %v4392
        %vm4399 = vmor %vm4397, %vm4398
        %v4400 = vsel %vm4399, %v4392, %v4396
        %v4401 = vand.u32 2147483647, %v2922
        %vm4402 = vcmp.eq.f32.partialorder %v4401, 8.507059e+37
        %v4403 = vand.u32 %v2922, 2147483648
        %v4404 = vor.u32 1.1754944e-38, %v4403
        %v4405 = vsel %vm4402, %v4404, %v4400
        %v4406 = vmul.f32 1.0, %v4405
        %v4407 = vrcp.pop %v2923
        %v4408 = vmul.f32 %v2923, %v4407
        %v4409 = vsub.f32 1.0, %v4408
        %v4410 = vmul.f32 %v4407, %v4409
        %v4411 = vadd.f32 %v4407, %v4410
        %vm4412 = vweird.f32 %v2923
        %vm4413 = vweird.f32 %v4407
        %vm4414 = vmor %vm4412, %vm4413
        %v4415 = vsel %vm4414, %v4407, %v4411
        %v4416 = vand.u32 2147483647, %v2923
        %vm4417 = vcmp.eq.f32.partialorder %v4416, 8.507059e+37
        %v4418 = vand.u32 %v2923, 2147483648
        %v4419 = vor.u32 1.1754944e-38, %v4418
        %v4420 = vsel %vm4417, %v4419, %v4415
        %v4421 = vmul.f32 1.0, %v4420
        %v4422 = vrcp.pop %v2924
        %v4423 = vmul.f32 %v2924, %v4422
        %v4424 = vsub.f32 1.0, %v4423
        %v4425 = vmul.f32 %v4422, %v4424
        %v4426 = vadd.f32 %v4422, %v4425
        %vm4427 = vweird.f32 %v2924
        %vm4428 = vweird.f32 %v4422
        %vm4429 = vmor %vm4427, %vm4428
        %v4430 = vsel %vm4429, %v4422, %v4426
        %v4431 = vand.u32 2147483647, %v2924
        %vm4432 = vcmp.eq.f32.partialorder %v4431, 8.507059e+37
        %v4433 = vand.u32 %v2924, 2147483648
        %v4434 = vor.u32 1.1754944e-38, %v4433
        %v4435 = vsel %vm4432, %v4434, %v4430
        %v4436 = vmul.f32 1.0, %v4435
        %v4437 = vrcp.pop %v2925
        %v4438 = vmul.f32 %v2925, %v4437
        %v4439 = vsub.f32 1.0, %v4438
        %v4440 = vmul.f32 %v4437, %v4439
        %v4441 = vadd.f32 %v4437, %v4440
        %vm4442 = vweird.f32 %v2925
        %vm4443 = vweird.f32 %v4437
        %vm4444 = vmor %vm4442, %vm4443
        %v4445 = vsel %vm4444, %v4437, %v4441
        %v4446 = vand.u32 2147483647, %v2925
        %vm4447 = vcmp.eq.f32.partialorder %v4446, 8.507059e+37
        %v4448 = vand.u32 %v2925, 2147483648
        %v4449 = vor.u32 1.1754944e-38, %v4448
        %v4450 = vsel %vm4447, %v4449, %v4445
        %v4451 = vmul.f32 1.0, %v4450
        %v4452 = vrcp.pop %v2926
        %v4453 = vmul.f32 %v2926, %v4452
        %v4454 = vsub.f32 1.0, %v4453
        %v4455 = vmul.f32 %v4452, %v4454
        %v4456 = vadd.f32 %v4452, %v4455
        %vm4457 = vweird.f32 %v2926
        %vm4458 = vweird.f32 %v4452
        %vm4459 = vmor %vm4457, %vm4458
        %v4460 = vsel %vm4459, %v4452, %v4456
        %v4461 = vand.u32 2147483647, %v2926
        %vm4462 = vcmp.eq.f32.partialorder %v4461, 8.507059e+37
        %v4463 = vand.u32 %v2926, 2147483648
        %v4464 = vor.u32 1.1754944e-38, %v4463
        %v4465 = vsel %vm4462, %v4464, %v4460
        %v4466 = vmul.f32 1.0, %v4465
        %v4467 = vrcp.pop %v2927
        %v4468 = vmul.f32 %v2927, %v4467
        %v4469 = vsub.f32 1.0, %v4468
        %v4470 = vmul.f32 %v4467, %v4469
        %v4471 = vadd.f32 %v4467, %v4470
        %vm4472 = vweird.f32 %v2927
        %vm4473 = vweird.f32 %v4467
        %vm4474 = vmor %vm4472, %vm4473
        %v4475 = vsel %vm4474, %v4467, %v4471
        %v4476 = vand.u32 2147483647, %v2927
        %vm4477 = vcmp.eq.f32.partialorder %v4476, 8.507059e+37
        %v4478 = vand.u32 %v2927, 2147483648
        %v4479 = vor.u32 1.1754944e-38, %v4478
        %v4480 = vsel %vm4477, %v4479, %v4475
        %v4481 = vmul.f32 1.0, %v4480
        %v4482 = vrcp.pop %v2928
        %v4483 = vmul.f32 %v2928, %v4482
        %v4484 = vsub.f32 1.0, %v4483
        %v4485 = vmul.f32 %v4482, %v4484
        %v4486 = vadd.f32 %v4482, %v4485
        %vm4487 = vweird.f32 %v2928
        %vm4488 = vweird.f32 %v4482
        %vm4489 = vmor %vm4487, %vm4488
        %v4490 = vsel %vm4489, %v4482, %v4486
        %v4491 = vand.u32 2147483647, %v2928
        %vm4492 = vcmp.eq.f32.partialorder %v4491, 8.507059e+37
        %v4493 = vand.u32 %v2928, 2147483648
        %v4494 = vor.u32 1.1754944e-38, %v4493
        %v4495 = vsel %vm4492, %v4494, %v4490
        %v4496 = vmul.f32 1.0, %v4495
        %v4497 = vrcp.pop %v2929
        %v4498 = vmul.f32 %v2929, %v4497
        %v4499 = vsub.f32 1.0, %v4498
        %v4500 = vmul.f32 %v4497, %v4499
        %v4501 = vadd.f32 %v4497, %v4500
        %vm4502 = vweird.f32 %v2929
        %vm4503 = vweird.f32 %v4497
        %vm4504 = vmor %vm4502, %vm4503
        %v4505 = vsel %vm4504, %v4497, %v4501
        %v4506 = vand.u32 2147483647, %v2929
        %vm4507 = vcmp.eq.f32.partialorder %v4506, 8.507059e+37
        %v4508 = vand.u32 %v2929, 2147483648
        %v4509 = vor.u32 1.1754944e-38, %v4508
        %v4510 = vsel %vm4507, %v4509, %v4505
        %v4511 = vmul.f32 1.0, %v4510
        %v4512 = vrcp.pop %v2930
        %v4513 = vmul.f32 %v2930, %v4512
        %v4514 = vsub.f32 1.0, %v4513
        %v4515 = vmul.f32 %v4512, %v4514
        %v4516 = vadd.f32 %v4512, %v4515
        %vm4517 = vweird.f32 %v2930
        %vm4518 = vweird.f32 %v4512
        %vm4519 = vmor %vm4517, %vm4518
        %v4520 = vsel %vm4519, %v4512, %v4516
        %v4521 = vand.u32 2147483647, %v2930
        %vm4522 = vcmp.eq.f32.partialorder %v4521, 8.507059e+37
        %v4523 = vand.u32 %v2930, 2147483648
        %v4524 = vor.u32 1.1754944e-38, %v4523
        %v4525 = vsel %vm4522, %v4524, %v4520
        %v4526 = vmul.f32 1.0, %v4525
        %v4527 = vrcp.pop %v2931
        %v4528 = vmul.f32 %v2931, %v4527
        %v4529 = vsub.f32 1.0, %v4528
        %v4530 = vmul.f32 %v4527, %v4529
        %v4531 = vadd.f32 %v4527, %v4530
        %vm4532 = vweird.f32 %v2931
        %vm4533 = vweird.f32 %v4527
        %vm4534 = vmor %vm4532, %vm4533
        %v4535 = vsel %vm4534, %v4527, %v4531
        %v4536 = vand.u32 2147483647, %v2931
        %vm4537 = vcmp.eq.f32.partialorder %v4536, 8.507059e+37
        %v4538 = vand.u32 %v2931, 2147483648
        %v4539 = vor.u32 1.1754944e-38, %v4538
        %v4540 = vsel %vm4537, %v4539, %v4535
        %v4541 = vmul.f32 1.0, %v4540
        %v4542 = vrcp.pop %v2932
        %v4543 = vmul.f32 %v2932, %v4542
        %v4544 = vsub.f32 1.0, %v4543
        %v4545 = vmul.f32 %v4542, %v4544
        %v4546 = vadd.f32 %v4542, %v4545
        %vm4547 = vweird.f32 %v2932
        %vm4548 = vweird.f32 %v4542
        %vm4549 = vmor %vm4547, %vm4548
        %v4550 = vsel %vm4549, %v4542, %v4546
        %v4551 = vand.u32 2147483647, %v2932
        %vm4552 = vcmp.eq.f32.partialorder %v4551, 8.507059e+37
        %v4553 = vand.u32 %v2932, 2147483648
        %v4554 = vor.u32 1.1754944e-38, %v4553
        %v4555 = vsel %vm4552, %v4554, %v4550
        %v4556 = vmul.f32 1.0, %v4555
        %v4557 = vrcp.pop %v2933
        %v4558 = vmul.f32 %v2933, %v4557
        %v4559 = vsub.f32 1.0, %v4558
        %v4560 = vmul.f32 %v4557, %v4559
        %v4561 = vadd.f32 %v4557, %v4560
        %vm4562 = vweird.f32 %v2933
        %vm4563 = vweird.f32 %v4557
        %vm4564 = vmor %vm4562, %vm4563
        %v4565 = vsel %vm4564, %v4557, %v4561
        %v4566 = vand.u32 2147483647, %v2933
        %vm4567 = vcmp.eq.f32.partialorder %v4566, 8.507059e+37
        %v4568 = vand.u32 %v2933, 2147483648
        %v4569 = vor.u32 1.1754944e-38, %v4568
        %v4570 = vsel %vm4567, %v4569, %v4565
        %v4571 = vmul.f32 1.0, %v4570
        %v4572 = vrcp.pop %v2934
        %v4573 = vmul.f32 %v2934, %v4572
        %v4574 = vsub.f32 1.0, %v4573
        %v4575 = vmul.f32 %v4572, %v4574
        %v4576 = vadd.f32 %v4572, %v4575
        %vm4577 = vweird.f32 %v2934
        %vm4578 = vweird.f32 %v4572
        %vm4579 = vmor %vm4577, %vm4578
        %v4580 = vsel %vm4579, %v4572, %v4576
        %v4581 = vand.u32 2147483647, %v2934
        %vm4582 = vcmp.eq.f32.partialorder %v4581, 8.507059e+37
        %v4583 = vand.u32 %v2934, 2147483648
        %v4584 = vor.u32 1.1754944e-38, %v4583
        %v4585 = vsel %vm4582, %v4584, %v4580
        %v4586 = vmul.f32 1.0, %v4585
        %v4587 = vrcp.pop %v2935
        %v4588 = vmul.f32 %v2935, %v4587
        %v4589 = vsub.f32 1.0, %v4588
        %v4590 = vmul.f32 %v4587, %v4589
        %v4591 = vadd.f32 %v4587, %v4590
        %vm4592 = vweird.f32 %v2935
        %vm4593 = vweird.f32 %v4587
        %vm4594 = vmor %vm4592, %vm4593
        %v4595 = vsel %vm4594, %v4587, %v4591
        %v4596 = vand.u32 2147483647, %v2935
        %vm4597 = vcmp.eq.f32.partialorder %v4596, 8.507059e+37
        %v4598 = vand.u32 %v2935, 2147483648
        %v4599 = vor.u32 1.1754944e-38, %v4598
        %v4600 = vsel %vm4597, %v4599, %v4595
        %v4601 = vmul.f32 1.0, %v4600
        %v4602 = vrcp.pop %v2936
        %v4603 = vmul.f32 %v2936, %v4602
        %v4604 = vsub.f32 1.0, %v4603
        %v4605 = vmul.f32 %v4602, %v4604
        %v4606 = vadd.f32 %v4602, %v4605
        %vm4607 = vweird.f32 %v2936
        %vm4608 = vweird.f32 %v4602
        %vm4609 = vmor %vm4607, %vm4608
        %v4610 = vsel %vm4609, %v4602, %v4606
        %v4611 = vand.u32 2147483647, %v2936
        %vm4612 = vcmp.eq.f32.partialorder %v4611, 8.507059e+37
        %v4613 = vand.u32 %v2936, 2147483648
        %v4614 = vor.u32 1.1754944e-38, %v4613
        %v4615 = vsel %vm4612, %v4614, %v4610
        %v4616 = vmul.f32 1.0, %v4615
        %v4617 = vrcp.pop %v2937
        %v4618 = vmul.f32 %v2937, %v4617
        %v4619 = vsub.f32 1.0, %v4618
        %v4620 = vmul.f32 %v4617, %v4619
        %v4621 = vadd.f32 %v4617, %v4620
        %vm4622 = vweird.f32 %v2937
        %vm4623 = vweird.f32 %v4617
        %vm4624 = vmor %vm4622, %vm4623
        %v4625 = vsel %vm4624, %v4617, %v4621
        %v4626 = vand.u32 2147483647, %v2937
        %vm4627 = vcmp.eq.f32.partialorder %v4626, 8.507059e+37
        %v4628 = vand.u32 %v2937, 2147483648
        %v4629 = vor.u32 1.1754944e-38, %v4628
        %v4630 = vsel %vm4627, %v4629, %v4625
        %v4631 = vmul.f32 1.0, %v4630
        %v4632 = vrcp.pop %v2938
        %v4633 = vmul.f32 %v2938, %v4632
        %v4634 = vsub.f32 1.0, %v4633
        %v4635 = vmul.f32 %v4632, %v4634
        %v4636 = vadd.f32 %v4632, %v4635
        %vm4637 = vweird.f32 %v2938
        %vm4638 = vweird.f32 %v4632
        %vm4639 = vmor %vm4637, %vm4638
        %v4640 = vsel %vm4639, %v4632, %v4636
        %v4641 = vand.u32 2147483647, %v2938
        %vm4642 = vcmp.eq.f32.partialorder %v4641, 8.507059e+37
        %v4643 = vand.u32 %v2938, 2147483648
        %v4644 = vor.u32 1.1754944e-38, %v4643
        %v4645 = vsel %vm4642, %v4644, %v4640
        %v4646 = vmul.f32 1.0, %v4645
        %v4647 = vrcp.pop %v2939
        %v4648 = vmul.f32 %v2939, %v4647
        %v4649 = vsub.f32 1.0, %v4648
        %v4650 = vmul.f32 %v4647, %v4649
        %v4651 = vadd.f32 %v4647, %v4650
        %vm4652 = vweird.f32 %v2939
        %vm4653 = vweird.f32 %v4647
        %vm4654 = vmor %vm4652, %vm4653
        %v4655 = vsel %vm4654, %v4647, %v4651
        %v4656 = vand.u32 2147483647, %v2939
        %vm4657 = vcmp.eq.f32.partialorder %v4656, 8.507059e+37
        %v4658 = vand.u32 %v2939, 2147483648
        %v4659 = vor.u32 1.1754944e-38, %v4658
        %v4660 = vsel %vm4657, %v4659, %v4655
        %v4661 = vmul.f32 1.0, %v4660
        %v4662 = vrcp.pop %v2940
        %v4663 = vmul.f32 %v2940, %v4662
        %v4664 = vsub.f32 1.0, %v4663
        %v4665 = vmul.f32 %v4662, %v4664
        %v4666 = vadd.f32 %v4662, %v4665
        %vm4667 = vweird.f32 %v2940
        %vm4668 = vweird.f32 %v4662
        %vm4669 = vmor %vm4667, %vm4668
        %v4670 = vsel %vm4669, %v4662, %v4666
        %v4671 = vand.u32 2147483647, %v2940
        %vm4672 = vcmp.eq.f32.partialorder %v4671, 8.507059e+37
        %v4673 = vand.u32 %v2940, 2147483648
        %v4674 = vor.u32 1.1754944e-38, %v4673
        %v4675 = vsel %vm4672, %v4674, %v4670
        %v4676 = vmul.f32 1.0, %v4675
        %v4677 = vrcp.pop %v2941
        %v4678 = vmul.f32 %v2941, %v4677
        %v4679 = vsub.f32 1.0, %v4678
        %v4680 = vmul.f32 %v4677, %v4679
        %v4681 = vadd.f32 %v4677, %v4680
        %vm4682 = vweird.f32 %v2941
        %vm4683 = vweird.f32 %v4677
        %vm4684 = vmor %vm4682, %vm4683
        %v4685 = vsel %vm4684, %v4677, %v4681
        %v4686 = vand.u32 2147483647, %v2941
        %vm4687 = vcmp.eq.f32.partialorder %v4686, 8.507059e+37
        %v4688 = vand.u32 %v2941, 2147483648
        %v4689 = vor.u32 1.1754944e-38, %v4688
        %v4690 = vsel %vm4687, %v4689, %v4685
        %v4691 = vmul.f32 1.0, %v4690
        %v4692 = vrcp.pop %v2942
        %v4693 = vmul.f32 %v2942, %v4692
        %v4694 = vsub.f32 1.0, %v4693
        %v4695 = vmul.f32 %v4692, %v4694
        %v4696 = vadd.f32 %v4692, %v4695
        %vm4697 = vweird.f32 %v2942
        %vm4698 = vweird.f32 %v4692
        %vm4699 = vmor %vm4697, %vm4698
        %v4700 = vsel %vm4699, %v4692, %v4696
        %v4701 = vand.u32 2147483647, %v2942
        %vm4702 = vcmp.eq.f32.partialorder %v4701, 8.507059e+37
        %v4703 = vand.u32 %v2942, 2147483648
        %v4704 = vor.u32 1.1754944e-38, %v4703
        %v4705 = vsel %vm4702, %v4704, %v4700
        %v4706 = vmul.f32 1.0, %v4705
        %v4707 = vrcp.pop %v2943
        %v4708 = vmul.f32 %v2943, %v4707
        %v4709 = vsub.f32 1.0, %v4708
        %v4710 = vmul.f32 %v4707, %v4709
        %v4711 = vadd.f32 %v4707, %v4710
        %vm4712 = vweird.f32 %v2943
        %vm4713 = vweird.f32 %v4707
        %vm4714 = vmor %vm4712, %vm4713
        %v4715 = vsel %vm4714, %v4707, %v4711
        %v4716 = vand.u32 2147483647, %v2943
        %vm4717 = vcmp.eq.f32.partialorder %v4716, 8.507059e+37
        %v4718 = vand.u32 %v2943, 2147483648
        %v4719 = vor.u32 1.1754944e-38, %v4718
        %v4720 = vsel %vm4717, %v4719, %v4715
        %v4721 = vmul.f32 1.0, %v4720
        %v4722 = vrcp.pop %v2944
        %v4723 = vmul.f32 %v2944, %v4722
        %v4724 = vsub.f32 1.0, %v4723
        %v4725 = vmul.f32 %v4722, %v4724
        %v4726 = vadd.f32 %v4722, %v4725
        %vm4727 = vweird.f32 %v2944
        %vm4728 = vweird.f32 %v4722
        %vm4729 = vmor %vm4727, %vm4728
        %v4730 = vsel %vm4729, %v4722, %v4726
        %v4731 = vand.u32 2147483647, %v2944
        %vm4732 = vcmp.eq.f32.partialorder %v4731, 8.507059e+37
        %v4733 = vand.u32 %v2944, 2147483648
        %v4734 = vor.u32 1.1754944e-38, %v4733
        %v4735 = vsel %vm4732, %v4734, %v4730
        %v4736 = vmul.f32 1.0, %v4735
        %v4737 = vrcp.pop %v2945
        %v4738 = vmul.f32 %v2945, %v4737
        %v4739 = vsub.f32 1.0, %v4738
        %v4740 = vmul.f32 %v4737, %v4739
        %v4741 = vadd.f32 %v4737, %v4740
        %vm4742 = vweird.f32 %v2945
        %vm4743 = vweird.f32 %v4737
        %vm4744 = vmor %vm4742, %vm4743
        %v4745 = vsel %vm4744, %v4737, %v4741
        %v4746 = vand.u32 2147483647, %v2945
        %vm4747 = vcmp.eq.f32.partialorder %v4746, 8.507059e+37
        %v4748 = vand.u32 %v2945, 2147483648
        %v4749 = vor.u32 1.1754944e-38, %v4748
        %v4750 = vsel %vm4747, %v4749, %v4745
        %v4751 = vmul.f32 1.0, %v4750
        %v4752 = vrcp.pop %v2946
        %v4753 = vmul.f32 %v2946, %v4752
        %v4754 = vsub.f32 1.0, %v4753
        %v4755 = vmul.f32 %v4752, %v4754
        %v4756 = vadd.f32 %v4752, %v4755
        %vm4757 = vweird.f32 %v2946
        %vm4758 = vweird.f32 %v4752
        %vm4759 = vmor %vm4757, %vm4758
        %v4760 = vsel %vm4759, %v4752, %v4756
        %v4761 = vand.u32 2147483647, %v2946
        %vm4762 = vcmp.eq.f32.partialorder %v4761, 8.507059e+37
        %v4763 = vand.u32 %v2946, 2147483648
        %v4764 = vor.u32 1.1754944e-38, %v4763
        %v4765 = vsel %vm4762, %v4764, %v4760
        %v4766 = vmul.f32 1.0, %v4765
        %v4767 = vrcp.pop %v2947
        %v4768 = vmul.f32 %v2947, %v4767
        %v4769 = vsub.f32 1.0, %v4768
        %v4770 = vmul.f32 %v4767, %v4769
        %v4771 = vadd.f32 %v4767, %v4770
        %vm4772 = vweird.f32 %v2947
        %vm4773 = vweird.f32 %v4767
        %vm4774 = vmor %vm4772, %vm4773
        %v4775 = vsel %vm4774, %v4767, %v4771
        %v4776 = vand.u32 2147483647, %v2947
        %vm4777 = vcmp.eq.f32.partialorder %v4776, 8.507059e+37
        %v4778 = vand.u32 %v2947, 2147483648
        %v4779 = vor.u32 1.1754944e-38, %v4778
        %v4780 = vsel %vm4777, %v4779, %v4775
        %v4781 = vmul.f32 1.0, %v4780
        %v4782 = vrcp.pop %v2948
        %v4783 = vmul.f32 %v2948, %v4782
        %v4784 = vsub.f32 1.0, %v4783
        %v4785 = vmul.f32 %v4782, %v4784
        %v4786 = vadd.f32 %v4782, %v4785
        %vm4787 = vweird.f32 %v2948
        %vm4788 = vweird.f32 %v4782
        %vm4789 = vmor %vm4787, %vm4788
        %v4790 = vsel %vm4789, %v4782, %v4786
        %v4791 = vand.u32 2147483647, %v2948
        %vm4792 = vcmp.eq.f32.partialorder %v4791, 8.507059e+37
        %v4793 = vand.u32 %v2948, 2147483648
        %v4794 = vor.u32 1.1754944e-38, %v4793
        %v4795 = vsel %vm4792, %v4794, %v4790
        %v4796 = vmul.f32 1.0, %v4795
        %v4797 = vrcp.pop %v2949
        %v4798 = vmul.f32 %v2949, %v4797
        %v4799 = vsub.f32 1.0, %v4798
        %v4800 = vmul.f32 %v4797, %v4799
        %v4801 = vadd.f32 %v4797, %v4800
        %vm4802 = vweird.f32 %v2949
        %vm4803 = vweird.f32 %v4797
        %vm4804 = vmor %vm4802, %vm4803
        %v4805 = vsel %vm4804, %v4797, %v4801
        %v4806 = vand.u32 2147483647, %v2949
        %vm4807 = vcmp.eq.f32.partialorder %v4806, 8.507059e+37
        %v4808 = vand.u32 %v2949, 2147483648
        %v4809 = vor.u32 1.1754944e-38, %v4808
        %v4810 = vsel %vm4807, %v4809, %v4805
        %v4811 = vmul.f32 1.0, %v4810
        %v4812 = vrcp.pop %v2950
        %v4813 = vmul.f32 %v2950, %v4812
        %v4814 = vsub.f32 1.0, %v4813
        %v4815 = vmul.f32 %v4812, %v4814
        %v4816 = vadd.f32 %v4812, %v4815
        %vm4817 = vweird.f32 %v2950
        %vm4818 = vweird.f32 %v4812
        %vm4819 = vmor %vm4817, %vm4818
        %v4820 = vsel %vm4819, %v4812, %v4816
        %v4821 = vand.u32 2147483647, %v2950
        %vm4822 = vcmp.eq.f32.partialorder %v4821, 8.507059e+37
        %v4823 = vand.u32 %v2950, 2147483648
        %v4824 = vor.u32 1.1754944e-38, %v4823
        %v4825 = vsel %vm4822, %v4824, %v4820
        %v4826 = vmul.f32 1.0, %v4825
        %v4827 = vrcp.pop %v2951
        %v4828 = vmul.f32 %v2951, %v4827
        %v4829 = vsub.f32 1.0, %v4828
        %v4830 = vmul.f32 %v4827, %v4829
        %v4831 = vadd.f32 %v4827, %v4830
        %vm4832 = vweird.f32 %v2951
        %vm4833 = vweird.f32 %v4827
        %vm4834 = vmor %vm4832, %vm4833
        %v4835 = vsel %vm4834, %v4827, %v4831
        %v4836 = vand.u32 2147483647, %v2951
        %vm4837 = vcmp.eq.f32.partialorder %v4836, 8.507059e+37
        %v4838 = vand.u32 %v2951, 2147483648
        %v4839 = vor.u32 1.1754944e-38, %v4838
        %v4840 = vsel %vm4837, %v4839, %v4835
        %v4841 = vmul.f32 1.0, %v4840
        %v4842 = vrcp.pop %v2952
        %v4843 = vmul.f32 %v2952, %v4842
        %v4844 = vsub.f32 1.0, %v4843
        %v4845 = vmul.f32 %v4842, %v4844
        %v4846 = vadd.f32 %v4842, %v4845
        %vm4847 = vweird.f32 %v2952
        %vm4848 = vweird.f32 %v4842
        %vm4849 = vmor %vm4847, %vm4848
        %v4850 = vsel %vm4849, %v4842, %v4846
        %v4851 = vand.u32 2147483647, %v2952
        %vm4852 = vcmp.eq.f32.partialorder %v4851, 8.507059e+37
        %v4853 = vand.u32 %v2952, 2147483648
        %v4854 = vor.u32 1.1754944e-38, %v4853
        %v4855 = vsel %vm4852, %v4854, %v4850
        %v4856 = vmul.f32 1.0, %v4855
        %v4857 = vrcp.pop %v2953
        %v4858 = vmul.f32 %v2953, %v4857
        %v4859 = vsub.f32 1.0, %v4858
        %v4860 = vmul.f32 %v4857, %v4859
        %v4861 = vadd.f32 %v4857, %v4860
        %vm4862 = vweird.f32 %v2953
        %vm4863 = vweird.f32 %v4857
        %vm4864 = vmor %vm4862, %vm4863
        %v4865 = vsel %vm4864, %v4857, %v4861
        %v4866 = vand.u32 2147483647, %v2953
        %vm4867 = vcmp.eq.f32.partialorder %v4866, 8.507059e+37
        %v4868 = vand.u32 %v2953, 2147483648
        %v4869 = vor.u32 1.1754944e-38, %v4868
        %v4870 = vsel %vm4867, %v4869, %v4865
        %v4871 = vmul.f32 1.0, %v4870
        %v4872 = vrcp.pop %v2954
        %v4873 = vmul.f32 %v2954, %v4872
        %v4874 = vsub.f32 1.0, %v4873
        %v4875 = vmul.f32 %v4872, %v4874
        %v4876 = vadd.f32 %v4872, %v4875
        %vm4877 = vweird.f32 %v2954
        %vm4878 = vweird.f32 %v4872
        %vm4879 = vmor %vm4877, %vm4878
        %v4880 = vsel %vm4879, %v4872, %v4876
        %v4881 = vand.u32 2147483647, %v2954
        %vm4882 = vcmp.eq.f32.partialorder %v4881, 8.507059e+37
        %v4883 = vand.u32 %v2954, 2147483648
        %v4884 = vor.u32 1.1754944e-38, %v4883
        %v4885 = vsel %vm4882, %v4884, %v4880
        %v4886 = vmul.f32 1.0, %v4885
        %v4887 = vrcp.pop %v2955
        %v4888 = vmul.f32 %v2955, %v4887
        %v4889 = vsub.f32 1.0, %v4888
        %v4890 = vmul.f32 %v4887, %v4889
        %v4891 = vadd.f32 %v4887, %v4890
        %vm4892 = vweird.f32 %v2955
        %vm4893 = vweird.f32 %v4887
        %vm4894 = vmor %vm4892, %vm4893
        %v4895 = vsel %vm4894, %v4887, %v4891
        %v4896 = vand.u32 2147483647, %v2955
        %vm4897 = vcmp.eq.f32.partialorder %v4896, 8.507059e+37
        %v4898 = vand.u32 %v2955, 2147483648
        %v4899 = vor.u32 1.1754944e-38, %v4898
        %v4900 = vsel %vm4897, %v4899, %v4895
        %v4901 = vmul.f32 1.0, %v4900
        %v4902 = vrcp.pop %v2956
        %v4903 = vmul.f32 %v2956, %v4902
        %v4904 = vsub.f32 1.0, %v4903
        %v4905 = vmul.f32 %v4902, %v4904
        %v4906 = vadd.f32 %v4902, %v4905
        %vm4907 = vweird.f32 %v2956
        %vm4908 = vweird.f32 %v4902
        %vm4909 = vmor %vm4907, %vm4908
        %v4910 = vsel %vm4909, %v4902, %v4906
        %v4911 = vand.u32 2147483647, %v2956
        %vm4912 = vcmp.eq.f32.partialorder %v4911, 8.507059e+37
        %v4913 = vand.u32 %v2956, 2147483648
        %v4914 = vor.u32 1.1754944e-38, %v4913
        %v4915 = vsel %vm4912, %v4914, %v4910
        %v4916 = vmul.f32 1.0, %v4915
        %v4917 = vrcp.pop %v2957
        %v4918 = vmul.f32 %v2957, %v4917
        %v4919 = vsub.f32 1.0, %v4918
        %v4920 = vmul.f32 %v4917, %v4919
        %v4921 = vadd.f32 %v4917, %v4920
        %vm4922 = vweird.f32 %v2957
        %vm4923 = vweird.f32 %v4917
        %vm4924 = vmor %vm4922, %vm4923
        %v4925 = vsel %vm4924, %v4917, %v4921
        %v4926 = vand.u32 2147483647, %v2957
        %vm4927 = vcmp.eq.f32.partialorder %v4926, 8.507059e+37
        %v4928 = vand.u32 %v2957, 2147483648
        %v4929 = vor.u32 1.1754944e-38, %v4928
        %v4930 = vsel %vm4927, %v4929, %v4925
        %v4931 = vmul.f32 1.0, %v4930
        %v4932 = vrcp.pop %v2958
        %v4933 = vmul.f32 %v2958, %v4932
        %v4934 = vsub.f32 1.0, %v4933
        %v4935 = vmul.f32 %v4932, %v4934
        %v4936 = vadd.f32 %v4932, %v4935
        %vm4937 = vweird.f32 %v2958
        %vm4938 = vweird.f32 %v4932
        %vm4939 = vmor %vm4937, %vm4938
        %v4940 = vsel %vm4939, %v4932, %v4936
        %v4941 = vand.u32 2147483647, %v2958
        %vm4942 = vcmp.eq.f32.partialorder %v4941, 8.507059e+37
        %v4943 = vand.u32 %v2958, 2147483648
        %v4944 = vor.u32 1.1754944e-38, %v4943
        %v4945 = vsel %vm4942, %v4944, %v4940
        %v4946 = vmul.f32 1.0, %v4945
        %v4947 = vrcp.pop %v2959
        %v4948 = vmul.f32 %v2959, %v4947
        %v4949 = vsub.f32 1.0, %v4948
        %v4950 = vmul.f32 %v4947, %v4949
        %v4951 = vadd.f32 %v4947, %v4950
        %vm4952 = vweird.f32 %v2959
        %vm4953 = vweird.f32 %v4947
        %vm4954 = vmor %vm4952, %vm4953
        %v4955 = vsel %vm4954, %v4947, %v4951
        %v4956 = vand.u32 2147483647, %v2959
        %vm4957 = vcmp.eq.f32.partialorder %v4956, 8.507059e+37
        %v4958 = vand.u32 %v2959, 2147483648
        %v4959 = vor.u32 1.1754944e-38, %v4958
        %v4960 = vsel %vm4957, %v4959, %v4955
        %v4961 = vmul.f32 1.0, %v4960
        %v4962 = vrcp.pop %v2960
        %v4963 = vmul.f32 %v2960, %v4962
        %v4964 = vsub.f32 1.0, %v4963
        %v4965 = vmul.f32 %v4962, %v4964
        %v4966 = vadd.f32 %v4962, %v4965
        %vm4967 = vweird.f32 %v2960
        %vm4968 = vweird.f32 %v4962
        %vm4969 = vmor %vm4967, %vm4968
        %v4970 = vsel %vm4969, %v4962, %v4966
        %v4971 = vand.u32 2147483647, %v2960
        %vm4972 = vcmp.eq.f32.partialorder %v4971, 8.507059e+37
        %v4973 = vand.u32 %v2960, 2147483648
        %v4974 = vor.u32 1.1754944e-38, %v4973
        %v4975 = vsel %vm4972, %v4974, %v4970
        %v4976 = vmul.f32 1.0, %v4975
        %v4977 = vrcp.pop %v2961
        %v4978 = vmul.f32 %v2961, %v4977
        %v4979 = vsub.f32 1.0, %v4978
        %v4980 = vmul.f32 %v4977, %v4979
        %v4981 = vadd.f32 %v4977, %v4980
        %vm4982 = vweird.f32 %v2961
        %vm4983 = vweird.f32 %v4977
        %vm4984 = vmor %vm4982, %vm4983
        %v4985 = vsel %vm4984, %v4977, %v4981
        %v4986 = vand.u32 2147483647, %v2961
        %vm4987 = vcmp.eq.f32.partialorder %v4986, 8.507059e+37
        %v4988 = vand.u32 %v2961, 2147483648
        %v4989 = vor.u32 1.1754944e-38, %v4988
        %v4990 = vsel %vm4987, %v4989, %v4985
        %v4991 = vmul.f32 1.0, %v4990
        %v4992 = vrcp.pop %v2962
        %v4993 = vmul.f32 %v2962, %v4992
        %v4994 = vsub.f32 1.0, %v4993
        %v4995 = vmul.f32 %v4992, %v4994
        %v4996 = vadd.f32 %v4992, %v4995
        %vm4997 = vweird.f32 %v2962
        %vm4998 = vweird.f32 %v4992
        %vm4999 = vmor %vm4997, %vm4998
        %v5000 = vsel %vm4999, %v4992, %v4996
        %v5001 = vand.u32 2147483647, %v2962
        %vm5002 = vcmp.eq.f32.partialorder %v5001, 8.507059e+37
        %v5003 = vand.u32 %v2962, 2147483648
        %v5004 = vor.u32 1.1754944e-38, %v5003
        %v5005 = vsel %vm5002, %v5004, %v5000
        %v5006 = vmul.f32 1.0, %v5005
        %v5007 = vrcp.pop %v2963
        %v5008 = vmul.f32 %v2963, %v5007
        %v5009 = vsub.f32 1.0, %v5008
        %v5010 = vmul.f32 %v5007, %v5009
        %v5011 = vadd.f32 %v5007, %v5010
        %vm5012 = vweird.f32 %v2963
        %vm5013 = vweird.f32 %v5007
        %vm5014 = vmor %vm5012, %vm5013
        %v5015 = vsel %vm5014, %v5007, %v5011
        %v5016 = vand.u32 2147483647, %v2963
        %vm5017 = vcmp.eq.f32.partialorder %v5016, 8.507059e+37
        %v5018 = vand.u32 %v2963, 2147483648
        %v5019 = vor.u32 1.1754944e-38, %v5018
        %v5020 = vsel %vm5017, %v5019, %v5015
        %v5021 = vmul.f32 1.0, %v5020
        %v5022 = vrcp.pop %v2964
        %v5023 = vmul.f32 %v2964, %v5022
        %v5024 = vsub.f32 1.0, %v5023
        %v5025 = vmul.f32 %v5022, %v5024
        %v5026 = vadd.f32 %v5022, %v5025
        %vm5027 = vweird.f32 %v2964
        %vm5028 = vweird.f32 %v5022
        %vm5029 = vmor %vm5027, %vm5028
        %v5030 = vsel %vm5029, %v5022, %v5026
        %v5031 = vand.u32 2147483647, %v2964
        %vm5032 = vcmp.eq.f32.partialorder %v5031, 8.507059e+37
        %v5033 = vand.u32 %v2964, 2147483648
        %v5034 = vor.u32 1.1754944e-38, %v5033
        %v5035 = vsel %vm5032, %v5034, %v5030
        %v5036 = vmul.f32 1.0, %v5035
        %v5037 = vrcp.pop %v2965
        %v5038 = vmul.f32 %v2965, %v5037
        %v5039 = vsub.f32 1.0, %v5038
        %v5040 = vmul.f32 %v5037, %v5039
        %v5041 = vadd.f32 %v5037, %v5040
        %vm5042 = vweird.f32 %v2965
        %vm5043 = vweird.f32 %v5037
        %vm5044 = vmor %vm5042, %vm5043
        %v5045 = vsel %vm5044, %v5037, %v5041
        %v5046 = vand.u32 2147483647, %v2965
        %vm5047 = vcmp.eq.f32.partialorder %v5046, 8.507059e+37
        %v5048 = vand.u32 %v2965, 2147483648
        %v5049 = vor.u32 1.1754944e-38, %v5048
        %v5050 = vsel %vm5047, %v5049, %v5045
        %v5051 = vmul.f32 1.0, %v5050
        %v5052 = vrcp.pop %v2966
        %v5053 = vmul.f32 %v2966, %v5052
        %v5054 = vsub.f32 1.0, %v5053
        %v5055 = vmul.f32 %v5052, %v5054
        %v5056 = vadd.f32 %v5052, %v5055
        %vm5057 = vweird.f32 %v2966
        %vm5058 = vweird.f32 %v5052
        %vm5059 = vmor %vm5057, %vm5058
        %v5060 = vsel %vm5059, %v5052, %v5056
        %v5061 = vand.u32 2147483647, %v2966
        %vm5062 = vcmp.eq.f32.partialorder %v5061, 8.507059e+37
        %v5063 = vand.u32 %v2966, 2147483648
        %v5064 = vor.u32 1.1754944e-38, %v5063
        %v5065 = vsel %vm5062, %v5064, %v5060
        %v5066 = vmul.f32 1.0, %v5065
        %v5067 = vrcp.pop %v2967
        %v5068 = vmul.f32 %v2967, %v5067
        %v5069 = vsub.f32 1.0, %v5068
        %v5070 = vmul.f32 %v5067, %v5069
        %v5071 = vadd.f32 %v5067, %v5070
        %vm5072 = vweird.f32 %v2967
        %vm5073 = vweird.f32 %v5067
        %vm5074 = vmor %vm5072, %vm5073
        %v5075 = vsel %vm5074, %v5067, %v5071
        %v5076 = vand.u32 2147483647, %v2967
        %vm5077 = vcmp.eq.f32.partialorder %v5076, 8.507059e+37
        %v5078 = vand.u32 %v2967, 2147483648
        %v5079 = vor.u32 1.1754944e-38, %v5078
        %v5080 = vsel %vm5077, %v5079, %v5075
        %v5081 = vmul.f32 1.0, %v5080
        %v5082 = vrcp.pop %v2968
        %v5083 = vmul.f32 %v2968, %v5082
        %v5084 = vsub.f32 1.0, %v5083
        %v5085 = vmul.f32 %v5082, %v5084
        %v5086 = vadd.f32 %v5082, %v5085
        %vm5087 = vweird.f32 %v2968
        %vm5088 = vweird.f32 %v5082
        %vm5089 = vmor %vm5087, %vm5088
        %v5090 = vsel %vm5089, %v5082, %v5086
        %v5091 = vand.u32 2147483647, %v2968
        %vm5092 = vcmp.eq.f32.partialorder %v5091, 8.507059e+37
        %v5093 = vand.u32 %v2968, 2147483648
        %v5094 = vor.u32 1.1754944e-38, %v5093
        %v5095 = vsel %vm5092, %v5094, %v5090
        %v5096 = vmul.f32 1.0, %v5095
        %v5097 = vrcp.pop %v2969
        %v5098 = vmul.f32 %v2969, %v5097
        %v5099 = vsub.f32 1.0, %v5098
        %v5100 = vmul.f32 %v5097, %v5099
        %v5101 = vadd.f32 %v5097, %v5100
        %vm5102 = vweird.f32 %v2969
        %vm5103 = vweird.f32 %v5097
        %vm5104 = vmor %vm5102, %vm5103
        %v5105 = vsel %vm5104, %v5097, %v5101
        %v5106 = vand.u32 2147483647, %v2969
        %vm5107 = vcmp.eq.f32.partialorder %v5106, 8.507059e+37
        %v5108 = vand.u32 %v2969, 2147483648
        %v5109 = vor.u32 1.1754944e-38, %v5108
        %v5110 = vsel %vm5107, %v5109, %v5105
        %v5111 = vmul.f32 1.0, %v5110
        %v5112 = vrcp.pop %v2970
        %v5113 = vmul.f32 %v2970, %v5112
        %v5114 = vsub.f32 1.0, %v5113
        %v5115 = vmul.f32 %v5112, %v5114
        %v5116 = vadd.f32 %v5112, %v5115
        %vm5117 = vweird.f32 %v2970
        %vm5118 = vweird.f32 %v5112
        %vm5119 = vmor %vm5117, %vm5118
        %v5120 = vsel %vm5119, %v5112, %v5116
        %v5121 = vand.u32 2147483647, %v2970
        %vm5122 = vcmp.eq.f32.partialorder %v5121, 8.507059e+37
        %v5123 = vand.u32 %v2970, 2147483648
        %v5124 = vor.u32 1.1754944e-38, %v5123
        %v5125 = vsel %vm5122, %v5124, %v5120
        %v5126 = vmul.f32 1.0, %v5125
        %v5127 = vrcp.pop %v2971
        %v5128 = vmul.f32 %v2971, %v5127
        %v5129 = vsub.f32 1.0, %v5128
        %v5130 = vmul.f32 %v5127, %v5129
        %v5131 = vadd.f32 %v5127, %v5130
        %vm5132 = vweird.f32 %v2971
        %vm5133 = vweird.f32 %v5127
        %vm5134 = vmor %vm5132, %vm5133
        %v5135 = vsel %vm5134, %v5127, %v5131
        %v5136 = vand.u32 2147483647, %v2971
        %vm5137 = vcmp.eq.f32.partialorder %v5136, 8.507059e+37
        %v5138 = vand.u32 %v2971, 2147483648
        %v5139 = vor.u32 1.1754944e-38, %v5138
        %v5140 = vsel %vm5137, %v5139, %v5135
        %v5141 = vmul.f32 1.0, %v5140
        %v5142 = vrcp.pop %v2972
        %v5143 = vmul.f32 %v2972, %v5142
        %v5144 = vsub.f32 1.0, %v5143
        %v5145 = vmul.f32 %v5142, %v5144
        %v5146 = vadd.f32 %v5142, %v5145
        %vm5147 = vweird.f32 %v2972
        %vm5148 = vweird.f32 %v5142
        %vm5149 = vmor %vm5147, %vm5148
        %v5150 = vsel %vm5149, %v5142, %v5146
        %v5151 = vand.u32 2147483647, %v2972
        %vm5152 = vcmp.eq.f32.partialorder %v5151, 8.507059e+37
        %v5153 = vand.u32 %v2972, 2147483648
        %v5154 = vor.u32 1.1754944e-38, %v5153
        %v5155 = vsel %vm5152, %v5154, %v5150
        %v5156 = vmul.f32 1.0, %v5155
        %v5157 = vrcp.pop %v2973
        %v5158 = vmul.f32 %v2973, %v5157
        %v5159 = vsub.f32 1.0, %v5158
        %v5160 = vmul.f32 %v5157, %v5159
        %v5161 = vadd.f32 %v5157, %v5160
        %vm5162 = vweird.f32 %v2973
        %vm5163 = vweird.f32 %v5157
        %vm5164 = vmor %vm5162, %vm5163
        %v5165 = vsel %vm5164, %v5157, %v5161
        %v5166 = vand.u32 2147483647, %v2973
        %vm5167 = vcmp.eq.f32.partialorder %v5166, 8.507059e+37
        %v5168 = vand.u32 %v2973, 2147483648
        %v5169 = vor.u32 1.1754944e-38, %v5168
        %v5170 = vsel %vm5167, %v5169, %v5165
        %v5171 = vmul.f32 1.0, %v5170
        %v5172 = vrcp.pop %v2974
        %v5173 = vmul.f32 %v2974, %v5172
        %v5174 = vsub.f32 1.0, %v5173
        %v5175 = vmul.f32 %v5172, %v5174
        %v5176 = vadd.f32 %v5172, %v5175
        %vm5177 = vweird.f32 %v2974
        %vm5178 = vweird.f32 %v5172
        %vm5179 = vmor %vm5177, %vm5178
        %v5180 = vsel %vm5179, %v5172, %v5176
        %v5181 = vand.u32 2147483647, %v2974
        %vm5182 = vcmp.eq.f32.partialorder %v5181, 8.507059e+37
        %v5183 = vand.u32 %v2974, 2147483648
        %v5184 = vor.u32 1.1754944e-38, %v5183
        %v5185 = vsel %vm5182, %v5184, %v5180
        %v5186 = vmul.f32 1.0, %v5185
        %v5187 = vrcp.pop %v2975
        %v5188 = vmul.f32 %v2975, %v5187
        %v5189 = vsub.f32 1.0, %v5188
        %v5190 = vmul.f32 %v5187, %v5189
        %v5191 = vadd.f32 %v5187, %v5190
        %vm5192 = vweird.f32 %v2975
        %vm5193 = vweird.f32 %v5187
        %vm5194 = vmor %vm5192, %vm5193
        %v5195 = vsel %vm5194, %v5187, %v5191
        %v5196 = vand.u32 2147483647, %v2975
        %vm5197 = vcmp.eq.f32.partialorder %v5196, 8.507059e+37
        %v5198 = vand.u32 %v2975, 2147483648
        %v5199 = vor.u32 1.1754944e-38, %v5198
        %v5200 = vsel %vm5197, %v5199, %v5195
        %v5201 = vmul.f32 1.0, %v5200
        %v5202 = vrcp.pop %v2976
        %v5203 = vmul.f32 %v2976, %v5202
        %v5204 = vsub.f32 1.0, %v5203
        %v5205 = vmul.f32 %v5202, %v5204
        %v5206 = vadd.f32 %v5202, %v5205
        %vm5207 = vweird.f32 %v2976
        %vm5208 = vweird.f32 %v5202
        %vm5209 = vmor %vm5207, %vm5208
        %v5210 = vsel %vm5209, %v5202, %v5206
        %v5211 = vand.u32 2147483647, %v2976
        %vm5212 = vcmp.eq.f32.partialorder %v5211, 8.507059e+37
        %v5213 = vand.u32 %v2976, 2147483648
        %v5214 = vor.u32 1.1754944e-38, %v5213
        %v5215 = vsel %vm5212, %v5214, %v5210
        %v5216 = vmul.f32 1.0, %v5215
        %v5217 = vrcp.pop %v2977
        %v5218 = vmul.f32 %v2977, %v5217
        %v5219 = vsub.f32 1.0, %v5218
        %v5220 = vmul.f32 %v5217, %v5219
        %v5221 = vadd.f32 %v5217, %v5220
        %vm5222 = vweird.f32 %v2977
        %vm5223 = vweird.f32 %v5217
        %vm5224 = vmor %vm5222, %vm5223
        %v5225 = vsel %vm5224, %v5217, %v5221
        %v5226 = vand.u32 2147483647, %v2977
        %vm5227 = vcmp.eq.f32.partialorder %v5226, 8.507059e+37
        %v5228 = vand.u32 %v2977, 2147483648
        %v5229 = vor.u32 1.1754944e-38, %v5228
        %v5230 = vsel %vm5227, %v5229, %v5225
        %v5231 = vmul.f32 1.0, %v5230
        %v5232 = vrcp.pop %v2978
        %v5233 = vmul.f32 %v2978, %v5232
        %v5234 = vsub.f32 1.0, %v5233
        %v5235 = vmul.f32 %v5232, %v5234
        %v5236 = vadd.f32 %v5232, %v5235
        %vm5237 = vweird.f32 %v2978
        %vm5238 = vweird.f32 %v5232
        %vm5239 = vmor %vm5237, %vm5238
        %v5240 = vsel %vm5239, %v5232, %v5236
        %v5241 = vand.u32 2147483647, %v2978
        %vm5242 = vcmp.eq.f32.partialorder %v5241, 8.507059e+37
        %v5243 = vand.u32 %v2978, 2147483648
        %v5244 = vor.u32 1.1754944e-38, %v5243
        %v5245 = vsel %vm5242, %v5244, %v5240
        %v5246 = vmul.f32 1.0, %v5245
        %v5247 = vrcp.pop %v2979
        %v5248 = vmul.f32 %v2979, %v5247
        %v5249 = vsub.f32 1.0, %v5248
        %v5250 = vmul.f32 %v5247, %v5249
        %v5251 = vadd.f32 %v5247, %v5250
        %vm5252 = vweird.f32 %v2979
        %vm5253 = vweird.f32 %v5247
        %vm5254 = vmor %vm5252, %vm5253
        %v5255 = vsel %vm5254, %v5247, %v5251
        %v5256 = vand.u32 2147483647, %v2979
        %vm5257 = vcmp.eq.f32.partialorder %v5256, 8.507059e+37
        %v5258 = vand.u32 %v2979, 2147483648
        %v5259 = vor.u32 1.1754944e-38, %v5258
        %v5260 = vsel %vm5257, %v5259, %v5255
        %v5261 = vmul.f32 1.0, %v5260
        %v5262 = vrcp.pop %v2980
        %v5263 = vmul.f32 %v2980, %v5262
        %v5264 = vsub.f32 1.0, %v5263
        %v5265 = vmul.f32 %v5262, %v5264
        %v5266 = vadd.f32 %v5262, %v5265
        %vm5267 = vweird.f32 %v2980
        %vm5268 = vweird.f32 %v5262
        %vm5269 = vmor %vm5267, %vm5268
        %v5270 = vsel %vm5269, %v5262, %v5266
        %v5271 = vand.u32 2147483647, %v2980
        %vm5272 = vcmp.eq.f32.partialorder %v5271, 8.507059e+37
        %v5273 = vand.u32 %v2980, 2147483648
        %v5274 = vor.u32 1.1754944e-38, %v5273
        %v5275 = vsel %vm5272, %v5274, %v5270
        %v5276 = vmul.f32 1.0, %v5275
        %v5277 = vrcp.pop %v2981
        %v5278 = vmul.f32 %v2981, %v5277
        %v5279 = vsub.f32 1.0, %v5278
        %v5280 = vmul.f32 %v5277, %v5279
        %v5281 = vadd.f32 %v5277, %v5280
        %vm5282 = vweird.f32 %v2981
        %vm5283 = vweird.f32 %v5277
        %vm5284 = vmor %vm5282, %vm5283
        %v5285 = vsel %vm5284, %v5277, %v5281
        %v5286 = vand.u32 2147483647, %v2981
        %vm5287 = vcmp.eq.f32.partialorder %v5286, 8.507059e+37
        %v5288 = vand.u32 %v2981, 2147483648
        %v5289 = vor.u32 1.1754944e-38, %v5288
        %v5290 = vsel %vm5287, %v5289, %v5285
        %v5291 = vmul.f32 1.0, %v5290
        %v5292 = vrcp.pop %v2982
        %v5293 = vmul.f32 %v2982, %v5292
        %v5294 = vsub.f32 1.0, %v5293
        %v5295 = vmul.f32 %v5292, %v5294
        %v5296 = vadd.f32 %v5292, %v5295
        %vm5297 = vweird.f32 %v2982
        %vm5298 = vweird.f32 %v5292
        %vm5299 = vmor %vm5297, %vm5298
        %v5300 = vsel %vm5299, %v5292, %v5296
        %v5301 = vand.u32 2147483647, %v2982
        %vm5302 = vcmp.eq.f32.partialorder %v5301, 8.507059e+37
        %v5303 = vand.u32 %v2982, 2147483648
        %v5304 = vor.u32 1.1754944e-38, %v5303
        %v5305 = vsel %vm5302, %v5304, %v5300
        %v5306 = vmul.f32 1.0, %v5305
        %v5307 = vrcp.pop %v2983
        %v5308 = vmul.f32 %v2983, %v5307
        %v5309 = vsub.f32 1.0, %v5308
        %v5310 = vmul.f32 %v5307, %v5309
        %v5311 = vadd.f32 %v5307, %v5310
        %vm5312 = vweird.f32 %v2983
        %vm5313 = vweird.f32 %v5307
        %vm5314 = vmor %vm5312, %vm5313
        %v5315 = vsel %vm5314, %v5307, %v5311
        %v5316 = vand.u32 2147483647, %v2983
        %vm5317 = vcmp.eq.f32.partialorder %v5316, 8.507059e+37
        %v5318 = vand.u32 %v2983, 2147483648
        %v5319 = vor.u32 1.1754944e-38, %v5318
        %v5320 = vsel %vm5317, %v5319, %v5315
        %v5321 = vmul.f32 1.0, %v5320
        %v5322 = vrcp.pop %v2984
        %v5323 = vmul.f32 %v2984, %v5322
        %v5324 = vsub.f32 1.0, %v5323
        %v5325 = vmul.f32 %v5322, %v5324
        %v5326 = vadd.f32 %v5322, %v5325
        %vm5327 = vweird.f32 %v2984
        %vm5328 = vweird.f32 %v5322
        %vm5329 = vmor %vm5327, %vm5328
        %v5330 = vsel %vm5329, %v5322, %v5326
        %v5331 = vand.u32 2147483647, %v2984
        %vm5332 = vcmp.eq.f32.partialorder %v5331, 8.507059e+37
        %v5333 = vand.u32 %v2984, 2147483648
        %v5334 = vor.u32 1.1754944e-38, %v5333
        %v5335 = vsel %vm5332, %v5334, %v5330
        %v5336 = vmul.f32 1.0, %v5335
        %v5337 = vrcp.pop %v2985
        %v5338 = vmul.f32 %v2985, %v5337
        %v5339 = vsub.f32 1.0, %v5338
        %v5340 = vmul.f32 %v5337, %v5339
        %v5341 = vadd.f32 %v5337, %v5340
        %vm5342 = vweird.f32 %v2985
        %vm5343 = vweird.f32 %v5337
        %vm5344 = vmor %vm5342, %vm5343
        %v5345 = vsel %vm5344, %v5337, %v5341
        %v5346 = vand.u32 2147483647, %v2985
        %vm5347 = vcmp.eq.f32.partialorder %v5346, 8.507059e+37
        %v5348 = vand.u32 %v2985, 2147483648
        %v5349 = vor.u32 1.1754944e-38, %v5348
        %v5350 = vsel %vm5347, %v5349, %v5345
        %v5351 = vmul.f32 1.0, %v5350
        %v5352 = vrcp.pop %v2986
        %v5353 = vmul.f32 %v2986, %v5352
        %v5354 = vsub.f32 1.0, %v5353
        %v5355 = vmul.f32 %v5352, %v5354
        %v5356 = vadd.f32 %v5352, %v5355
        %vm5357 = vweird.f32 %v2986
        %vm5358 = vweird.f32 %v5352
        %vm5359 = vmor %vm5357, %vm5358
        %v5360 = vsel %vm5359, %v5352, %v5356
        %v5361 = vand.u32 2147483647, %v2986
        %vm5362 = vcmp.eq.f32.partialorder %v5361, 8.507059e+37
        %v5363 = vand.u32 %v2986, 2147483648
        %v5364 = vor.u32 1.1754944e-38, %v5363
        %v5365 = vsel %vm5362, %v5364, %v5360
        %v5366 = vmul.f32 1.0, %v5365
        %v5367 = vrcp.pop %v2987
        %v5368 = vmul.f32 %v2987, %v5367
        %v5369 = vsub.f32 1.0, %v5368
        %v5370 = vmul.f32 %v5367, %v5369
        %v5371 = vadd.f32 %v5367, %v5370
        %vm5372 = vweird.f32 %v2987
        %vm5373 = vweird.f32 %v5367
        %vm5374 = vmor %vm5372, %vm5373
        %v5375 = vsel %vm5374, %v5367, %v5371
        %v5376 = vand.u32 2147483647, %v2987
        %vm5377 = vcmp.eq.f32.partialorder %v5376, 8.507059e+37
        %v5378 = vand.u32 %v2987, 2147483648
        %v5379 = vor.u32 1.1754944e-38, %v5378
        %v5380 = vsel %vm5377, %v5379, %v5375
        %v5381 = vmul.f32 1.0, %v5380
        %v5382 = vrcp.pop %v2988
        %v5383 = vmul.f32 %v2988, %v5382
        %v5384 = vsub.f32 1.0, %v5383
        %v5385 = vmul.f32 %v5382, %v5384
        %v5386 = vadd.f32 %v5382, %v5385
        %vm5387 = vweird.f32 %v2988
        %vm5388 = vweird.f32 %v5382
        %vm5389 = vmor %vm5387, %vm5388
        %v5390 = vsel %vm5389, %v5382, %v5386
        %v5391 = vand.u32 2147483647, %v2988
        %vm5392 = vcmp.eq.f32.partialorder %v5391, 8.507059e+37
        %v5393 = vand.u32 %v2988, 2147483648
        %v5394 = vor.u32 1.1754944e-38, %v5393
        %v5395 = vsel %vm5392, %v5394, %v5390
        %v5396 = vmul.f32 1.0, %v5395
        %v5397 = vrcp.pop %v2989
        %v5398 = vmul.f32 %v2989, %v5397
        %v5399 = vsub.f32 1.0, %v5398
        %v5400 = vmul.f32 %v5397, %v5399
        %v5401 = vadd.f32 %v5397, %v5400
        %vm5402 = vweird.f32 %v2989
        %vm5403 = vweird.f32 %v5397
        %vm5404 = vmor %vm5402, %vm5403
        %v5405 = vsel %vm5404, %v5397, %v5401
        %v5406 = vand.u32 2147483647, %v2989
        %vm5407 = vcmp.eq.f32.partialorder %v5406, 8.507059e+37
        %v5408 = vand.u32 %v2989, 2147483648
        %v5409 = vor.u32 1.1754944e-38, %v5408
        %v5410 = vsel %vm5407, %v5409, %v5405
        %v5411 = vmul.f32 1.0, %v5410
        %v5412 = vrcp.pop %v2990
        %v5413 = vmul.f32 %v2990, %v5412
        %v5414 = vsub.f32 1.0, %v5413
        %v5415 = vmul.f32 %v5412, %v5414
        %v5416 = vadd.f32 %v5412, %v5415
        %vm5417 = vweird.f32 %v2990
        %vm5418 = vweird.f32 %v5412
        %vm5419 = vmor %vm5417, %vm5418
        %v5420 = vsel %vm5419, %v5412, %v5416
        %v5421 = vand.u32 2147483647, %v2990
        %vm5422 = vcmp.eq.f32.partialorder %v5421, 8.507059e+37
        %v5423 = vand.u32 %v2990, 2147483648
        %v5424 = vor.u32 1.1754944e-38, %v5423
        %v5425 = vsel %vm5422, %v5424, %v5420
        %v5426 = vmul.f32 1.0, %v5425
        %v5427 = vrcp.pop %v2991
        %v5428 = vmul.f32 %v2991, %v5427
        %v5429 = vsub.f32 1.0, %v5428
        %v5430 = vmul.f32 %v5427, %v5429
        %v5431 = vadd.f32 %v5427, %v5430
        %vm5432 = vweird.f32 %v2991
        %vm5433 = vweird.f32 %v5427
        %vm5434 = vmor %vm5432, %vm5433
        %v5435 = vsel %vm5434, %v5427, %v5431
        %v5436 = vand.u32 2147483647, %v2991
        %vm5437 = vcmp.eq.f32.partialorder %v5436, 8.507059e+37
        %v5438 = vand.u32 %v2991, 2147483648
        %v5439 = vor.u32 1.1754944e-38, %v5438
        %v5440 = vsel %vm5437, %v5439, %v5435
        %v5441 = vmul.f32 1.0, %v5440
        %v5442 = vrcp.pop %v2992
        %v5443 = vmul.f32 %v2992, %v5442
        %v5444 = vsub.f32 1.0, %v5443
        %v5445 = vmul.f32 %v5442, %v5444
        %v5446 = vadd.f32 %v5442, %v5445
        %vm5447 = vweird.f32 %v2992
        %vm5448 = vweird.f32 %v5442
        %vm5449 = vmor %vm5447, %vm5448
        %v5450 = vsel %vm5449, %v5442, %v5446
        %v5451 = vand.u32 2147483647, %v2992
        %vm5452 = vcmp.eq.f32.partialorder %v5451, 8.507059e+37
        %v5453 = vand.u32 %v2992, 2147483648
        %v5454 = vor.u32 1.1754944e-38, %v5453
        %v5455 = vsel %vm5452, %v5454, %v5450
        %v5456 = vmul.f32 1.0, %v5455
        %v5457 = vrcp.pop %v2993
        %v5458 = vmul.f32 %v2993, %v5457
        %v5459 = vsub.f32 1.0, %v5458
        %v5460 = vmul.f32 %v5457, %v5459
        %v5461 = vadd.f32 %v5457, %v5460
        %vm5462 = vweird.f32 %v2993
        %vm5463 = vweird.f32 %v5457
        %vm5464 = vmor %vm5462, %vm5463
        %v5465 = vsel %vm5464, %v5457, %v5461
        %v5466 = vand.u32 2147483647, %v2993
        %vm5467 = vcmp.eq.f32.partialorder %v5466, 8.507059e+37
        %v5468 = vand.u32 %v2993, 2147483648
        %v5469 = vor.u32 1.1754944e-38, %v5468
        %v5470 = vsel %vm5467, %v5469, %v5465
        %v5471 = vmul.f32 1.0, %v5470
        %v5472 = vrcp.pop %v2994
        %v5473 = vmul.f32 %v2994, %v5472
        %v5474 = vsub.f32 1.0, %v5473
        %v5475 = vmul.f32 %v5472, %v5474
        %v5476 = vadd.f32 %v5472, %v5475
        %vm5477 = vweird.f32 %v2994
        %vm5478 = vweird.f32 %v5472
        %vm5479 = vmor %vm5477, %vm5478
        %v5480 = vsel %vm5479, %v5472, %v5476
        %v5481 = vand.u32 2147483647, %v2994
        %vm5482 = vcmp.eq.f32.partialorder %v5481, 8.507059e+37
        %v5483 = vand.u32 %v2994, 2147483648
        %v5484 = vor.u32 1.1754944e-38, %v5483
        %v5485 = vsel %vm5482, %v5484, %v5480
        %v5486 = vmul.f32 1.0, %v5485
        %v5487 = vrcp.pop %v2995
        %v5488 = vmul.f32 %v2995, %v5487
        %v5489 = vsub.f32 1.0, %v5488
        %v5490 = vmul.f32 %v5487, %v5489
        %v5491 = vadd.f32 %v5487, %v5490
        %vm5492 = vweird.f32 %v2995
        %vm5493 = vweird.f32 %v5487
        %vm5494 = vmor %vm5492, %vm5493
        %v5495 = vsel %vm5494, %v5487, %v5491
        %v5496 = vand.u32 2147483647, %v2995
        %vm5497 = vcmp.eq.f32.partialorder %v5496, 8.507059e+37
        %v5498 = vand.u32 %v2995, 2147483648
        %v5499 = vor.u32 1.1754944e-38, %v5498
        %v5500 = vsel %vm5497, %v5499, %v5495
        %v5501 = vmul.f32 1.0, %v5500
        %v5502 = vrcp.pop %v2996
        %v5503 = vmul.f32 %v2996, %v5502
        %v5504 = vsub.f32 1.0, %v5503
        %v5505 = vmul.f32 %v5502, %v5504
        %v5506 = vadd.f32 %v5502, %v5505
        %vm5507 = vweird.f32 %v2996
        %vm5508 = vweird.f32 %v5502
        %vm5509 = vmor %vm5507, %vm5508
        %v5510 = vsel %vm5509, %v5502, %v5506
        %v5511 = vand.u32 2147483647, %v2996
        %vm5512 = vcmp.eq.f32.partialorder %v5511, 8.507059e+37
        %v5513 = vand.u32 %v2996, 2147483648
        %v5514 = vor.u32 1.1754944e-38, %v5513
        %v5515 = vsel %vm5512, %v5514, %v5510
        %v5516 = vmul.f32 1.0, %v5515
        %5517 = vst [vmem:[%s274] sm:$0xff] %v3011
        %5518 = vst [vmem:[%s274 + $0x8] sm:$0xff] %v3026
        %5519 = vst [vmem:[%s274 + $0x10] sm:$0xff] %v3041
        %5520 = vst [vmem:[%s274 + $0x18] sm:$0xff] %v3056
        %5521 = vst [vmem:[%s274 + $0x20] sm:$0xff] %v3071
        %5522 = vst [vmem:[%s274 + $0x28] sm:$0xff] %v3086
        %vm5523 = vcmask 130048
        %5524 = vst.msk [vmem:[%s274 + $0x30] sm:$0xff] %vm5523, %v3101
        %5525 = vst [vmem:[%s274 + $0x38] sm:$0xff] %v3116
        %5526 = vst [vmem:[%s274 + $0x40] sm:$0xff] %v3131
        %5527 = vst [vmem:[%s274 + $0x48] sm:$0xff] %v3146
        %5528 = vst [vmem:[%s274 + $0x50] sm:$0xff] %v3161
        %5529 = vst [vmem:[%s274 + $0x58] sm:$0xff] %v3176
        %5530 = vst [vmem:[%s274 + $0x60] sm:$0xff] %v3191
        %5531 = vst.msk [vmem:[%s274 + $0x68] sm:$0xff] %vm5523, %v3206
        %5532 = vst [vmem:[%s274 + $0x70] sm:$0xff] %v3221
        %5533 = vst [vmem:[%s274 + $0x78] sm:$0xff] %v3236
        %5534 = vst [vmem:[%s274 + $0x80] sm:$0xff] %v3251
        %5535 = vst [vmem:[%s274 + $0x88] sm:$0xff] %v3266
        %5536 = vst [vmem:[%s274 + $0x90] sm:$0xff] %v3281
        %5537 = vst [vmem:[%s274 + $0x98] sm:$0xff] %v3296
        %5538 = vst.msk [vmem:[%s274 + $0xa0] sm:$0xff] %vm5523, %v3311
        %5539 = vst [vmem:[%s274 + $0xa8] sm:$0xff] %v3326
        %5540 = vst [vmem:[%s274 + $0xb0] sm:$0xff] %v3341
        %5541 = vst [vmem:[%s274 + $0xb8] sm:$0xff] %v3356
        %5542 = vst [vmem:[%s274 + $0xc0] sm:$0xff] %v3371
        %5543 = vst [vmem:[%s274 + $0xc8] sm:$0xff] %v3386
        %5544 = vst [vmem:[%s274 + $0xd0] sm:$0xff] %v3401
        %5545 = vst.msk [vmem:[%s274 + $0xd8] sm:$0xff] %vm5523, %v3416
        %5546 = vst [vmem:[%s274 + $0xe0] sm:$0xff] %v3431
        %5547 = vst [vmem:[%s274 + $0xe8] sm:$0xff] %v3446
        %5548 = vst [vmem:[%s274 + $0xf0] sm:$0xff] %v3461
        %5549 = vst [vmem:[%s274 + $0xf8] sm:$0xff] %v3476
        %5550 = vst [vmem:[%s274 + $0x100] sm:$0xff] %v3491
        %5551 = vst [vmem:[%s274 + $0x108] sm:$0xff] %v3506
        %5552 = vst.msk [vmem:[%s274 + $0x110] sm:$0xff] %vm5523, %v3521
        %5553 = vst [vmem:[%s274 + $0x118] sm:$0xff] %v3536
        %5554 = vst [vmem:[%s274 + $0x120] sm:$0xff] %v3551
        %5555 = vst [vmem:[%s274 + $0x128] sm:$0xff] %v3566
        %5556 = vst [vmem:[%s274 + $0x130] sm:$0xff] %v3581
        %5557 = vst [vmem:[%s274 + $0x138] sm:$0xff] %v3596
        %5558 = vst [vmem:[%s274 + $0x140] sm:$0xff] %v3611
        %5559 = vst.msk [vmem:[%s274 + $0x148] sm:$0xff] %vm5523, %v3626
        %5560 = vst [vmem:[%s274 + $0x150] sm:$0xff] %v3641
        %5561 = vst [vmem:[%s274 + $0x158] sm:$0xff] %v3656
        %5562 = vst [vmem:[%s274 + $0x160] sm:$0xff] %v3671
        %5563 = vst [vmem:[%s274 + $0x168] sm:$0xff] %v3686
        %5564 = vst [vmem:[%s274 + $0x170] sm:$0xff] %v3701
        %5565 = vst [vmem:[%s274 + $0x178] sm:$0xff] %v3716
        %5566 = vst.msk [vmem:[%s274 + $0x180] sm:$0xff] %vm5523, %v3731
        %5567 = vst [vmem:[%s274 + $0x188] sm:$0xff] %v3746
        %5568 = vst [vmem:[%s274 + $0x190] sm:$0xff] %v3761
        %5569 = vst [vmem:[%s274 + $0x198] sm:$0xff] %v3776
        %5570 = vst [vmem:[%s274 + $0x1a0] sm:$0xff] %v3791
        %5571 = vst [vmem:[%s274 + $0x1a8] sm:$0xff] %v3806
        %5572 = vst [vmem:[%s274 + $0x1b0] sm:$0xff] %v3821
        %5573 = vst.msk [vmem:[%s274 + $0x1b8] sm:$0xff] %vm5523, %v3836
        %5574 = vst [vmem:[%s274 + $0x1c0] sm:$0xff] %v3851
        %5575 = vst [vmem:[%s274 + $0x1c8] sm:$0xff] %v3866
        %5576 = vst [vmem:[%s274 + $0x1d0] sm:$0xff] %v3881
        %5577 = vst [vmem:[%s274 + $0x1d8] sm:$0xff] %v3896
        %5578 = vst [vmem:[%s274 + $0x1e0] sm:$0xff] %v3911
        %5579 = vst [vmem:[%s274 + $0x1e8] sm:$0xff] %v3926
        %5580 = vst.msk [vmem:[%s274 + $0x1f0] sm:$0xff] %vm5523, %v3941
        %5581 = vst [vmem:[%s274 + $0x1f8] sm:$0xff] %v3956
        %5582 = vst [vmem:[%s274 + $0x200] sm:$0xff] %v3971
        %5583 = vst [vmem:[%s274 + $0x208] sm:$0xff] %v3986
        %5584 = vst [vmem:[%s274 + $0x210] sm:$0xff] %v4001
        %5585 = vst [vmem:[%s274 + $0x218] sm:$0xff] %v4016
        %5586 = vst [vmem:[%s274 + $0x220] sm:$0xff] %v4031
        %5587 = vst.msk [vmem:[%s274 + $0x228] sm:$0xff] %vm5523, %v4046
        %5588 = vst [vmem:[%s274 + $0x230] sm:$0xff] %v4061
        %5589 = vst [vmem:[%s274 + $0x238] sm:$0xff] %v4076
        %5590 = vst [vmem:[%s274 + $0x240] sm:$0xff] %v4091
        %5591 = vst [vmem:[%s274 + $0x248] sm:$0xff] %v4106
        %5592 = vst [vmem:[%s274 + $0x250] sm:$0xff] %v4121
        %5593 = vst [vmem:[%s274 + $0x258] sm:$0xff] %v4136
        %5594 = vst.msk [vmem:[%s274 + $0x260] sm:$0xff] %vm5523, %v4151
        %5595 = vst [vmem:[%s274 + $0x268] sm:$0xff] %v4166
        %5596 = vst [vmem:[%s274 + $0x270] sm:$0xff] %v4181
        %5597 = vst [vmem:[%s274 + $0x278] sm:$0xff] %v4196
        %5598 = vst [vmem:[%s274 + $0x280] sm:$0xff] %v4211
        %5599 = vst [vmem:[%s274 + $0x288] sm:$0xff] %v4226
        %5600 = vst [vmem:[%s274 + $0x290] sm:$0xff] %v4241
        %5601 = vst.msk [vmem:[%s274 + $0x298] sm:$0xff] %vm5523, %v4256
        %5602 = vst [vmem:[%s274 + $0x2a0] sm:$0xff] %v4271
        %5603 = vst [vmem:[%s274 + $0x2a8] sm:$0xff] %v4286
        %5604 = vst [vmem:[%s274 + $0x2b0] sm:$0xff] %v4301
        %5605 = vst [vmem:[%s274 + $0x2b8] sm:$0xff] %v4316
        %5606 = vst [vmem:[%s274 + $0x2c0] sm:$0xff] %v4331
        %5607 = vst [vmem:[%s274 + $0x2c8] sm:$0xff] %v4346
        %5608 = vst.msk [vmem:[%s274 + $0x2d0] sm:$0xff] %vm5523, %v4361
        %5609 = vst [vmem:[%s274 + $0x2d8] sm:$0xff] %v4376
        %5610 = vst [vmem:[%s274 + $0x2e0] sm:$0xff] %v4391
        %5611 = vst [vmem:[%s274 + $0x2e8] sm:$0xff] %v4406
        %5612 = vst [vmem:[%s274 + $0x2f0] sm:$0xff] %v4421
        %5613 = vst [vmem:[%s274 + $0x2f8] sm:$0xff] %v4436
        %5614 = vst [vmem:[%s274 + $0x300] sm:$0xff] %v4451
        %5615 = vst.msk [vmem:[%s274 + $0x308] sm:$0xff] %vm5523, %v4466
        %5616 = vst [vmem:[%s274 + $0x310] sm:$0xff] %v4481
        %5617 = vst [vmem:[%s274 + $0x318] sm:$0xff] %v4496
        %5618 = vst [vmem:[%s274 + $0x320] sm:$0xff] %v4511
        %5619 = vst [vmem:[%s274 + $0x328] sm:$0xff] %v4526
        %5620 = vst [vmem:[%s274 + $0x330] sm:$0xff] %v4541
        %5621 = vst [vmem:[%s274 + $0x338] sm:$0xff] %v4556
        %5622 = vst.msk [vmem:[%s274 + $0x340] sm:$0xff] %vm5523, %v4571
        %5623 = vst [vmem:[%s274 + $0x348] sm:$0xff] %v4586
        %5624 = vst [vmem:[%s274 + $0x350] sm:$0xff] %v4601
        %5625 = vst [vmem:[%s274 + $0x358] sm:$0xff] %v4616
        %5626 = vst [vmem:[%s274 + $0x360] sm:$0xff] %v4631
        %5627 = vst [vmem:[%s274 + $0x368] sm:$0xff] %v4646
        %5628 = vst [vmem:[%s274 + $0x370] sm:$0xff] %v4661
        %5629 = vst.msk [vmem:[%s274 + $0x378] sm:$0xff] %vm5523, %v4676
        %5630 = vst [vmem:[%s274 + $0x380] sm:$0xff] %v4691
        %5631 = vst [vmem:[%s274 + $0x388] sm:$0xff] %v4706
        %5632 = vst [vmem:[%s274 + $0x390] sm:$0xff] %v4721
        %5633 = vst [vmem:[%s274 + $0x398] sm:$0xff] %v4736
        %5634 = vst [vmem:[%s274 + $0x3a0] sm:$0xff] %v4751
        %5635 = vst [vmem:[%s274 + $0x3a8] sm:$0xff] %v4766
        %5636 = vst.msk [vmem:[%s274 + $0x3b0] sm:$0xff] %vm5523, %v4781
        %5637 = vst [vmem:[%s274 + $0x3b8] sm:$0xff] %v4796
        %5638 = vst [vmem:[%s274 + $0x3c0] sm:$0xff] %v4811
        %5639 = vst [vmem:[%s274 + $0x3c8] sm:$0xff] %v4826
        %5640 = vst [vmem:[%s274 + $0x3d0] sm:$0xff] %v4841
        %5641 = vst [vmem:[%s274 + $0x3d8] sm:$0xff] %v4856
        %5642 = vst [vmem:[%s274 + $0x3e0] sm:$0xff] %v4871
        %5643 = vst.msk [vmem:[%s274 + $0x3e8] sm:$0xff] %vm5523, %v4886
        %5644 = vst [vmem:[%s274 + $0x3f0] sm:$0xff] %v4901
        %5645 = vst [vmem:[%s274 + $0x3f8] sm:$0xff] %v4916
        %5646 = vst [vmem:[%s274 + $0x400] sm:$0xff] %v4931
        %5647 = vst [vmem:[%s274 + $0x408] sm:$0xff] %v4946
        %5648 = vst [vmem:[%s274 + $0x410] sm:$0xff] %v4961
        %5649 = vst [vmem:[%s274 + $0x418] sm:$0xff] %v4976
        %5650 = vst.msk [vmem:[%s274 + $0x420] sm:$0xff] %vm5523, %v4991
        %5651 = vst [vmem:[%s274 + $0x428] sm:$0xff] %v5006
        %5652 = vst [vmem:[%s274 + $0x430] sm:$0xff] %v5021
        %5653 = vst [vmem:[%s274 + $0x438] sm:$0xff] %v5036
        %5654 = vst [vmem:[%s274 + $0x440] sm:$0xff] %v5051
        %5655 = vst [vmem:[%s274 + $0x448] sm:$0xff] %v5066
        %5656 = vst [vmem:[%s274 + $0x450] sm:$0xff] %v5081
        %5657 = vst.msk [vmem:[%s274 + $0x458] sm:$0xff] %vm5523, %v5096
        %5658 = vst [vmem:[%s274 + $0x460] sm:$0xff] %v5111
        %5659 = vst [vmem:[%s274 + $0x468] sm:$0xff] %v5126
        %5660 = vst [vmem:[%s274 + $0x470] sm:$0xff] %v5141
        %5661 = vst [vmem:[%s274 + $0x478] sm:$0xff] %v5156
        %5662 = vst [vmem:[%s274 + $0x480] sm:$0xff] %v5171
        %5663 = vst [vmem:[%s274 + $0x488] sm:$0xff] %v5186
        %5664 = vst.msk [vmem:[%s274 + $0x490] sm:$0xff] %vm5523, %v5201
        %5665 = vst [vmem:[%s274 + $0x498] sm:$0xff] %v5216
        %5666 = vst [vmem:[%s274 + $0x4a0] sm:$0xff] %v5231
        %5667 = vst [vmem:[%s274 + $0x4a8] sm:$0xff] %v5246
        %5668 = vst [vmem:[%s274 + $0x4b0] sm:$0xff] %v5261
        %5669 = vst [vmem:[%s274 + $0x4b8] sm:$0xff] %v5276
        %5670 = vst [vmem:[%s274 + $0x4c0] sm:$0xff] %v5291
        %5671 = vst.msk [vmem:[%s274 + $0x4c8] sm:$0xff] %vm5523, %v5306
        %5672 = vst [vmem:[%s274 + $0x4d0] sm:$0xff] %v5321
        %5673 = vst [vmem:[%s274 + $0x4d8] sm:$0xff] %v5336
        %5674 = vst [vmem:[%s274 + $0x4e0] sm:$0xff] %v5351
        %5675 = vst [vmem:[%s274 + $0x4e8] sm:$0xff] %v5366
        %5676 = vst [vmem:[%s274 + $0x4f0] sm:$0xff] %v5381
        %5677 = vst [vmem:[%s274 + $0x4f8] sm:$0xff] %v5396
        %5678 = vst.msk [vmem:[%s274 + $0x500] sm:$0xff] %vm5523, %v5411
        %5679 = vst [vmem:[%s274 + $0x508] sm:$0xff] %v5426
        %5680 = vst [vmem:[%s274 + $0x510] sm:$0xff] %v5441
        %5681 = vst [vmem:[%s274 + $0x518] sm:$0xff] %v5456
        %5682 = vst [vmem:[%s274 + $0x520] sm:$0xff] %v5471
        %5683 = vst [vmem:[%s274 + $0x528] sm:$0xff] %v5486
        %5684 = vst [vmem:[%s274 + $0x530] sm:$0xff] %v5501
        %5685 = vst.msk [vmem:[%s274 + $0x538] sm:$0xff] %vm5523, %v5516
        %s5686 = smul.u32 24, %s18
        %p5687 = scmp.lt.s32.totalorder %s5686, 47
        %s5688 = scalar_select %p5687, %s5686, 47
        %s5689 = smul.addr %s5688, 7
        %s5690 = smul.addr %s5689, 8
        %s5691 = scalar_lea.vmem %s5, %s5690
        // Predicated region
        $region53: #{decoder_forward.1} parent=39 // pred_check
          %p5692 = pneg %p146
        $region54: #{decoder_forward.1} parent=39 // pred_check_branch
          %5694 = sbr.rel (%p5692) target = $region56
        $region55: #{decoder_forward.1} parent=39 // pred_region
          %s5695 = smul.u32 24, %s18
        $region56: #{decoder_forward.1} parent=39 // pred_fallthru
          _
      $region40: #{decoder_forward.1} parent=5 // pred_fallthru
        _
      %p5696 = scmp.le.s32.totalorder 2, %s13
      // Predicated region
      $region57: #{decoder_forward.1} parent=5 // pred_check
        %p5697 = pneg %p5696
      $region58: #{decoder_forward.1} parent=5 // pred_check_branch
        %5699 = sbr.rel (%p5697) target = $region60
      $region59: #{decoder_forward.1} parent=5 // pred_region
        %s5700 = ssub.s32 %s13, 2
        // Predicated region
        $region61: #{decoder_forward.1} parent=59 // pred_check
          %p5701 = pneg %p152
        $region62: #{decoder_forward.1} parent=59 // pred_check_branch
          %5703 = sbr.rel (%p5701) target = $region64
        $region63: #{decoder_forward.1} parent=59 // pred_region
          %s5704 = smul.u32 24, %s19
          %p5705 = scmp.lt.s32.totalorder %s5704, 47
          %s5706 = scalar_select %p5705, %s5704, 47
          %s5707 = smul.addr %s5706, 7
          %s5708 = smul.addr %s5707, 8
          %s5709 = scalar_lea.vmem %s5, %s5708
        $region64: #{decoder_forward.1} parent=59 // pred_fallthru
          _
      $region60: #{decoder_forward.1} parent=5 // pred_fallthru
        _
    $region6: #{decoder_forward.1} parent=1 // loop_footer
      %s17 = sadd.s32 1, %s13
    $region7: #{decoder_forward.1} parent=1 // loop_footer_branch
      %12 = sbr.rel target = $region3
    $region8: #{decoder_forward.1} parent=1 // loop_exit
      _
    %5710 = vsyncpa [#allocation3], 1
    %s5711 = scalar_lea.sflag [#allocation3], 1
    %5712 = vsyncpa %s5711, 1
    %5713 = vsyncpa [#allocation5], 1

</llo_original>
